<compile_context>
chip_gen: v7x
topology: tpu7x:2x2x1
jax: 0.10.0
libtpu: 0.0.40
codegen_flags: <defaults>
</compile_context>

<pallas_src>
import math
import functools

import jax
import jax.numpy as jnp
from jax.experimental import pallas as pl
from jax.experimental.pallas import tpu as pltpu  # noqa: F401  (no TPU-specific params needed at these shapes)

# ----------------------------- hyper-params (small, consistent with module)
INPUT_SIZE = 1
OUTPUT_SIZE = 1
EMBED = 32           # embedding_size == hidden_size (required by residual)
HIDDEN = 32
NUM_LAYERS = 2
NUM_BLOCKS = 2
NUM_HEADS = 4
HEAD_DIM = HIDDEN // NUM_HEADS
DIM_FF = 64
MAX_WINDOW = 120
MIN_WINDOW = 24
ALPHA_INIT = 0.1
LN_EPS = 1e-5

BATCH = 2
SEQ = 8


# =========================================================================
# Small helpers
# =========================================================================
def _const_spec(shape):
    """Full-array block, constant (0,...) index map (grid=(1,))."""
    zeros = (0,) * len(shape)
    return pl.BlockSpec(shape, lambda i, _z=zeros: _z)


def _layernorm(y, w, b, eps=LN_EPS):
    mu = jnp.mean(y, axis=-1, keepdims=True)
    var = jnp.mean(jnp.square(y - mu), axis=-1, keepdims=True)
    return (y - mu) * jax.lax.rsqrt(var + eps) * w + b


# =========================================================================
# Fused xLSTM block kernel: bidirectional 2-layer LSTM + fwd/bwd sum +
# layernorm + residual, all in one pallas_call.
# Recurrence length is only B (=2), so it is fully unrolled in the kernel.
# =========================================================================
def _xlstm_block_kernel(*refs, num_layers):
    x_ref, o_ref = refs[0], refs[-1]
    lnw_ref, lnb_ref = refs[1 + 4 * num_layers], refs[2 + 4 * num_layers]
    layer_refs = [refs[1 + 4 * l: 1 + 4 * (l + 1)] for l in range(num_layers)]

    n_steps, T, H = x_ref.shape          # recurrence len (=B), lstm "batch" (=T), hidden
    x_ts = [x_ref[t].astype(jnp.float32) for t in range(n_steps)]

    def cell(xt, h, c, w, b):
        # single fused gate matmul: [x, h] @ [W_ih; W_hh] + (b_ih + b_hh)
        xh = jnp.concatenate([xt, h], axis=-1)                       # (T, F+H)
        g = jnp.dot(xh, w, preferred_element_type=jnp.float32) + b   # (T, 4H)
        i_g = jax.nn.sigmoid(g[:, 0 * H:1 * H])
        f_g = jax.nn.sigmoid(g[:, 1 * H:2 * H])
        g_g = jnp.tanh(g[:, 2 * H:3 * H])
        o_g = jax.nn.sigmoid(g[:, 3 * H:4 * H])
        c = f_g * c + i_g * g_g
        h = o_g * jnp.tanh(c)
        return h, c

    cur = x_ts
    for (wf_ref, bf_ref, wb_ref, bb_ref) in layer_refs:
        wf, bf = wf_ref[...], bf_ref[...]
        wb, bb = wb_ref[...], bb_ref[...]

        h = jnp.zeros((T, H), jnp.float32)
        c = jnp.zeros((T, H), jnp.float32)
        fwd = [None] * n_steps
        for t in range(n_steps):                    # forward direction
            h, c = cell(cur[t], h, c, wf, bf)
            fwd[t] = h

        h = jnp.zeros((T, H), jnp.float32)
        c = jnp.zeros((T, H), jnp.float32)
        bwd = [None] * n_steps
        for t in range(n_steps - 1, -1, -1):        # reverse direction
            h, c = cell(cur[t], h, c, wb, bb)
            bwd[t] = h

        # bidirectional concat feeds the next layer (inter-layer dropout == id)
        cur = [jnp.concatenate([fwd[t], bwd[t]], axis=-1) for t in range(n_steps)]

    lnw, lnb = lnw_ref[...], lnb_ref[...]
    for t in range(n_steps):
        y = cur[t][:, :H] + cur[t][:, H:]           # sum fwd/bwd halves
        y = _layernorm(y, lnw, lnb)
        o_ref[t] = (x_ts[t] + y).astype(o_ref.dtype)   # residual (dropout == id)


def xlstm_block(x, p):
    B, T, H = x.shape
    args = [x]
    for lw in p["lstm"]:
        args += [lw["w_f"], lw["b_f"], lw["w_b"], lw["b_b"]]
    args += [p["ln_w"], p["ln_b"]]
    kernel = functools.partial(_xlstm_block_kernel, num_layers=len(p["lstm"]))
    return pl.pallas_call(
        kernel,
        out_shape=jax.ShapeDtypeStruct((B, T, H), x.dtype),
        grid=(1,),
        in_specs=[_const_spec(a.shape) for a in args],
        out_specs=_const_spec((B, T, H)),
    )(*args)


# =========================================================================
# Fused transformer layer kernel: QKV projection, windowed attention (heads
# looped in-kernel), block-diagonal W_o, fc_out, residual, LN1, FFN, residual,
# LN2 — all in one pallas_call.
# =========================================================================
def _transformer_layer_kernel(*refs, batch, seq, num_heads, has_mask):
    if has_mask:
        (x_ref, mask_ref, wqkv_ref, bqkv_ref, wo_ref, wfc_ref, bfc_ref,
         ln1w_ref, ln1b_ref, w1_ref, b1_ref, w2_ref, b2_ref,
         ln2w_ref, ln2b_ref, o_ref) = refs
    else:
        (x_ref, wqkv_ref, bqkv_ref, wo_ref, wfc_ref, bfc_ref,
         ln1w_ref, ln1b_ref, w1_ref, b1_ref, w2_ref, b2_ref,
         ln2w_ref, ln2b_ref, o_ref) = refs
        mask_ref = None

    x = x_ref[...].astype(jnp.float32)                            # (B*T, D)
    D = x.shape[-1]
    hd = D // num_heads
    scale = 1.0 / math.sqrt(hd)

    # fused QKV matmul
    qkv = jnp.dot(x, wqkv_ref[...], preferred_element_type=jnp.float32) + bqkv_ref[...]
    q, k, v = qkv[:, :D], qkv[:, D:2 * D], qkv[:, 2 * D:]

    mask = mask_ref[...].astype(jnp.float32) if has_mask else None

    batch_rows = []
    for b in range(batch):
        r0 = b * seq
        head_cols = []
        for h in range(num_heads):
            c0 = h * hd
            qh = q[r0:r0 + seq, c0:c0 + hd]
            kh = k[r0:r0 + seq, c0:c0 + hd]
            vh = v[r0:r0 + seq, c0:c0 + hd]
            s = jax.lax.dot_general(qh, kh, (((1,), (1,)), ((), ())),
                                    preferred_element_type=jnp.float32) * scale
            if mask is not None:
                s = s + mask
            s = s - jnp.max(s, axis=-1, keepdims=True)
            pexp = jnp.exp(s)
            pexp = pexp / jnp.sum(pexp, axis=-1, keepdims=True)
            head_cols.append(jnp.dot(pexp, vh, preferred_element_type=jnp.float32))
        batch_rows.append(jnp.concatenate(head_cols, axis=-1))    # (T, D)
    attn = jnp.concatenate(batch_rows, axis=0)                     # (B*T, D)

    # per-head W_o (folded into a block-diagonal (D, D) matrix) then fc_out
    attn = jnp.dot(attn, wo_ref[...], preferred_element_type=jnp.float32)
    attn = jnp.dot(attn, wfc_ref[...], preferred_element_type=jnp.float32) + bfc_ref[...]

    src = x + attn                                                 # dropout1 == identity
    src = _layernorm(src, ln1w_ref[...], ln1b_ref[...])

    ff = jnp.maximum(
        jnp.dot(src, w1_ref[...], preferred_element_type=jnp.float32) + b1_ref[...], 0.0)
    ff = jnp.dot(ff, w2_ref[...], preferred_element_type=jnp.float32) + b2_ref[...]
    src = src + ff                                                 # dropout2 == identity
    src = _layernorm(src, ln2w_ref[...], ln2b_ref[...])
    o_ref[...] = src.astype(o_ref.dtype)


def _dynamic_window_mask(x, alpha, seq_len):
    """EWMA-driven window mask for a single forward call (step == 0)."""
    curr_fluct = jnp.abs(x[:, -1, :] - x[:, -2, :])                # (B, D)
    alpha_s = jax.nn.sigmoid(alpha)
    ewma_prev = curr_fluct[0, 0]                                   # step == 0 branch
    window_signal = alpha_s * jnp.mean(curr_fluct) + (1.0 - alpha_s) * ewma_prev
    scale_factor = jax.nn.sigmoid(window_signal)
    window_size = MIN_WINDOW + (MAX_WINDOW - MIN_WINDOW) * scale_factor
    half = jnp.floor(window_size).astype(jnp.int32) // 2           # int(win.item()) // 2
    ii = jax.lax.broadcasted_iota(jnp.int32, (seq_len, seq_len), 0)
    jj = jax.lax.broadcasted_iota(jnp.int32, (seq_len, seq_len), 1)
    return jnp.where(jnp.abs(ii - jj) <= half, 0.0, -jnp.inf).astype(jnp.float32)


def transformer_layer(x, p):
    B, T, D = x.shape
    # window_size > MIN_WINDOW  =>  half >= MIN_WINDOW // 2.  If T-1 <= half the
    # additive mask is identically zero, so it is statically skipped (perf review).
    has_mask = (T - 1) > (MIN_WINDOW // 2)
    args = [x.reshape(B * T, D)]
    if has_mask:
        args.append(_dynamic_window_mask(x, p["alpha"], T))
    args += [p["wqkv"], p["bqkv"], p["wo_block"], p["w_fc"], p["b_fc"],
             p["ln1_w"], p["ln1_b"], p["w1"], p["b1"], p["w2"], p["b2"],
             p["ln2_w"], p["ln2_b"]]
    kernel = functools.partial(_transformer_layer_kernel, batch=B, seq=T,
                               num_heads=NUM_HEADS, has_mask=has_mask)
    out = pl.pallas_call(
        kernel,
        out_shape=jax.ShapeDtypeStruct((B * T, D), x.dtype),
        grid=(1,),
        in_specs=[_const_spec(a.shape) for a in args],
        out_specs=_const_spec((B * T, D)),
    )(*args)
    return out.reshape(B, T, D)


# =========================================================================
# Model glue
# =========================================================================
def model_forward(input_seq, params):
    B, T, F = input_seq.shape
    # Embedding (B*T,1)x(1,E) and the final (B,H)x(H,1) head are degenerate
    # outer products: plain XLA is cheaper than a pallas_call launch (perf review).
    h = input_seq.reshape(B * T, F) @ params["emb_w"] + params["emb_b"]
    out = h.reshape(B, T, EMBED)
    for i in range(NUM_BLOCKS):
        out = xlstm_block(out, params["blocks"][i])
        out = transformer_layer(out, params["trans"][i])
    final = out[:, -1, :]                                          # dropout == identity
    return final @ params["out_w"] + params["out_b"]


# =========================================================================
# Deterministic parameter initialization
# =========================================================================
class KeyGen:
    def __init__(self, key):
        self._key = key

    def __call__(self):
        self._key, sub = jax.random.split(self._key)
        return sub


def _block_diag_heads(wo_heads):
    n_h, hd, _ = wo_heads.shape
    D = n_h * hd
    m = jnp.zeros((D, D), jnp.float32)
    for h in range(n_h):
        m = m.at[h * hd:(h + 1) * hd, h * hd:(h + 1) * hd].set(wo_heads[h])
    return m


def init_params(key):
    kg = KeyGen(key)

    def nrm(shape, scale=0.1):
        return (scale * jax.random.normal(kg(), shape)).astype(jnp.float32)

    def lstm_layer(in_dim):
        return {
            "w_f": nrm((in_dim + HIDDEN, 4 * HIDDEN)),   # [W_ih; W_hh] stacked on K
            "b_f": nrm((1, 4 * HIDDEN)),                 # b_ih + b_hh pre-summed
            "w_b": nrm((in_dim + HIDDEN, 4 * HIDDEN)),
            "b_b": nrm((1, 4 * HIDDEN)),
        }

    def block_params():
        layers = [lstm_layer(HIDDEN if l == 0 else 2 * HIDDEN) for l in range(NUM_LAYERS)]
        return {"lstm": layers,
                "ln_w": jnp.ones((1, HIDDEN), jnp.float32),
                "ln_b": jnp.zeros((1, HIDDEN), jnp.float32)}

    def transformer_params():
        D = HIDDEN
        wo_heads = nrm((NUM_HEADS, HEAD_DIM, HEAD_DIM))
        return {
            "alpha": jnp.asarray(ALPHA_INIT, jnp.float32),
            "wqkv": nrm((D, 3 * D)), "bqkv": nrm((1, 3 * D)),
            "wo_block": _block_diag_heads(wo_heads),     # per-head W_o as block-diag
            "w_fc": nrm((D, D)), "b_fc": nrm((1, D)),
            "ln1_w": jnp.ones((1, D), jnp.float32), "ln1_b": jnp.zeros((1, D), jnp.float32),
            "w1": nrm((D, DIM_FF)), "b1": nrm((1, DIM_FF)),
            "w2": nrm((DIM_FF, D)), "b2": nrm((1, D)),
            "ln2_w": jnp.ones((1, D), jnp.float32), "ln2_b": jnp.zeros((1, D), jnp.float32),
        }

    return {
        "emb_w": nrm((INPUT_SIZE, EMBED)),
        "emb_b": nrm((1, EMBED)),
        "blocks": [block_params() for _ in range(NUM_BLOCKS)],
        "trans": [transformer_params() for _ in range(NUM_BLOCKS)],
        "out_w": nrm((HIDDEN, OUTPUT_SIZE)),
        "out_b": nrm((1, OUTPUT_SIZE)),
    }


# =========================================================================
if __name__ == "__main__":
    key = jax.random.PRNGKey(0)
    pkey, xkey = jax.random.split(key)
    params = init_params(pkey)
    x = jax.random.normal(xkey, (BATCH, SEQ, INPUT_SIZE), dtype=jnp.float32)

    out = jax.jit(model_forward)(x, params)
    out = jax.block_until_ready(out)
    assert out.shape == (BATCH, OUTPUT_SIZE)
    assert bool(jnp.all(jnp.isfinite(out)))
    print("KERNEL_OK")
</pallas_src>

<mosaic_0001>
module attributes {stable_mosaic.version = 11 : i64} {
  func.func @_xlstm_block_kernel(%arg0: i32, %arg1: memref<2x8x32xf32, #tpu.memory_space<vmem>>, %arg2: memref<64x128xf32, #tpu.memory_space<vmem>>, %arg3: memref<1x128xf32, #tpu.memory_space<vmem>>, %arg4: memref<64x128xf32, #tpu.memory_space<vmem>>, %arg5: memref<1x128xf32, #tpu.memory_space<vmem>>, %arg6: memref<96x128xf32, #tpu.memory_space<vmem>>, %arg7: memref<1x128xf32, #tpu.memory_space<vmem>>, %arg8: memref<96x128xf32, #tpu.memory_space<vmem>>, %arg9: memref<1x128xf32, #tpu.memory_space<vmem>>, %arg10: memref<1x32xf32, #tpu.memory_space<vmem>>, %arg11: memref<1x32xf32, #tpu.memory_space<vmem>>, %arg12: memref<2x8x32xf32, #tpu.memory_space<vmem>>) attributes {dimension_semantics = [#tpu.dimension_semantics<arbitrary>], iteration_bounds = array<i64: 1>, scalar_prefetch = 0 : i64, scratch_operands = 0 : i64, tpu.core_type = #tpu.core_type<tc>, window_params = [{pipeline_mode = #tpu.pipeline_mode<synchronous>, transform_indices = @transform_0, window_bounds = array<i64: 2, 8, 32>}, {pipeline_mode = #tpu.pipeline_mode<synchronous>, transform_indices = @transform_1, window_bounds = array<i64: 64, 128>}, {pipeline_mode = #tpu.pipeline_mode<synchronous>, transform_indices = @transform_2, window_bounds = array<i64: 1, 128>}, {pipeline_mode = #tpu.pipeline_mode<synchronous>, transform_indices = @transform_3, window_bounds = array<i64: 64, 128>}, {pipeline_mode = #tpu.pipeline_mode<synchronous>, transform_indices = @transform_4, window_bounds = array<i64: 1, 128>}, {pipeline_mode = #tpu.pipeline_mode<synchronous>, transform_indices = @transform_5, window_bounds = array<i64: 96, 128>}, {pipeline_mode = #tpu.pipeline_mode<synchronous>, transform_indices = @transform_6, window_bounds = array<i64: 1, 128>}, {pipeline_mode = #tpu.pipeline_mode<synchronous>, transform_indices = @transform_7, window_bounds = array<i64: 96, 128>}, {pipeline_mode = #tpu.pipeline_mode<synchronous>, transform_indices = @transform_8, window_bounds = array<i64: 1, 128>}, {pipeline_mode = #tpu.pipeline_mode<synchronous>, transform_indices = @transform_9, window_bounds = array<i64: 1, 32>}, {pipeline_mode = #tpu.pipeline_mode<synchronous>, transform_indices = @transform_10, window_bounds = array<i64: 1, 32>}, {pipeline_mode = #tpu.pipeline_mode<synchronous>, transform_indices = @transform_11, window_bounds = array<i64: 2, 8, 32>}]} {
    %c0 = arith.constant 0 : index
    %c0_0 = arith.constant 0 : index
    %c0_1 = arith.constant 0 : index
    %0 = vector.load %arg1[%c0, %c0_0, %c0_1] : memref<2x8x32xf32, #tpu.memory_space<vmem>>, vector<1x8x32xf32>
    %1 = vector.shape_cast %0 : vector<1x8x32xf32> to vector<8x32xf32>
    %c1 = arith.constant 1 : index
    %c0_2 = arith.constant 0 : index
    %c0_3 = arith.constant 0 : index
    %2 = vector.load %arg1[%c1, %c0_2, %c0_3] : memref<2x8x32xf32, #tpu.memory_space<vmem>>, vector<1x8x32xf32>
    %3 = vector.shape_cast %2 : vector<1x8x32xf32> to vector<8x32xf32>
    %c0_4 = arith.constant 0 : index
    %c0_5 = arith.constant 0 : index
    %4 = vector.load %arg2[%c0_4, %c0_5] : memref<64x128xf32, #tpu.memory_space<vmem>>, vector<64x128xf32>
    %c0_6 = arith.constant 0 : index
    %c0_7 = arith.constant 0 : index
    %5 = vector.load %arg3[%c0_6, %c0_7] : memref<1x128xf32, #tpu.memory_space<vmem>>, vector<1x128xf32>
    %c0_8 = arith.constant 0 : index
    %c0_9 = arith.constant 0 : index
    %6 = vector.load %arg4[%c0_8, %c0_9] : memref<64x128xf32, #tpu.memory_space<vmem>>, vector<64x128xf32>
    %c0_10 = arith.constant 0 : index
    %c0_11 = arith.constant 0 : index
    %7 = vector.load %arg5[%c0_10, %c0_11] : memref<1x128xf32, #tpu.memory_space<vmem>>, vector<1x128xf32>
    %cst = arith.constant 0.000000e+00 : f32
    %8 = vector.broadcast %cst : f32 to vector<8x32xf32>
    %cst_12 = arith.constant 0.000000e+00 : f32
    %9 = vector.broadcast %cst_12 : f32 to vector<8x32xf32>
    %10 = tpu.concatenate %1, %8 in 1 : vector<8x32xf32>, vector<8x32xf32> -> vector<8x64xf32>
    %cst_13 = arith.constant dense<0.000000e+00> : vector<8x128xf32>
    %11 = tpu.matmul %10, %4, %cst_13 {dimension_numbers = #tpu.dot_dimension_numbers<[1], [0], [0], [1], [0, 0, 1, 1], [], []>} : vector<8x64xf32>, vector<64x128xf32>, vector<8x128xf32> -> vector<8x128xf32>
    %12 = vector.broadcast %5 : vector<1x128xf32> to vector<8x128xf32>
    %13 = arith.addf %11, %12 : vector<8x128xf32>
    %14 = vector.extract_strided_slice %13 {offsets = [0, 0], sizes = [8, 32], strides = [1, 1]} : vector<8x128xf32> to vector<8x32xf32>
    %15 = arith.negf %14 : vector<8x32xf32>
    %16 = math.exp %15 : vector<8x32xf32>
    %cst_14 = arith.constant 1.000000e+00 : f32
    %17 = vector.broadcast %cst_14 : f32 to vector<8x32xf32>
    %18 = arith.addf %17, %16 : vector<8x32xf32>
    %19 = arith.divf %17, %18 : vector<8x32xf32>
    %20 = vector.extract_strided_slice %13 {offsets = [0, 32], sizes = [8, 32], strides = [1, 1]} : vector<8x128xf32> to vector<8x32xf32>
    %21 = arith.negf %20 : vector<8x32xf32>
    %22 = math.exp %21 : vector<8x32xf32>
    %cst_15 = arith.constant 1.000000e+00 : f32
    %23 = vector.broadcast %cst_15 : f32 to vector<8x32xf32>
    %24 = arith.addf %23, %22 : vector<8x32xf32>
    %25 = arith.divf %23, %24 : vector<8x32xf32>
    %26 = vector.extract_strided_slice %13 {offsets = [0, 64], sizes = [8, 32], strides = [1, 1]} : vector<8x128xf32> to vector<8x32xf32>
    %27 = math.tanh %26 : vector<8x32xf32>
    %28 = vector.extract_strided_slice %13 {offsets = [0, 96], sizes = [8, 32], strides = [1, 1]} : vector<8x128xf32> to vector<8x32xf32>
    %29 = arith.negf %28 : vector<8x32xf32>
    %30 = math.exp %29 : vector<8x32xf32>
    %cst_16 = arith.constant 1.000000e+00 : f32
    %31 = vector.broadcast %cst_16 : f32 to vector<8x32xf32>
    %32 = arith.addf %31, %30 : vector<8x32xf32>
    %33 = arith.divf %31, %32 : vector<8x32xf32>
    %34 = arith.mulf %25, %9 : vector<8x32xf32>
    %35 = arith.mulf %19, %27 : vector<8x32xf32>
    %36 = arith.addf %34, %35 : vector<8x32xf32>
    %37 = math.tanh %36 : vector<8x32xf32>
    %38 = arith.mulf %33, %37 : vector<8x32xf32>
    %39 = tpu.concatenate %3, %38 in 1 : vector<8x32xf32>, vector<8x32xf32> -> vector<8x64xf32>
    %cst_17 = arith.constant dense<0.000000e+00> : vector<8x128xf32>
    %40 = tpu.matmul %39, %4, %cst_17 {dimension_numbers = #tpu.dot_dimension_numbers<[1], [0], [0], [1], [0, 0, 1, 1], [], []>} : vector<8x64xf32>, vector<64x128xf32>, vector<8x128xf32> -> vector<8x128xf32>
    %41 = vector.broadcast %5 : vector<1x128xf32> to vector<8x128xf32>
    %42 = arith.addf %40, %41 : vector<8x128xf32>
    %43 = vector.extract_strided_slice %42 {offsets = [0, 0], sizes = [8, 32], strides = [1, 1]} : vector<8x128xf32> to vector<8x32xf32>
    %44 = arith.negf %43 : vector<8x32xf32>
    %45 = math.exp %44 : vector<8x32xf32>
    %cst_18 = arith.constant 1.000000e+00 : f32
    %46 = vector.broadcast %cst_18 : f32 to vector<8x32xf32>
    %47 = arith.addf %46, %45 : vector<8x32xf32>
    %48 = arith.divf %46, %47 : vector<8x32xf32>
    %49 = vector.extract_strided_slice %42 {offsets = [0, 32], sizes = [8, 32], strides = [1, 1]} : vector<8x128xf32> to vector<8x32xf32>
    %50 = arith.negf %49 : vector<8x32xf32>
    %51 = math.exp %50 : vector<8x32xf32>
    %cst_19 = arith.constant 1.000000e+00 : f32
    %52 = vector.broadcast %cst_19 : f32 to vector<8x32xf32>
    %53 = arith.addf %52, %51 : vector<8x32xf32>
    %54 = arith.divf %52, %53 : vector<8x32xf32>
    %55 = vector.extract_strided_slice %42 {offsets = [0, 64], sizes = [8, 32], strides = [1, 1]} : vector<8x128xf32> to vector<8x32xf32>
    %56 = math.tanh %55 : vector<8x32xf32>
    %57 = vector.extract_strided_slice %42 {offsets = [0, 96], sizes = [8, 32], strides = [1, 1]} : vector<8x128xf32> to vector<8x32xf32>
    %58 = arith.negf %57 : vector<8x32xf32>
    %59 = math.exp %58 : vector<8x32xf32>
    %cst_20 = arith.constant 1.000000e+00 : f32
    %60 = vector.broadcast %cst_20 : f32 to vector<8x32xf32>
    %61 = arith.addf %60, %59 : vector<8x32xf32>
    %62 = arith.divf %60, %61 : vector<8x32xf32>
    %63 = arith.mulf %54, %36 : vector<8x32xf32>
    %64 = arith.mulf %48, %56 : vector<8x32xf32>
    %65 = arith.addf %63, %64 : vector<8x32xf32>
    %66 = math.tanh %65 : vector<8x32xf32>
    %67 = arith.mulf %62, %66 : vector<8x32xf32>
    %cst_21 = arith.constant 0.000000e+00 : f32
    %68 = vector.broadcast %cst_21 : f32 to vector<8x32xf32>
    %cst_22 = arith.constant 0.000000e+00 : f32
    %69 = vector.broadcast %cst_22 : f32 to vector<8x32xf32>
    %70 = tpu.concatenate %3, %68 in 1 : vector<8x32xf32>, vector<8x32xf32> -> vector<8x64xf32>
    %cst_23 = arith.constant dense<0.000000e+00> : vector<8x128xf32>
    %71 = tpu.matmul %70, %6, %cst_23 {dimension_numbers = #tpu.dot_dimension_numbers<[1], [0], [0], [1], [0, 0, 1, 1], [], []>} : vector<8x64xf32>, vector<64x128xf32>, vector<8x128xf32> -> vector<8x128xf32>
    %72 = vector.broadcast %7 : vector<1x128xf32> to vector<8x128xf32>
    %73 = arith.addf %71, %72 : vector<8x128xf32>
    %74 = vector.extract_strided_slice %73 {offsets = [0, 0], sizes = [8, 32], strides = [1, 1]} : vector<8x128xf32> to vector<8x32xf32>
    %75 = arith.negf %74 : vector<8x32xf32>
    %76 = math.exp %75 : vector<8x32xf32>
    %cst_24 = arith.constant 1.000000e+00 : f32
    %77 = vector.broadcast %cst_24 : f32 to vector<8x32xf32>
    %78 = arith.addf %77, %76 : vector<8x32xf32>
    %79 = arith.divf %77, %78 : vector<8x32xf32>
    %80 = vector.extract_strided_slice %73 {offsets = [0, 32], sizes = [8, 32], strides = [1, 1]} : vector<8x128xf32> to vector<8x32xf32>
    %81 = arith.negf %80 : vector<8x32xf32>
    %82 = math.exp %81 : vector<8x32xf32>
    %cst_25 = arith.constant 1.000000e+00 : f32
    %83 = vector.broadcast %cst_25 : f32 to vector<8x32xf32>
    %84 = arith.addf %83, %82 : vector<8x32xf32>
    %85 = arith.divf %83, %84 : vector<8x32xf32>
    %86 = vector.extract_strided_slice %73 {offsets = [0, 64], sizes = [8, 32], strides = [1, 1]} : vector<8x128xf32> to vector<8x32xf32>
    %87 = math.tanh %86 : vector<8x32xf32>
    %88 = vector.extract_strided_slice %73 {offsets = [0, 96], sizes = [8, 32], strides = [1, 1]} : vector<8x128xf32> to vector<8x32xf32>
    %89 = arith.negf %88 : vector<8x32xf32>
    %90 = math.exp %89 : vector<8x32xf32>
    %cst_26 = arith.constant 1.000000e+00 : f32
    %91 = vector.broadcast %cst_26 : f32 to vector<8x32xf32>
    %92 = arith.addf %91, %90 : vector<8x32xf32>
    %93 = arith.divf %91, %92 : vector<8x32xf32>
    %94 = arith.mulf %85, %69 : vector<8x32xf32>
    %95 = arith.mulf %79, %87 : vector<8x32xf32>
    %96 = arith.addf %94, %95 : vector<8x32xf32>
    %97 = math.tanh %96 : vector<8x32xf32>
    %98 = arith.mulf %93, %97 : vector<8x32xf32>
    %99 = tpu.concatenate %1, %98 in 1 : vector<8x32xf32>, vector<8x32xf32> -> vector<8x64xf32>
    %cst_27 = arith.constant dense<0.000000e+00> : vector<8x128xf32>
    %100 = tpu.matmul %99, %6, %cst_27 {dimension_numbers = #tpu.dot_dimension_numbers<[1], [0], [0], [1], [0, 0, 1, 1], [], []>} : vector<8x64xf32>, vector<64x128xf32>, vector<8x128xf32> -> vector<8x128xf32>
    %101 = vector.broadcast %7 : vector<1x128xf32> to vector<8x128xf32>
    %102 = arith.addf %100, %101 : vector<8x128xf32>
    %103 = vector.extract_strided_slice %102 {offsets = [0, 0], sizes = [8, 32], strides = [1, 1]} : vector<8x128xf32> to vector<8x32xf32>
    %104 = arith.negf %103 : vector<8x32xf32>
    %105 = math.exp %104 : vector<8x32xf32>
    %cst_28 = arith.constant 1.000000e+00 : f32
    %106 = vector.broadcast %cst_28 : f32 to vector<8x32xf32>
    %107 = arith.addf %106, %105 : vector<8x32xf32>
    %108 = arith.divf %106, %107 : vector<8x32xf32>
    %109 = vector.extract_strided_slice %102 {offsets = [0, 32], sizes = [8, 32], strides = [1, 1]} : vector<8x128xf32> to vector<8x32xf32>
    %110 = arith.negf %109 : vector<8x32xf32>
    %111 = math.exp %110 : vector<8x32xf32>
    %cst_29 = arith.constant 1.000000e+00 : f32
    %112 = vector.broadcast %cst_29 : f32 to vector<8x32xf32>
    %113 = arith.addf %112, %111 : vector<8x32xf32>
    %114 = arith.divf %112, %113 : vector<8x32xf32>
    %115 = vector.extract_strided_slice %102 {offsets = [0, 64], sizes = [8, 32], strides = [1, 1]} : vector<8x128xf32> to vector<8x32xf32>
    %116 = math.tanh %115 : vector<8x32xf32>
    %117 = vector.extract_strided_slice %102 {offsets = [0, 96], sizes = [8, 32], strides = [1, 1]} : vector<8x128xf32> to vector<8x32xf32>
    %118 = arith.negf %117 : vector<8x32xf32>
    %119 = math.exp %118 : vector<8x32xf32>
    %cst_30 = arith.constant 1.000000e+00 : f32
    %120 = vector.broadcast %cst_30 : f32 to vector<8x32xf32>
    %121 = arith.addf %120, %119 : vector<8x32xf32>
    %122 = arith.divf %120, %121 : vector<8x32xf32>
    %123 = arith.mulf %114, %96 : vector<8x32xf32>
    %124 = arith.mulf %108, %116 : vector<8x32xf32>
    %125 = arith.addf %123, %124 : vector<8x32xf32>
    %126 = math.tanh %125 : vector<8x32xf32>
    %127 = arith.mulf %122, %126 : vector<8x32xf32>
    %128 = tpu.concatenate %38, %127 in 1 : vector<8x32xf32>, vector<8x32xf32> -> vector<8x64xf32>
    %129 = tpu.concatenate %67, %98 in 1 : vector<8x32xf32>, vector<8x32xf32> -> vector<8x64xf32>
    %c0_31 = arith.constant 0 : index
    %c0_32 = arith.constant 0 : index
    %130 = vector.load %arg6[%c0_31, %c0_32] : memref<96x128xf32, #tpu.memory_space<vmem>>, vector<96x128xf32>
    %c0_33 = arith.constant 0 : index
    %c0_34 = arith.constant 0 : index
    %131 = vector.load %arg7[%c0_33, %c0_34] : memref<1x128xf32, #tpu.memory_space<vmem>>, vector<1x128xf32>
    %c0_35 = arith.constant 0 : index
    %c0_36 = arith.constant 0 : index
    %132 = vector.load %arg8[%c0_35, %c0_36] : memref<96x128xf32, #tpu.memory_space<vmem>>, vector<96x128xf32>
    %c0_37 = arith.constant 0 : index
    %c0_38 = arith.constant 0 : index
    %133 = vector.load %arg9[%c0_37, %c0_38] : memref<1x128xf32, #tpu.memory_space<vmem>>, vector<1x128xf32>
    %cst_39 = arith.constant 0.000000e+00 : f32
    %134 = vector.broadcast %cst_39 : f32 to vector<8x32xf32>
    %cst_40 = arith.constant 0.000000e+00 : f32
    %135 = vector.broadcast %cst_40 : f32 to vector<8x32xf32>
    %136 = tpu.concatenate %128, %134 in 1 : vector<8x64xf32>, vector<8x32xf32> -> vector<8x96xf32>
    %cst_41 = arith.constant dense<0.000000e+00> : vector<8x128xf32>
    %137 = tpu.matmul %136, %130, %cst_41 {dimension_numbers = #tpu.dot_dimension_numbers<[1], [0], [0], [1], [0, 0, 1, 1], [], []>} : vector<8x96xf32>, vector<96x128xf32>, vector<8x128xf32> -> vector<8x128xf32>
    %138 = vector.broadcast %131 : vector<1x128xf32> to vector<8x128xf32>
    %139 = arith.addf %137, %138 : vector<8x128xf32>
    %140 = vector.extract_strided_slice %139 {offsets = [0, 0], sizes = [8, 32], strides = [1, 1]} : vector<8x128xf32> to vector<8x32xf32>
    %141 = arith.negf %140 : vector<8x32xf32>
    %142 = math.exp %141 : vector<8x32xf32>
    %cst_42 = arith.constant 1.000000e+00 : f32
    %143 = vector.broadcast %cst_42 : f32 to vector<8x32xf32>
    %144 = arith.addf %143, %142 : vector<8x32xf32>
    %145 = arith.divf %143, %144 : vector<8x32xf32>
    %146 = vector.extract_strided_slice %139 {offsets = [0, 32], sizes = [8, 32], strides = [1, 1]} : vector<8x128xf32> to vector<8x32xf32>
    %147 = arith.negf %146 : vector<8x32xf32>
    %148 = math.exp %147 : vector<8x32xf32>
    %cst_43 = arith.constant 1.000000e+00 : f32
    %149 = vector.broadcast %cst_43 : f32 to vector<8x32xf32>
    %150 = arith.addf %149, %148 : vector<8x32xf32>
    %151 = arith.divf %149, %150 : vector<8x32xf32>
    %152 = vector.extract_strided_slice %139 {offsets = [0, 64], sizes = [8, 32], strides = [1, 1]} : vector<8x128xf32> to vector<8x32xf32>
    %153 = math.tanh %152 : vector<8x32xf32>
    %154 = vector.extract_strided_slice %139 {offsets = [0, 96], sizes = [8, 32], strides = [1, 1]} : vector<8x128xf32> to vector<8x32xf32>
    %155 = arith.negf %154 : vector<8x32xf32>
    %156 = math.exp %155 : vector<8x32xf32>
    %cst_44 = arith.constant 1.000000e+00 : f32
    %157 = vector.broadcast %cst_44 : f32 to vector<8x32xf32>
    %158 = arith.addf %157, %156 : vector<8x32xf32>
    %159 = arith.divf %157, %158 : vector<8x32xf32>
    %160 = arith.mulf %151, %135 : vector<8x32xf32>
    %161 = arith.mulf %145, %153 : vector<8x32xf32>
    %162 = arith.addf %160, %161 : vector<8x32xf32>
    %163 = math.tanh %162 : vector<8x32xf32>
    %164 = arith.mulf %159, %163 : vector<8x32xf32>
    %165 = tpu.concatenate %129, %164 in 1 : vector<8x64xf32>, vector<8x32xf32> -> vector<8x96xf32>
    %cst_45 = arith.constant dense<0.000000e+00> : vector<8x128xf32>
    %166 = tpu.matmul %165, %130, %cst_45 {dimension_numbers = #tpu.dot_dimension_numbers<[1], [0], [0], [1], [0, 0, 1, 1], [], []>} : vector<8x96xf32>, vector<96x128xf32>, vector<8x128xf32> -> vector<8x128xf32>
    %167 = vector.broadcast %131 : vector<1x128xf32> to vector<8x128xf32>
    %168 = arith.addf %166, %167 : vector<8x128xf32>
    %169 = vector.extract_strided_slice %168 {offsets = [0, 0], sizes = [8, 32], strides = [1, 1]} : vector<8x128xf32> to vector<8x32xf32>
    %170 = arith.negf %169 : vector<8x32xf32>
    %171 = math.exp %170 : vector<8x32xf32>
    %cst_46 = arith.constant 1.000000e+00 : f32
    %172 = vector.broadcast %cst_46 : f32 to vector<8x32xf32>
    %173 = arith.addf %172, %171 : vector<8x32xf32>
    %174 = arith.divf %172, %173 : vector<8x32xf32>
    %175 = vector.extract_strided_slice %168 {offsets = [0, 32], sizes = [8, 32], strides = [1, 1]} : vector<8x128xf32> to vector<8x32xf32>
    %176 = arith.negf %175 : vector<8x32xf32>
    %177 = math.exp %176 : vector<8x32xf32>
    %cst_47 = arith.constant 1.000000e+00 : f32
    %178 = vector.broadcast %cst_47 : f32 to vector<8x32xf32>
    %179 = arith.addf %178, %177 : vector<8x32xf32>
    %180 = arith.divf %178, %179 : vector<8x32xf32>
    %181 = vector.extract_strided_slice %168 {offsets = [0, 64], sizes = [8, 32], strides = [1, 1]} : vector<8x128xf32> to vector<8x32xf32>
    %182 = math.tanh %181 : vector<8x32xf32>
    %183 = vector.extract_strided_slice %168 {offsets = [0, 96], sizes = [8, 32], strides = [1, 1]} : vector<8x128xf32> to vector<8x32xf32>
    %184 = arith.negf %183 : vector<8x32xf32>
    %185 = math.exp %184 : vector<8x32xf32>
    %cst_48 = arith.constant 1.000000e+00 : f32
    %186 = vector.broadcast %cst_48 : f32 to vector<8x32xf32>
    %187 = arith.addf %186, %185 : vector<8x32xf32>
    %188 = arith.divf %186, %187 : vector<8x32xf32>
    %189 = arith.mulf %180, %162 : vector<8x32xf32>
    %190 = arith.mulf %174, %182 : vector<8x32xf32>
    %191 = arith.addf %189, %190 : vector<8x32xf32>
    %192 = math.tanh %191 : vector<8x32xf32>
    %193 = arith.mulf %188, %192 : vector<8x32xf32>
    %cst_49 = arith.constant 0.000000e+00 : f32
    %194 = vector.broadcast %cst_49 : f32 to vector<8x32xf32>
    %cst_50 = arith.constant 0.000000e+00 : f32
    %195 = vector.broadcast %cst_50 : f32 to vector<8x32xf32>
    %196 = tpu.concatenate %129, %194 in 1 : vector<8x64xf32>, vector<8x32xf32> -> vector<8x96xf32>
    %cst_51 = arith.constant dense<0.000000e+00> : vector<8x128xf32>
    %197 = tpu.matmul %196, %132, %cst_51 {dimension_numbers = #tpu.dot_dimension_numbers<[1], [0], [0], [1], [0, 0, 1, 1], [], []>} : vector<8x96xf32>, vector<96x128xf32>, vector<8x128xf32> -> vector<8x128xf32>
    %198 = vector.broadcast %133 : vector<1x128xf32> to vector<8x128xf32>
    %199 = arith.addf %197, %198 : vector<8x128xf32>
    %200 = vector.extract_strided_slice %199 {offsets = [0, 0], sizes = [8, 32], strides = [1, 1]} : vector<8x128xf32> to vector<8x32xf32>
    %201 = arith.negf %200 : vector<8x32xf32>
    %202 = math.exp %201 : vector<8x32xf32>
    %cst_52 = arith.constant 1.000000e+00 : f32
    %203 = vector.broadcast %cst_52 : f32 to vector<8x32xf32>
    %204 = arith.addf %203, %202 : vector<8x32xf32>
    %205 = arith.divf %203, %204 : vector<8x32xf32>
    %206 = vector.extract_strided_slice %199 {offsets = [0, 32], sizes = [8, 32], strides = [1, 1]} : vector<8x128xf32> to vector<8x32xf32>
    %207 = arith.negf %206 : vector<8x32xf32>
    %208 = math.exp %207 : vector<8x32xf32>
    %cst_53 = arith.constant 1.000000e+00 : f32
    %209 = vector.broadcast %cst_53 : f32 to vector<8x32xf32>
    %210 = arith.addf %209, %208 : vector<8x32xf32>
    %211 = arith.divf %209, %210 : vector<8x32xf32>
    %212 = vector.extract_strided_slice %199 {offsets = [0, 64], sizes = [8, 32], strides = [1, 1]} : vector<8x128xf32> to vector<8x32xf32>
    %213 = math.tanh %212 : vector<8x32xf32>
    %214 = vector.extract_strided_slice %199 {offsets = [0, 96], sizes = [8, 32], strides = [1, 1]} : vector<8x128xf32> to vector<8x32xf32>
    %215 = arith.negf %214 : vector<8x32xf32>
    %216 = math.exp %215 : vector<8x32xf32>
    %cst_54 = arith.constant 1.000000e+00 : f32
    %217 = vector.broadcast %cst_54 : f32 to vector<8x32xf32>
    %218 = arith.addf %217, %216 : vector<8x32xf32>
    %219 = arith.divf %217, %218 : vector<8x32xf32>
    %220 = arith.mulf %211, %195 : vector<8x32xf32>
    %221 = arith.mulf %205, %213 : vector<8x32xf32>
    %222 = arith.addf %220, %221 : vector<8x32xf32>
    %223 = math.tanh %222 : vector<8x32xf32>
    %224 = arith.mulf %219, %223 : vector<8x32xf32>
    %225 = tpu.concatenate %128, %224 in 1 : vector<8x64xf32>, vector<8x32xf32> -> vector<8x96xf32>
    %cst_55 = arith.constant dense<0.000000e+00> : vector<8x128xf32>
    %226 = tpu.matmul %225, %132, %cst_55 {dimension_numbers = #tpu.dot_dimension_numbers<[1], [0], [0], [1], [0, 0, 1, 1], [], []>} : vector<8x96xf32>, vector<96x128xf32>, vector<8x128xf32> -> vector<8x128xf32>
    %227 = vector.broadcast %133 : vector<1x128xf32> to vector<8x128xf32>
    %228 = arith.addf %226, %227 : vector<8x128xf32>
    %229 = vector.extract_strided_slice %228 {offsets = [0, 0], sizes = [8, 32], strides = [1, 1]} : vector<8x128xf32> to vector<8x32xf32>
    %230 = arith.negf %229 : vector<8x32xf32>
    %231 = math.exp %230 : vector<8x32xf32>
    %cst_56 = arith.constant 1.000000e+00 : f32
    %232 = vector.broadcast %cst_56 : f32 to vector<8x32xf32>
    %233 = arith.addf %232, %231 : vector<8x32xf32>
    %234 = arith.divf %232, %233 : vector<8x32xf32>
    %235 = vector.extract_strided_slice %228 {offsets = [0, 32], sizes = [8, 32], strides = [1, 1]} : vector<8x128xf32> to vector<8x32xf32>
    %236 = arith.negf %235 : vector<8x32xf32>
    %237 = math.exp %236 : vector<8x32xf32>
    %cst_57 = arith.constant 1.000000e+00 : f32
    %238 = vector.broadcast %cst_57 : f32 to vector<8x32xf32>
    %239 = arith.addf %238, %237 : vector<8x32xf32>
    %240 = arith.divf %238, %239 : vector<8x32xf32>
    %241 = vector.extract_strided_slice %228 {offsets = [0, 64], sizes = [8, 32], strides = [1, 1]} : vector<8x128xf32> to vector<8x32xf32>
    %242 = math.tanh %241 : vector<8x32xf32>
    %243 = vector.extract_strided_slice %228 {offsets = [0, 96], sizes = [8, 32], strides = [1, 1]} : vector<8x128xf32> to vector<8x32xf32>
    %244 = arith.negf %243 : vector<8x32xf32>
    %245 = math.exp %244 : vector<8x32xf32>
    %cst_58 = arith.constant 1.000000e+00 : f32
    %246 = vector.broadcast %cst_58 : f32 to vector<8x32xf32>
    %247 = arith.addf %246, %245 : vector<8x32xf32>
    %248 = arith.divf %246, %247 : vector<8x32xf32>
    %249 = arith.mulf %240, %222 : vector<8x32xf32>
    %250 = arith.mulf %234, %242 : vector<8x32xf32>
    %251 = arith.addf %249, %250 : vector<8x32xf32>
    %252 = math.tanh %251 : vector<8x32xf32>
    %253 = arith.mulf %248, %252 : vector<8x32xf32>
    %254 = tpu.concatenate %164, %253 in 1 : vector<8x32xf32>, vector<8x32xf32> -> vector<8x64xf32>
    %255 = tpu.concatenate %193, %224 in 1 : vector<8x32xf32>, vector<8x32xf32> -> vector<8x64xf32>
    %c0_59 = arith.constant 0 : index
    %c0_60 = arith.constant 0 : index
    %256 = vector.load %arg10[%c0_59, %c0_60] : memref<1x32xf32, #tpu.memory_space<vmem>>, vector<1x32xf32>
    %c0_61 = arith.constant 0 : index
    %c0_62 = arith.constant 0 : index
    %257 = vector.load %arg11[%c0_61, %c0_62] : memref<1x32xf32, #tpu.memory_space<vmem>>, vector<1x32xf32>
    %258 = vector.extract_strided_slice %254 {offsets = [0, 0], sizes = [8, 32], strides = [1, 1]} : vector<8x64xf32> to vector<8x32xf32>
    %259 = vector.extract_strided_slice %254 {offsets = [0, 32], sizes = [8, 32], strides = [1, 1]} : vector<8x64xf32> to vector<8x32xf32>
    %260 = arith.addf %258, %259 : vector<8x32xf32>
    %cst_63 = arith.constant dense<0.000000e+00> : vector<8xf32>
    %261 = vector.multi_reduction <add>, %260, %cst_63 [1] : vector<8x32xf32> to vector<8xf32>
    %262 = vector.shape_cast %261 : vector<8xf32> to vector<8x1xf32>
    %cst_64 = arith.constant 3.200000e+01 : f32
    %263 = vector.broadcast %cst_64 : f32 to vector<8x1xf32>
    %264 = arith.divf %262, %263 : vector<8x1xf32>
    %265 = vector.broadcast %264 : vector<8x1xf32> to vector<8x32xf32>
    %266 = arith.subf %260, %265 : vector<8x32xf32>
    %267 = arith.mulf %266, %266 : vector<8x32xf32>
    %cst_65 = arith.constant dense<0.000000e+00> : vector<8xf32>
    %268 = vector.multi_reduction <add>, %267, %cst_65 [1] : vector<8x32xf32> to vector<8xf32>
    %269 = vector.shape_cast %268 : vector<8xf32> to vector<8x1xf32>
    %cst_66 = arith.constant 3.200000e+01 : f32
    %270 = vector.broadcast %cst_66 : f32 to vector<8x1xf32>
    %271 = arith.divf %269, %270 : vector<8x1xf32>
    %272 = vector.broadcast %264 : vector<8x1xf32> to vector<8x32xf32>
    %273 = arith.subf %260, %272 : vector<8x32xf32>
    %cst_67 = arith.constant 9.99999974E-6 : f32
    %274 = vector.broadcast %cst_67 : f32 to vector<8x1xf32>
    %275 = arith.addf %271, %274 : vector<8x1xf32>
    %276 = math.rsqrt %275 : vector<8x1xf32>
    %277 = vector.broadcast %276 : vector<8x1xf32> to vector<8x32xf32>
    %278 = arith.mulf %273, %277 : vector<8x32xf32>
    %279 = vector.broadcast %256 : vector<1x32xf32> to vector<8x32xf32>
    %280 = arith.mulf %278, %279 : vector<8x32xf32>
    %281 = vector.broadcast %257 : vector<1x32xf32> to vector<8x32xf32>
    %282 = arith.addf %280, %281 : vector<8x32xf32>
    %283 = arith.addf %1, %282 : vector<8x32xf32>
    %c0_68 = arith.constant 0 : index
    %c0_69 = arith.constant 0 : index
    %c0_70 = arith.constant 0 : index
    %284 = vector.load %arg12[%c0_68, %c0_69, %c0_70] : memref<2x8x32xf32, #tpu.memory_space<vmem>>, vector<1x8x32xf32>
    %285 = vector.shape_cast %284 : vector<1x8x32xf32> to vector<8x32xf32>
    %286 = vector.shape_cast %283 : vector<8x32xf32> to vector<1x8x32xf32>
    tpu.vector_store %arg12[%c0_68, %c0_69, %c0_70], %286 {strides = array<i32>} : memref<2x8x32xf32, #tpu.memory_space<vmem>>, vector<1x8x32xf32>,
    %287 = vector.extract_strided_slice %255 {offsets = [0, 0], sizes = [8, 32], strides = [1, 1]} : vector<8x64xf32> to vector<8x32xf32>
    %288 = vector.extract_strided_slice %255 {offsets = [0, 32], sizes = [8, 32], strides = [1, 1]} : vector<8x64xf32> to vector<8x32xf32>
    %289 = arith.addf %287, %288 : vector<8x32xf32>
    %cst_71 = arith.constant dense<0.000000e+00> : vector<8xf32>
    %290 = vector.multi_reduction <add>, %289, %cst_71 [1] : vector<8x32xf32> to vector<8xf32>
    %291 = vector.shape_cast %290 : vector<8xf32> to vector<8x1xf32>
    %cst_72 = arith.constant 3.200000e+01 : f32
    %292 = vector.broadcast %cst_72 : f32 to vector<8x1xf32>
    %293 = arith.divf %291, %292 : vector<8x1xf32>
    %294 = vector.broadcast %293 : vector<8x1xf32> to vector<8x32xf32>
    %295 = arith.subf %289, %294 : vector<8x32xf32>
    %296 = arith.mulf %295, %295 : vector<8x32xf32>
    %cst_73 = arith.constant dense<0.000000e+00> : vector<8xf32>
    %297 = vector.multi_reduction <add>, %296, %cst_73 [1] : vector<8x32xf32> to vector<8xf32>
    %298 = vector.shape_cast %297 : vector<8xf32> to vector<8x1xf32>
    %cst_74 = arith.constant 3.200000e+01 : f32
    %299 = vector.broadcast %cst_74 : f32 to vector<8x1xf32>
    %300 = arith.divf %298, %299 : vector<8x1xf32>
    %301 = vector.broadcast %293 : vector<8x1xf32> to vector<8x32xf32>
    %302 = arith.subf %289, %301 : vector<8x32xf32>
    %cst_75 = arith.constant 9.99999974E-6 : f32
    %303 = vector.broadcast %cst_75 : f32 to vector<8x1xf32>
    %304 = arith.addf %300, %303 : vector<8x1xf32>
    %305 = math.rsqrt %304 : vector<8x1xf32>
    %306 = vector.broadcast %305 : vector<8x1xf32> to vector<8x32xf32>
    %307 = arith.mulf %302, %306 : vector<8x32xf32>
    %308 = vector.broadcast %256 : vector<1x32xf32> to vector<8x32xf32>
    %309 = arith.mulf %307, %308 : vector<8x32xf32>
    %310 = vector.broadcast %257 : vector<1x32xf32> to vector<8x32xf32>
    %311 = arith.addf %309, %310 : vector<8x32xf32>
    %312 = arith.addf %3, %311 : vector<8x32xf32>
    %c1_76 = arith.constant 1 : index
    %c0_77 = arith.constant 0 : index
    %c0_78 = arith.constant 0 : index
    %313 = vector.load %arg12[%c1_76, %c0_77, %c0_78] : memref<2x8x32xf32, #tpu.memory_space<vmem>>, vector<1x8x32xf32>
    %314 = vector.shape_cast %313 : vector<1x8x32xf32> to vector<8x32xf32>
    %315 = vector.shape_cast %312 : vector<8x32xf32> to vector<1x8x32xf32>
    tpu.vector_store %arg12[%c1_76, %c0_77, %c0_78], %315 {strides = array<i32>} : memref<2x8x32xf32, #tpu.memory_space<vmem>>, vector<1x8x32xf32>,
    return
  }
  func.func @transform_0(%arg0: i32) -> (i32, i32, i32) {
    %c0_i32 = arith.constant 0 : i32
    %c0_i32_0 = arith.constant 0 : i32
    %c0_i32_1 = arith.constant 0 : i32
    %c0_i32_2 = arith.constant 0 : i32
    return %c0_i32, %c0_i32_0, %c0_i32_1 : i32, i32, i32
  }
  func.func @transform_1(%arg0: i32) -> (i32, i32) {
    %c0_i32 = arith.constant 0 : i32
    %c0_i32_0 = arith.constant 0 : i32
    %c0_i32_1 = arith.constant 0 : i32
    return %c0_i32, %c0_i32_0 : i32, i32
  }
  func.func @transform_2(%arg0: i32) -> (i32, i32) {
    %c0_i32 = arith.constant 0 : i32
    %c0_i32_0 = arith.constant 0 : i32
    %c0_i32_1 = arith.constant 0 : i32
    return %c0_i32, %c0_i32_0 : i32, i32
  }
  func.func @transform_3(%arg0: i32) -> (i32, i32) {
    %c0_i32 = arith.constant 0 : i32
    %c0_i32_0 = arith.constant 0 : i32
    %c0_i32_1 = arith.constant 0 : i32
    return %c0_i32, %c0_i32_0 : i32, i32
  }
  func.func @transform_4(%arg0: i32) -> (i32, i32) {
    %c0_i32 = arith.constant 0 : i32
    %c0_i32_0 = arith.constant 0 : i32
    %c0_i32_1 = arith.constant 0 : i32
    return %c0_i32, %c0_i32_0 : i32, i32
  }
  func.func @transform_5(%arg0: i32) -> (i32, i32) {
    %c0_i32 = arith.constant 0 : i32
    %c0_i32_0 = arith.constant 0 : i32
    %c0_i32_1 = arith.constant 0 : i32
    return %c0_i32, %c0_i32_0 : i32, i32
  }
  func.func @transform_6(%arg0: i32) -> (i32, i32) {
    %c0_i32 = arith.constant 0 : i32
    %c0_i32_0 = arith.constant 0 : i32
    %c0_i32_1 = arith.constant 0 : i32
    return %c0_i32, %c0_i32_0 : i32, i32
  }
  func.func @transform_7(%arg0: i32) -> (i32, i32) {
    %c0_i32 = arith.constant 0 : i32
    %c0_i32_0 = arith.constant 0 : i32
    %c0_i32_1 = arith.constant 0 : i32
    return %c0_i32, %c0_i32_0 : i32, i32
  }
  func.func @transform_8(%arg0: i32) -> (i32, i32) {
    %c0_i32 = arith.constant 0 : i32
    %c0_i32_0 = arith.constant 0 : i32
    %c0_i32_1 = arith.constant 0 : i32
    return %c0_i32, %c0_i32_0 : i32, i32
  }
  func.func @transform_9(%arg0: i32) -> (i32, i32) {
    %c0_i32 = arith.constant 0 : i32
    %c0_i32_0 = arith.constant 0 : i32
    %c0_i32_1 = arith.constant 0 : i32
    return %c0_i32, %c0_i32_0 : i32, i32
  }
  func.func @transform_10(%arg0: i32) -> (i32, i32) {
    %c0_i32 = arith.constant 0 : i32
    %c0_i32_0 = arith.constant 0 : i32
    %c0_i32_1 = arith.constant 0 : i32
    return %c0_i32, %c0_i32_0 : i32, i32
  }
  func.func @transform_11(%arg0: i32) -> (i32, i32, i32) {
    %c0_i32 = arith.constant 0 : i32
    %c0_i32_0 = arith.constant 0 : i32
    %c0_i32_1 = arith.constant 0 : i32
    %c0_i32_2 = arith.constant 0 : i32
    return %c0_i32, %c0_i32_0, %c0_i32_1 : i32, i32, i32
  }
}

module attributes {stable_mosaic.version = 11 : i64} {
  func.func @_xlstm_block_kernel(%arg0: i32, %arg1: memref<2x8x32xf32, #tpu.memory_space<vmem>>, %arg2: memref<64x128xf32, #tpu.memory_space<vmem>>, %arg3: memref<1x128xf32, #tpu.memory_space<vmem>>, %arg4: memref<64x128xf32, #tpu.memory_space<vmem>>, %arg5: memref<1x128xf32, #tpu.memory_space<vmem>>, %arg6: memref<96x128xf32, #tpu.memory_space<vmem>>, %arg7: memref<1x128xf32, #tpu.memory_space<vmem>>, %arg8: memref<96x128xf32, #tpu.memory_space<vmem>>, %arg9: memref<1x128xf32, #tpu.memory_space<vmem>>, %arg10: memref<1x32xf32, #tpu.memory_space<vmem>>, %arg11: memref<1x32xf32, #tpu.memory_space<vmem>>, %arg12: memref<2x8x32xf32, #tpu.memory_space<vmem>>) attributes {dimension_semantics = [#tpu.dimension_semantics<arbitrary>], iteration_bounds = array<i64: 1>, scalar_prefetch = 0 : i64, scratch_operands = 0 : i64, tpu.core_type = #tpu.core_type<tc>, window_params = [{pipeline_mode = #tpu.pipeline_mode<synchronous>, transform_indices = @transform_0, window_bounds = array<i64: 2, 8, 32>}, {pipeline_mode = #tpu.pipeline_mode<synchronous>, transform_indices = @transform_1, window_bounds = array<i64: 64, 128>}, {pipeline_mode = #tpu.pipeline_mode<synchronous>, transform_indices = @transform_2, window_bounds = array<i64: 1, 128>}, {pipeline_mode = #tpu.pipeline_mode<synchronous>, transform_indices = @transform_3, window_bounds = array<i64: 64, 128>}, {pipeline_mode = #tpu.pipeline_mode<synchronous>, transform_indices = @transform_4, window_bounds = array<i64: 1, 128>}, {pipeline_mode = #tpu.pipeline_mode<synchronous>, transform_indices = @transform_5, window_bounds = array<i64: 96, 128>}, {pipeline_mode = #tpu.pipeline_mode<synchronous>, transform_indices = @transform_6, window_bounds = array<i64: 1, 128>}, {pipeline_mode = #tpu.pipeline_mode<synchronous>, transform_indices = @transform_7, window_bounds = array<i64: 96, 128>}, {pipeline_mode = #tpu.pipeline_mode<synchronous>, transform_indices = @transform_8, window_bounds = array<i64: 1, 128>}, {pipeline_mode = #tpu.pipeline_mode<synchronous>, transform_indices = @transform_9, window_bounds = array<i64: 1, 32>}, {pipeline_mode = #tpu.pipeline_mode<synchronous>, transform_indices = @transform_10, window_bounds = array<i64: 1, 32>}, {pipeline_mode = #tpu.pipeline_mode<synchronous>, transform_indices = @transform_11, window_bounds = array<i64: 2, 8, 32>}]} {
    %c0 = arith.constant 0 : index
    %c0_0 = arith.constant 0 : index
    %c0_1 = arith.constant 0 : index
    %0 = vector.load %arg1[%c0, %c0_0, %c0_1] : memref<2x8x32xf32, #tpu.memory_space<vmem>>, vector<1x8x32xf32>
    %1 = vector.shape_cast %0 : vector<1x8x32xf32> to vector<8x32xf32>
    %c1 = arith.constant 1 : index
    %c0_2 = arith.constant 0 : index
    %c0_3 = arith.constant 0 : index
    %2 = vector.load %arg1[%c1, %c0_2, %c0_3] : memref<2x8x32xf32, #tpu.memory_space<vmem>>, vector<1x8x32xf32>
    %3 = vector.shape_cast %2 : vector<1x8x32xf32> to vector<8x32xf32>
    %c0_4 = arith.constant 0 : index
    %c0_5 = arith.constant 0 : index
    %4 = vector.load %arg2[%c0_4, %c0_5] : memref<64x128xf32, #tpu.memory_space<vmem>>, vector<64x128xf32>
    %c0_6 = arith.constant 0 : index
    %c0_7 = arith.constant 0 : index
    %5 = vector.load %arg3[%c0_6, %c0_7] : memref<1x128xf32, #tpu.memory_space<vmem>>, vector<1x128xf32>
    %c0_8 = arith.constant 0 : index
    %c0_9 = arith.constant 0 : index
    %6 = vector.load %arg4[%c0_8, %c0_9] : memref<64x128xf32, #tpu.memory_space<vmem>>, vector<64x128xf32>
    %c0_10 = arith.constant 0 : index
    %c0_11 = arith.constant 0 : index
    %7 = vector.load %arg5[%c0_10, %c0_11] : memref<1x128xf32, #tpu.memory_space<vmem>>, vector<1x128xf32>
    %cst = arith.constant 0.000000e+00 : f32
    %8 = vector.broadcast %cst : f32 to vector<8x32xf32>
    %cst_12 = arith.constant 0.000000e+00 : f32
    %9 = vector.broadcast %cst_12 : f32 to vector<8x32xf32>
    %10 = tpu.concatenate %1, %8 in 1 : vector<8x32xf32>, vector<8x32xf32> -> vector<8x64xf32>
    %cst_13 = arith.constant dense<0.000000e+00> : vector<8x128xf32>
    %11 = tpu.matmul %10, %4, %cst_13 {dimension_numbers = #tpu.dot_dimension_numbers<[1], [0], [0], [1], [0, 0, 1, 1], [], []>} : vector<8x64xf32>, vector<64x128xf32>, vector<8x128xf32> -> vector<8x128xf32>
    %12 = vector.broadcast %5 : vector<1x128xf32> to vector<8x128xf32>
    %13 = arith.addf %11, %12 : vector<8x128xf32>
    %14 = vector.extract_strided_slice %13 {offsets = [0, 0], sizes = [8, 32], strides = [1, 1]} : vector<8x128xf32> to vector<8x32xf32>
    %15 = arith.negf %14 : vector<8x32xf32>
    %16 = math.exp %15 : vector<8x32xf32>
    %cst_14 = arith.constant 1.000000e+00 : f32
    %17 = vector.broadcast %cst_14 : f32 to vector<8x32xf32>
    %18 = arith.addf %17, %16 : vector<8x32xf32>
    %19 = arith.divf %17, %18 : vector<8x32xf32>
    %20 = vector.extract_strided_slice %13 {offsets = [0, 32], sizes = [8, 32], strides = [1, 1]} : vector<8x128xf32> to vector<8x32xf32>
    %21 = arith.negf %20 : vector<8x32xf32>
    %22 = math.exp %21 : vector<8x32xf32>
    %cst_15 = arith.constant 1.000000e+00 : f32
    %23 = vector.broadcast %cst_15 : f32 to vector<8x32xf32>
    %24 = arith.addf %23, %22 : vector<8x32xf32>
    %25 = arith.divf %23, %24 : vector<8x32xf32>
    %26 = vector.extract_strided_slice %13 {offsets = [0, 64], sizes = [8, 32], strides = [1, 1]} : vector<8x128xf32> to vector<8x32xf32>
    %27 = math.tanh %26 : vector<8x32xf32>
    %28 = vector.extract_strided_slice %13 {offsets = [0, 96], sizes = [8, 32], strides = [1, 1]} : vector<8x128xf32> to vector<8x32xf32>
    %29 = arith.negf %28 : vector<8x32xf32>
    %30 = math.exp %29 : vector<8x32xf32>
    %cst_16 = arith.constant 1.000000e+00 : f32
    %31 = vector.broadcast %cst_16 : f32 to vector<8x32xf32>
    %32 = arith.addf %31, %30 : vector<8x32xf32>
    %33 = arith.divf %31, %32 : vector<8x32xf32>
    %34 = arith.mulf %25, %9 : vector<8x32xf32>
    %35 = arith.mulf %19, %27 : vector<8x32xf32>
    %36 = arith.addf %34, %35 : vector<8x32xf32>
    %37 = math.tanh %36 : vector<8x32xf32>
    %38 = arith.mulf %33, %37 : vector<8x32xf32>
    %39 = tpu.concatenate %3, %38 in 1 : vector<8x32xf32>, vector<8x32xf32> -> vector<8x64xf32>
    %cst_17 = arith.constant dense<0.000000e+00> : vector<8x128xf32>
    %40 = tpu.matmul %39, %4, %cst_17 {dimension_numbers = #tpu.dot_dimension_numbers<[1], [0], [0], [1], [0, 0, 1, 1], [], []>} : vector<8x64xf32>, vector<64x128xf32>, vector<8x128xf32> -> vector<8x128xf32>
    %41 = vector.broadcast %5 : vector<1x128xf32> to vector<8x128xf32>
    %42 = arith.addf %40, %41 : vector<8x128xf32>
    %43 = vector.extract_strided_slice %42 {offsets = [0, 0], sizes = [8, 32], strides = [1, 1]} : vector<8x128xf32> to vector<8x32xf32>
    %44 = arith.negf %43 : vector<8x32xf32>
    %45 = math.exp %44 : vector<8x32xf32>
    %cst_18 = arith.constant 1.000000e+00 : f32
    %46 = vector.broadcast %cst_18 : f32 to vector<8x32xf32>
    %47 = arith.addf %46, %45 : vector<8x32xf32>
    %48 = arith.divf %46, %47 : vector<8x32xf32>
    %49 = vector.extract_strided_slice %42 {offsets = [0, 32], sizes = [8, 32], strides = [1, 1]} : vector<8x128xf32> to vector<8x32xf32>
    %50 = arith.negf %49 : vector<8x32xf32>
    %51 = math.exp %50 : vector<8x32xf32>
    %cst_19 = arith.constant 1.000000e+00 : f32
    %52 = vector.broadcast %cst_19 : f32 to vector<8x32xf32>
    %53 = arith.addf %52, %51 : vector<8x32xf32>
    %54 = arith.divf %52, %53 : vector<8x32xf32>
    %55 = vector.extract_strided_slice %42 {offsets = [0, 64], sizes = [8, 32], strides = [1, 1]} : vector<8x128xf32> to vector<8x32xf32>
    %56 = math.tanh %55 : vector<8x32xf32>
    %57 = vector.extract_strided_slice %42 {offsets = [0, 96], sizes = [8, 32], strides = [1, 1]} : vector<8x128xf32> to vector<8x32xf32>
    %58 = arith.negf %57 : vector<8x32xf32>
    %59 = math.exp %58 : vector<8x32xf32>
    %cst_20 = arith.constant 1.000000e+00 : f32
    %60 = vector.broadcast %cst_20 : f32 to vector<8x32xf32>
    %61 = arith.addf %60, %59 : vector<8x32xf32>
    %62 = arith.divf %60, %61 : vector<8x32xf32>
    %63 = arith.mulf %54, %36 : vector<8x32xf32>
    %64 = arith.mulf %48, %56 : vector<8x32xf32>
    %65 = arith.addf %63, %64 : vector<8x32xf32>
    %66 = math.tanh %65 : vector<8x32xf32>
    %67 = arith.mulf %62, %66 : vector<8x32xf32>
    %cst_21 = arith.constant 0.000000e+00 : f32
    %68 = vector.broadcast %cst_21 : f32 to vector<8x32xf32>
    %cst_22 = arith.constant 0.000000e+00 : f32
    %69 = vector.broadcast %cst_22 : f32 to vector<8x32xf32>
    %70 = tpu.concatenate %3, %68 in 1 : vector<8x32xf32>, vector<8x32xf32> -> vector<8x64xf32>
    %cst_23 = arith.constant dense<0.000000e+00> : vector<8x128xf32>
    %71 = tpu.matmul %70, %6, %cst_23 {dimension_numbers = #tpu.dot_dimension_numbers<[1], [0], [0], [1], [0, 0, 1, 1], [], []>} : vector<8x64xf32>, vector<64x128xf32>, vector<8x128xf32> -> vector<8x128xf32>
    %72 = vector.broadcast %7 : vector<1x128xf32> to vector<8x128xf32>
    %73 = arith.addf %71, %72 : vector<8x128xf32>
    %74 = vector.extract_strided_slice %73 {offsets = [0, 0], sizes = [8, 32], strides = [1, 1]} : vector<8x128xf32> to vector<8x32xf32>
    %75 = arith.negf %74 : vector<8x32xf32>
    %76 = math.exp %75 : vector<8x32xf32>
    %cst_24 = arith.constant 1.000000e+00 : f32
    %77 = vector.broadcast %cst_24 : f32 to vector<8x32xf32>
    %78 = arith.addf %77, %76 : vector<8x32xf32>
    %79 = arith.divf %77, %78 : vector<8x32xf32>
    %80 = vector.extract_strided_slice %73 {offsets = [0, 32], sizes = [8, 32], strides = [1, 1]} : vector<8x128xf32> to vector<8x32xf32>
    %81 = arith.negf %80 : vector<8x32xf32>
    %82 = math.exp %81 : vector<8x32xf32>
    %cst_25 = arith.constant 1.000000e+00 : f32
    %83 = vector.broadcast %cst_25 : f32 to vector<8x32xf32>
    %84 = arith.addf %83, %82 : vector<8x32xf32>
    %85 = arith.divf %83, %84 : vector<8x32xf32>
    %86 = vector.extract_strided_slice %73 {offsets = [0, 64], sizes = [8, 32], strides = [1, 1]} : vector<8x128xf32> to vector<8x32xf32>
    %87 = math.tanh %86 : vector<8x32xf32>
    %88 = vector.extract_strided_slice %73 {offsets = [0, 96], sizes = [8, 32], strides = [1, 1]} : vector<8x128xf32> to vector<8x32xf32>
    %89 = arith.negf %88 : vector<8x32xf32>
    %90 = math.exp %89 : vector<8x32xf32>
    %cst_26 = arith.constant 1.000000e+00 : f32
    %91 = vector.broadcast %cst_26 : f32 to vector<8x32xf32>
    %92 = arith.addf %91, %90 : vector<8x32xf32>
    %93 = arith.divf %91, %92 : vector<8x32xf32>
    %94 = arith.mulf %85, %69 : vector<8x32xf32>
    %95 = arith.mulf %79, %87 : vector<8x32xf32>
    %96 = arith.addf %94, %95 : vector<8x32xf32>
    %97 = math.tanh %96 : vector<8x32xf32>
    %98 = arith.mulf %93, %97 : vector<8x32xf32>
    %99 = tpu.concatenate %1, %98 in 1 : vector<8x32xf32>, vector<8x32xf32> -> vector<8x64xf32>
    %cst_27 = arith.constant dense<0.000000e+00> : vector<8x128xf32>
    %100 = tpu.matmul %99, %6, %cst_27 {dimension_numbers = #tpu.dot_dimension_numbers<[1], [0], [0], [1], [0, 0, 1, 1], [], []>} : vector<8x64xf32>, vector<64x128xf32>, vector<8x128xf32> -> vector<8x128xf32>
    %101 = vector.broadcast %7 : vector<1x128xf32> to vector<8x128xf32>
    %102 = arith.addf %100, %101 : vector<8x128xf32>
    %103 = vector.extract_strided_slice %102 {offsets = [0, 0], sizes = [8, 32], strides = [1, 1]} : vector<8x128xf32> to vector<8x32xf32>
    %104 = arith.negf %103 : vector<8x32xf32>
    %105 = math.exp %104 : vector<8x32xf32>
    %cst_28 = arith.constant 1.000000e+00 : f32
    %106 = vector.broadcast %cst_28 : f32 to vector<8x32xf32>
    %107 = arith.addf %106, %105 : vector<8x32xf32>
    %108 = arith.divf %106, %107 : vector<8x32xf32>
    %109 = vector.extract_strided_slice %102 {offsets = [0, 32], sizes = [8, 32], strides = [1, 1]} : vector<8x128xf32> to vector<8x32xf32>
    %110 = arith.negf %109 : vector<8x32xf32>
    %111 = math.exp %110 : vector<8x32xf32>
    %cst_29 = arith.constant 1.000000e+00 : f32
    %112 = vector.broadcast %cst_29 : f32 to vector<8x32xf32>
    %113 = arith.addf %112, %111 : vector<8x32xf32>
    %114 = arith.divf %112, %113 : vector<8x32xf32>
    %115 = vector.extract_strided_slice %102 {offsets = [0, 64], sizes = [8, 32], strides = [1, 1]} : vector<8x128xf32> to vector<8x32xf32>
    %116 = math.tanh %115 : vector<8x32xf32>
    %117 = vector.extract_strided_slice %102 {offsets = [0, 96], sizes = [8, 32], strides = [1, 1]} : vector<8x128xf32> to vector<8x32xf32>
    %118 = arith.negf %117 : vector<8x32xf32>
    %119 = math.exp %118 : vector<8x32xf32>
    %cst_30 = arith.constant 1.000000e+00 : f32
    %120 = vector.broadcast %cst_30 : f32 to vector<8x32xf32>
    %121 = arith.addf %120, %119 : vector<8x32xf32>
    %122 = arith.divf %120, %121 : vector<8x32xf32>
    %123 = arith.mulf %114, %96 : vector<8x32xf32>
    %124 = arith.mulf %108, %116 : vector<8x32xf32>
    %125 = arith.addf %123, %124 : vector<8x32xf32>
    %126 = math.tanh %125 : vector<8x32xf32>
    %127 = arith.mulf %122, %126 : vector<8x32xf32>
    %128 = tpu.concatenate %38, %127 in 1 : vector<8x32xf32>, vector<8x32xf32> -> vector<8x64xf32>
    %129 = tpu.concatenate %67, %98 in 1 : vector<8x32xf32>, vector<8x32xf32> -> vector<8x64xf32>
    %c0_31 = arith.constant 0 : index
    %c0_32 = arith.constant 0 : index
    %130 = vector.load %arg6[%c0_31, %c0_32] : memref<96x128xf32, #tpu.memory_space<vmem>>, vector<96x128xf32>
    %c0_33 = arith.constant 0 : index
    %c0_34 = arith.constant 0 : index
    %131 = vector.load %arg7[%c0_33, %c0_34] : memref<1x128xf32, #tpu.memory_space<vmem>>, vector<1x128xf32>
    %c0_35 = arith.constant 0 : index
    %c0_36 = arith.constant 0 : index
    %132 = vector.load %arg8[%c0_35, %c0_36] : memref<96x128xf32, #tpu.memory_space<vmem>>, vector<96x128xf32>
    %c0_37 = arith.constant 0 : index
    %c0_38 = arith.constant 0 : index
    %133 = vector.load %arg9[%c0_37, %c0_38] : memref<1x128xf32, #tpu.memory_space<vmem>>, vector<1x128xf32>
    %cst_39 = arith.constant 0.000000e+00 : f32
    %134 = vector.broadcast %cst_39 : f32 to vector<8x32xf32>
    %cst_40 = arith.constant 0.000000e+00 : f32
    %135 = vector.broadcast %cst_40 : f32 to vector<8x32xf32>
    %136 = tpu.concatenate %128, %134 in 1 : vector<8x64xf32>, vector<8x32xf32> -> vector<8x96xf32>
    %cst_41 = arith.constant dense<0.000000e+00> : vector<8x128xf32>
    %137 = tpu.matmul %136, %130, %cst_41 {dimension_numbers = #tpu.dot_dimension_numbers<[1], [0], [0], [1], [0, 0, 1, 1], [], []>} : vector<8x96xf32>, vector<96x128xf32>, vector<8x128xf32> -> vector<8x128xf32>
    %138 = vector.broadcast %131 : vector<1x128xf32> to vector<8x128xf32>
    %139 = arith.addf %137, %138 : vector<8x128xf32>
    %140 = vector.extract_strided_slice %139 {offsets = [0, 0], sizes = [8, 32], strides = [1, 1]} : vector<8x128xf32> to vector<8x32xf32>
    %141 = arith.negf %140 : vector<8x32xf32>
    %142 = math.exp %141 : vector<8x32xf32>
    %cst_42 = arith.constant 1.000000e+00 : f32
    %143 = vector.broadcast %cst_42 : f32 to vector<8x32xf32>
    %144 = arith.addf %143, %142 : vector<8x32xf32>
    %145 = arith.divf %143, %144 : vector<8x32xf32>
    %146 = vector.extract_strided_slice %139 {offsets = [0, 32], sizes = [8, 32], strides = [1, 1]} : vector<8x128xf32> to vector<8x32xf32>
    %147 = arith.negf %146 : vector<8x32xf32>
    %148 = math.exp %147 : vector<8x32xf32>
    %cst_43 = arith.constant 1.000000e+00 : f32
    %149 = vector.broadcast %cst_43 : f32 to vector<8x32xf32>
    %150 = arith.addf %149, %148 : vector<8x32xf32>
    %151 = arith.divf %149, %150 : vector<8x32xf32>
    %152 = vector.extract_strided_slice %139 {offsets = [0, 64], sizes = [8, 32], strides = [1, 1]} : vector<8x128xf32> to vector<8x32xf32>
    %153 = math.tanh %152 : vector<8x32xf32>
    %154 = vector.extract_strided_slice %139 {offsets = [0, 96], sizes = [8, 32], strides = [1, 1]} : vector<8x128xf32> to vector<8x32xf32>
    %155 = arith.negf %154 : vector<8x32xf32>
    %156 = math.exp %155 : vector<8x32xf32>
    %cst_44 = arith.constant 1.000000e+00 : f32
    %157 = vector.broadcast %cst_44 : f32 to vector<8x32xf32>
    %158 = arith.addf %157, %156 : vector<8x32xf32>
    %159 = arith.divf %157, %158 : vector<8x32xf32>
    %160 = arith.mulf %151, %135 : vector<8x32xf32>
    %161 = arith.mulf %145, %153 : vector<8x32xf32>
    %162 = arith.addf %160, %161 : vector<8x32xf32>
    %163 = math.tanh %162 : vector<8x32xf32>
    %164 = arith.mulf %159, %163 : vector<8x32xf32>
    %165 = tpu.concatenate %129, %164 in 1 : vector<8x64xf32>, vector<8x32xf32> -> vector<8x96xf32>
    %cst_45 = arith.constant dense<0.000000e+00> : vector<8x128xf32>
    %166 = tpu.matmul %165, %130, %cst_45 {dimension_numbers = #tpu.dot_dimension_numbers<[1], [0], [0], [1], [0, 0, 1, 1], [], []>} : vector<8x96xf32>, vector<96x128xf32>, vector<8x128xf32> -> vector<8x128xf32>
    %167 = vector.broadcast %131 : vector<1x128xf32> to vector<8x128xf32>
    %168 = arith.addf %166, %167 : vector<8x128xf32>
    %169 = vector.extract_strided_slice %168 {offsets = [0, 0], sizes = [8, 32], strides = [1, 1]} : vector<8x128xf32> to vector<8x32xf32>
    %170 = arith.negf %169 : vector<8x32xf32>
    %171 = math.exp %170 : vector<8x32xf32>
    %cst_46 = arith.constant 1.000000e+00 : f32
    %172 = vector.broadcast %cst_46 : f32 to vector<8x32xf32>
    %173 = arith.addf %172, %171 : vector<8x32xf32>
    %174 = arith.divf %172, %173 : vector<8x32xf32>
    %175 = vector.extract_strided_slice %168 {offsets = [0, 32], sizes = [8, 32], strides = [1, 1]} : vector<8x128xf32> to vector<8x32xf32>
    %176 = arith.negf %175 : vector<8x32xf32>
    %177 = math.exp %176 : vector<8x32xf32>
    %cst_47 = arith.constant 1.000000e+00 : f32
    %178 = vector.broadcast %cst_47 : f32 to vector<8x32xf32>
    %179 = arith.addf %178, %177 : vector<8x32xf32>
    %180 = arith.divf %178, %179 : vector<8x32xf32>
    %181 = vector.extract_strided_slice %168 {offsets = [0, 64], sizes = [8, 32], strides = [1, 1]} : vector<8x128xf32> to vector<8x32xf32>
    %182 = math.tanh %181 : vector<8x32xf32>
    %183 = vector.extract_strided_slice %168 {offsets = [0, 96], sizes = [8, 32], strides = [1, 1]} : vector<8x128xf32> to vector<8x32xf32>
    %184 = arith.negf %183 : vector<8x32xf32>
    %185 = math.exp %184 : vector<8x32xf32>
    %cst_48 = arith.constant 1.000000e+00 : f32
    %186 = vector.broadcast %cst_48 : f32 to vector<8x32xf32>
    %187 = arith.addf %186, %185 : vector<8x32xf32>
    %188 = arith.divf %186, %187 : vector<8x32xf32>
    %189 = arith.mulf %180, %162 : vector<8x32xf32>
    %190 = arith.mulf %174, %182 : vector<8x32xf32>
    %191 = arith.addf %189, %190 : vector<8x32xf32>
    %192 = math.tanh %191 : vector<8x32xf32>
    %193 = arith.mulf %188, %192 : vector<8x32xf32>
    %cst_49 = arith.constant 0.000000e+00 : f32
    %194 = vector.broadcast %cst_49 : f32 to vector<8x32xf32>
    %cst_50 = arith.constant 0.000000e+00 : f32
    %195 = vector.broadcast %cst_50 : f32 to vector<8x32xf32>
    %196 = tpu.concatenate %129, %194 in 1 : vector<8x64xf32>, vector<8x32xf32> -> vector<8x96xf32>
    %cst_51 = arith.constant dense<0.000000e+00> : vector<8x128xf32>
    %197 = tpu.matmul %196, %132, %cst_51 {dimension_numbers = #tpu.dot_dimension_numbers<[1], [0], [0], [1], [0, 0, 1, 1], [], []>} : vector<8x96xf32>, vector<96x128xf32>, vector<8x128xf32> -> vector<8x128xf32>
    %198 = vector.broadcast %133 : vector<1x128xf32> to vector<8x128xf32>
    %199 = arith.addf %197, %198 : vector<8x128xf32>
    %200 = vector.extract_strided_slice %199 {offsets = [0, 0], sizes = [8, 32], strides = [1, 1]} : vector<8x128xf32> to vector<8x32xf32>
    %201 = arith.negf %200 : vector<8x32xf32>
    %202 = math.exp %201 : vector<8x32xf32>
    %cst_52 = arith.constant 1.000000e+00 : f32
    %203 = vector.broadcast %cst_52 : f32 to vector<8x32xf32>
    %204 = arith.addf %203, %202 : vector<8x32xf32>
    %205 = arith.divf %203, %204 : vector<8x32xf32>
    %206 = vector.extract_strided_slice %199 {offsets = [0, 32], sizes = [8, 32], strides = [1, 1]} : vector<8x128xf32> to vector<8x32xf32>
    %207 = arith.negf %206 : vector<8x32xf32>
    %208 = math.exp %207 : vector<8x32xf32>
    %cst_53 = arith.constant 1.000000e+00 : f32
    %209 = vector.broadcast %cst_53 : f32 to vector<8x32xf32>
    %210 = arith.addf %209, %208 : vector<8x32xf32>
    %211 = arith.divf %209, %210 : vector<8x32xf32>
    %212 = vector.extract_strided_slice %199 {offsets = [0, 64], sizes = [8, 32], strides = [1, 1]} : vector<8x128xf32> to vector<8x32xf32>
    %213 = math.tanh %212 : vector<8x32xf32>
    %214 = vector.extract_strided_slice %199 {offsets = [0, 96], sizes = [8, 32], strides = [1, 1]} : vector<8x128xf32> to vector<8x32xf32>
    %215 = arith.negf %214 : vector<8x32xf32>
    %216 = math.exp %215 : vector<8x32xf32>
    %cst_54 = arith.constant 1.000000e+00 : f32
    %217 = vector.broadcast %cst_54 : f32 to vector<8x32xf32>
    %218 = arith.addf %217, %216 : vector<8x32xf32>
    %219 = arith.divf %217, %218 : vector<8x32xf32>
    %220 = arith.mulf %211, %195 : vector<8x32xf32>
    %221 = arith.mulf %205, %213 : vector<8x32xf32>
    %222 = arith.addf %220, %221 : vector<8x32xf32>
    %223 = math.tanh %222 : vector<8x32xf32>
    %224 = arith.mulf %219, %223 : vector<8x32xf32>
    %225 = tpu.concatenate %128, %224 in 1 : vector<8x64xf32>, vector<8x32xf32> -> vector<8x96xf32>
    %cst_55 = arith.constant dense<0.000000e+00> : vector<8x128xf32>
    %226 = tpu.matmul %225, %132, %cst_55 {dimension_numbers = #tpu.dot_dimension_numbers<[1], [0], [0], [1], [0, 0, 1, 1], [], []>} : vector<8x96xf32>, vector<96x128xf32>, vector<8x128xf32> -> vector<8x128xf32>
    %227 = vector.broadcast %133 : vector<1x128xf32> to vector<8x128xf32>
    %228 = arith.addf %226, %227 : vector<8x128xf32>
    %229 = vector.extract_strided_slice %228 {offsets = [0, 0], sizes = [8, 32], strides = [1, 1]} : vector<8x128xf32> to vector<8x32xf32>
    %230 = arith.negf %229 : vector<8x32xf32>
    %231 = math.exp %230 : vector<8x32xf32>
    %cst_56 = arith.constant 1.000000e+00 : f32
    %232 = vector.broadcast %cst_56 : f32 to vector<8x32xf32>
    %233 = arith.addf %232, %231 : vector<8x32xf32>
    %234 = arith.divf %232, %233 : vector<8x32xf32>
    %235 = vector.extract_strided_slice %228 {offsets = [0, 32], sizes = [8, 32], strides = [1, 1]} : vector<8x128xf32> to vector<8x32xf32>
    %236 = arith.negf %235 : vector<8x32xf32>
    %237 = math.exp %236 : vector<8x32xf32>
    %cst_57 = arith.constant 1.000000e+00 : f32
    %238 = vector.broadcast %cst_57 : f32 to vector<8x32xf32>
    %239 = arith.addf %238, %237 : vector<8x32xf32>
    %240 = arith.divf %238, %239 : vector<8x32xf32>
    %241 = vector.extract_strided_slice %228 {offsets = [0, 64], sizes = [8, 32], strides = [1, 1]} : vector<8x128xf32> to vector<8x32xf32>
    %242 = math.tanh %241 : vector<8x32xf32>
    %243 = vector.extract_strided_slice %228 {offsets = [0, 96], sizes = [8, 32], strides = [1, 1]} : vector<8x128xf32> to vector<8x32xf32>
    %244 = arith.negf %243 : vector<8x32xf32>
    %245 = math.exp %244 : vector<8x32xf32>
    %cst_58 = arith.constant 1.000000e+00 : f32
    %246 = vector.broadcast %cst_58 : f32 to vector<8x32xf32>
    %247 = arith.addf %246, %245 : vector<8x32xf32>
    %248 = arith.divf %246, %247 : vector<8x32xf32>
    %249 = arith.mulf %240, %222 : vector<8x32xf32>
    %250 = arith.mulf %234, %242 : vector<8x32xf32>
    %251 = arith.addf %249, %250 : vector<8x32xf32>
    %252 = math.tanh %251 : vector<8x32xf32>
    %253 = arith.mulf %248, %252 : vector<8x32xf32>
    %254 = tpu.concatenate %164, %253 in 1 : vector<8x32xf32>, vector<8x32xf32> -> vector<8x64xf32>
    %255 = tpu.concatenate %193, %224 in 1 : vector<8x32xf32>, vector<8x32xf32> -> vector<8x64xf32>
    %c0_59 = arith.constant 0 : index
    %c0_60 = arith.constant 0 : index
    %256 = vector.load %arg10[%c0_59, %c0_60] : memref<1x32xf32, #tpu.memory_space<vmem>>, vector<1x32xf32>
    %c0_61 = arith.constant 0 : index
    %c0_62 = arith.constant 0 : index
    %257 = vector.load %arg11[%c0_61, %c0_62] : memref<1x32xf32, #tpu.memory_space<vmem>>, vector<1x32xf32>
    %258 = vector.extract_strided_slice %254 {offsets = [0, 0], sizes = [8, 32], strides = [1, 1]} : vector<8x64xf32> to vector<8x32xf32>
    %259 = vector.extract_strided_slice %254 {offsets = [0, 32], sizes = [8, 32], strides = [1, 1]} : vector<8x64xf32> to vector<8x32xf32>
    %260 = arith.addf %258, %259 : vector<8x32xf32>
    %cst_63 = arith.constant dense<0.000000e+00> : vector<8xf32>
    %261 = vector.multi_reduction <add>, %260, %cst_63 [1] : vector<8x32xf32> to vector<8xf32>
    %262 = vector.shape_cast %261 : vector<8xf32> to vector<8x1xf32>
    %cst_64 = arith.constant 3.200000e+01 : f32
    %263 = vector.broadcast %cst_64 : f32 to vector<8x1xf32>
    %264 = arith.divf %262, %263 : vector<8x1xf32>
    %265 = vector.broadcast %264 : vector<8x1xf32> to vector<8x32xf32>
    %266 = arith.subf %260, %265 : vector<8x32xf32>
    %267 = arith.mulf %266, %266 : vector<8x32xf32>
    %cst_65 = arith.constant dense<0.000000e+00> : vector<8xf32>
    %268 = vector.multi_reduction <add>, %267, %cst_65 [1] : vector<8x32xf32> to vector<8xf32>
    %269 = vector.shape_cast %268 : vector<8xf32> to vector<8x1xf32>
    %cst_66 = arith.constant 3.200000e+01 : f32
    %270 = vector.broadcast %cst_66 : f32 to vector<8x1xf32>
    %271 = arith.divf %269, %270 : vector<8x1xf32>
    %272 = vector.broadcast %264 : vector<8x1xf32> to vector<8x32xf32>
    %273 = arith.subf %260, %272 : vector<8x32xf32>
    %cst_67 = arith.constant 9.99999974E-6 : f32
    %274 = vector.broadcast %cst_67 : f32 to vector<8x1xf32>
    %275 = arith.addf %271, %274 : vector<8x1xf32>
    %276 = math.rsqrt %275 : vector<8x1xf32>
    %277 = vector.broadcast %276 : vector<8x1xf32> to vector<8x32xf32>
    %278 = arith.mulf %273, %277 : vector<8x32xf32>
    %279 = vector.broadcast %256 : vector<1x32xf32> to vector<8x32xf32>
    %280 = arith.mulf %278, %279 : vector<8x32xf32>
    %281 = vector.broadcast %257 : vector<1x32xf32> to vector<8x32xf32>
    %282 = arith.addf %280, %281 : vector<8x32xf32>
    %283 = arith.addf %1, %282 : vector<8x32xf32>
    %c0_68 = arith.constant 0 : index
    %c0_69 = arith.constant 0 : index
    %c0_70 = arith.constant 0 : index
    %284 = vector.load %arg12[%c0_68, %c0_69, %c0_70] : memref<2x8x32xf32, #tpu.memory_space<vmem>>, vector<1x8x32xf32>
    %285 = vector.shape_cast %284 : vector<1x8x32xf32> to vector<8x32xf32>
    %286 = vector.shape_cast %283 : vector<8x32xf32> to vector<1x8x32xf32>
    tpu.vector_store %arg12[%c0_68, %c0_69, %c0_70], %286 {strides = array<i32>} : memref<2x8x32xf32, #tpu.memory_space<vmem>>, vector<1x8x32xf32>,
    %287 = vector.extract_strided_slice %255 {offsets = [0, 0], sizes = [8, 32], strides = [1, 1]} : vector<8x64xf32> to vector<8x32xf32>
    %288 = vector.extract_strided_slice %255 {offsets = [0, 32], sizes = [8, 32], strides = [1, 1]} : vector<8x64xf32> to vector<8x32xf32>
    %289 = arith.addf %287, %288 : vector<8x32xf32>
    %cst_71 = arith.constant dense<0.000000e+00> : vector<8xf32>
    %290 = vector.multi_reduction <add>, %289, %cst_71 [1] : vector<8x32xf32> to vector<8xf32>
    %291 = vector.shape_cast %290 : vector<8xf32> to vector<8x1xf32>
    %cst_72 = arith.constant 3.200000e+01 : f32
    %292 = vector.broadcast %cst_72 : f32 to vector<8x1xf32>
    %293 = arith.divf %291, %292 : vector<8x1xf32>
    %294 = vector.broadcast %293 : vector<8x1xf32> to vector<8x32xf32>
    %295 = arith.subf %289, %294 : vector<8x32xf32>
    %296 = arith.mulf %295, %295 : vector<8x32xf32>
    %cst_73 = arith.constant dense<0.000000e+00> : vector<8xf32>
    %297 = vector.multi_reduction <add>, %296, %cst_73 [1] : vector<8x32xf32> to vector<8xf32>
    %298 = vector.shape_cast %297 : vector<8xf32> to vector<8x1xf32>
    %cst_74 = arith.constant 3.200000e+01 : f32
    %299 = vector.broadcast %cst_74 : f32 to vector<8x1xf32>
    %300 = arith.divf %298, %299 : vector<8x1xf32>
    %301 = vector.broadcast %293 : vector<8x1xf32> to vector<8x32xf32>
    %302 = arith.subf %289, %301 : vector<8x32xf32>
    %cst_75 = arith.constant 9.99999974E-6 : f32
    %303 = vector.broadcast %cst_75 : f32 to vector<8x1xf32>
    %304 = arith.addf %300, %303 : vector<8x1xf32>
    %305 = math.rsqrt %304 : vector<8x1xf32>
    %306 = vector.broadcast %305 : vector<8x1xf32> to vector<8x32xf32>
    %307 = arith.mulf %302, %306 : vector<8x32xf32>
    %308 = vector.broadcast %256 : vector<1x32xf32> to vector<8x32xf32>
    %309 = arith.mulf %307, %308 : vector<8x32xf32>
    %310 = vector.broadcast %257 : vector<1x32xf32> to vector<8x32xf32>
    %311 = arith.addf %309, %310 : vector<8x32xf32>
    %312 = arith.addf %3, %311 : vector<8x32xf32>
    %c1_76 = arith.constant 1 : index
    %c0_77 = arith.constant 0 : index
    %c0_78 = arith.constant 0 : index
    %313 = vector.load %arg12[%c1_76, %c0_77, %c0_78] : memref<2x8x32xf32, #tpu.memory_space<vmem>>, vector<1x8x32xf32>
    %314 = vector.shape_cast %313 : vector<1x8x32xf32> to vector<8x32xf32>
    %315 = vector.shape_cast %312 : vector<8x32xf32> to vector<1x8x32xf32>
    tpu.vector_store %arg12[%c1_76, %c0_77, %c0_78], %315 {strides = array<i32>} : memref<2x8x32xf32, #tpu.memory_space<vmem>>, vector<1x8x32xf32>,
    return
  }
  func.func @transform_0(%arg0: i32) -> (i32, i32, i32) {
    %c0_i32 = arith.constant 0 : i32
    %c0_i32_0 = arith.constant 0 : i32
    %c0_i32_1 = arith.constant 0 : i32
    %c0_i32_2 = arith.constant 0 : i32
    return %c0_i32, %c0_i32_0, %c0_i32_1 : i32, i32, i32
  }
  func.func @transform_1(%arg0: i32) -> (i32, i32) {
    %c0_i32 = arith.constant 0 : i32
    %c0_i32_0 = arith.constant 0 : i32
    %c0_i32_1 = arith.constant 0 : i32
    return %c0_i32, %c0_i32_0 : i32, i32
  }
  func.func @transform_2(%arg0: i32) -> (i32, i32) {
    %c0_i32 = arith.constant 0 : i32
    %c0_i32_0 = arith.constant 0 : i32
    %c0_i32_1 = arith.constant 0 : i32
    return %c0_i32, %c0_i32_0 : i32, i32
  }
  func.func @transform_3(%arg0: i32) -> (i32, i32) {
    %c0_i32 = arith.constant 0 : i32
    %c0_i32_0 = arith.constant 0 : i32
    %c0_i32_1 = arith.constant 0 : i32
    return %c0_i32, %c0_i32_0 : i32, i32
  }
  func.func @transform_4(%arg0: i32) -> (i32, i32) {
    %c0_i32 = arith.constant 0 : i32
    %c0_i32_0 = arith.constant 0 : i32
    %c0_i32_1 = arith.constant 0 : i32
    return %c0_i32, %c0_i32_0 : i32, i32
  }
  func.func @transform_5(%arg0: i32) -> (i32, i32) {
    %c0_i32 = arith.constant 0 : i32
    %c0_i32_0 = arith.constant 0 : i32
    %c0_i32_1 = arith.constant 0 : i32
    return %c0_i32, %c0_i32_0 : i32, i32
  }
  func.func @transform_6(%arg0: i32) -> (i32, i32) {
    %c0_i32 = arith.constant 0 : i32
    %c0_i32_0 = arith.constant 0 : i32
    %c0_i32_1 = arith.constant 0 : i32
    return %c0_i32, %c0_i32_0 : i32, i32
  }
  func.func @transform_7(%arg0: i32) -> (i32, i32) {
    %c0_i32 = arith.constant 0 : i32
    %c0_i32_0 = arith.constant 0 : i32
    %c0_i32_1 = arith.constant 0 : i32
    return %c0_i32, %c0_i32_0 : i32, i32
  }
  func.func @transform_8(%arg0: i32) -> (i32, i32) {
    %c0_i32 = arith.constant 0 : i32
    %c0_i32_0 = arith.constant 0 : i32
    %c0_i32_1 = arith.constant 0 : i32
    return %c0_i32, %c0_i32_0 : i32, i32
  }
  func.func @transform_9(%arg0: i32) -> (i32, i32) {
    %c0_i32 = arith.constant 0 : i32
    %c0_i32_0 = arith.constant 0 : i32
    %c0_i32_1 = arith.constant 0 : i32
    return %c0_i32, %c0_i32_0 : i32, i32
  }
  func.func @transform_10(%arg0: i32) -> (i32, i32) {
    %c0_i32 = arith.constant 0 : i32
    %c0_i32_0 = arith.constant 0 : i32
    %c0_i32_1 = arith.constant 0 : i32
    return %c0_i32, %c0_i32_0 : i32, i32
  }
  func.func @transform_11(%arg0: i32) -> (i32, i32, i32) {
    %c0_i32 = arith.constant 0 : i32
    %c0_i32_0 = arith.constant 0 : i32
    %c0_i32_1 = arith.constant 0 : i32
    %c0_i32_2 = arith.constant 0 : i32
    return %c0_i32, %c0_i32_0, %c0_i32_1 : i32, i32, i32
  }
}

module attributes {stable_mosaic.version = 11 : i64} {
  func.func @_transformer_layer_kernel(%arg0: i32, %arg1: memref<16x32xf32, #tpu.memory_space<vmem>>, %arg2: memref<32x96xf32, #tpu.memory_space<vmem>>, %arg3: memref<1x96xf32, #tpu.memory_space<vmem>>, %arg4: memref<32x32xf32, #tpu.memory_space<vmem>>, %arg5: memref<32x32xf32, #tpu.memory_space<vmem>>, %arg6: memref<1x32xf32, #tpu.memory_space<vmem>>, %arg7: memref<1x32xf32, #tpu.memory_space<vmem>>, %arg8: memref<1x32xf32, #tpu.memory_space<vmem>>, %arg9: memref<32x64xf32, #tpu.memory_space<vmem>>, %arg10: memref<1x64xf32, #tpu.memory_space<vmem>>, %arg11: memref<64x32xf32, #tpu.memory_space<vmem>>, %arg12: memref<1x32xf32, #tpu.memory_space<vmem>>, %arg13: memref<1x32xf32, #tpu.memory_space<vmem>>, %arg14: memref<1x32xf32, #tpu.memory_space<vmem>>, %arg15: memref<16x32xf32, #tpu.memory_space<vmem>>) attributes {dimension_semantics = [#tpu.dimension_semantics<arbitrary>], iteration_bounds = array<i64: 1>, scalar_prefetch = 0 : i64, scratch_operands = 0 : i64, tpu.core_type = #tpu.core_type<tc>, window_params = [{pipeline_mode = #tpu.pipeline_mode<synchronous>, transform_indices = @transform_0, window_bounds = array<i64: 16, 32>}, {pipeline_mode = #tpu.pipeline_mode<synchronous>, transform_indices = @transform_1, window_bounds = array<i64: 32, 96>}, {pipeline_mode = #tpu.pipeline_mode<synchronous>, transform_indices = @transform_2, window_bounds = array<i64: 1, 96>}, {pipeline_mode = #tpu.pipeline_mode<synchronous>, transform_indices = @transform_3, window_bounds = array<i64: 32, 32>}, {pipeline_mode = #tpu.pipeline_mode<synchronous>, transform_indices = @transform_4, window_bounds = array<i64: 32, 32>}, {pipeline_mode = #tpu.pipeline_mode<synchronous>, transform_indices = @transform_5, window_bounds = array<i64: 1, 32>}, {pipeline_mode = #tpu.pipeline_mode<synchronous>, transform_indices = @transform_6, window_bounds = array<i64: 1, 32>}, {pipeline_mode = #tpu.pipeline_mode<synchronous>, transform_indices = @transform_7, window_bounds = array<i64: 1, 32>}, {pipeline_mode = #tpu.pipeline_mode<synchronous>, transform_indices = @transform_8, window_bounds = array<i64: 32, 64>}, {pipeline_mode = #tpu.pipeline_mode<synchronous>, transform_indices = @transform_9, window_bounds = array<i64: 1, 64>}, {pipeline_mode = #tpu.pipeline_mode<synchronous>, transform_indices = @transform_10, window_bounds = array<i64: 64, 32>}, {pipeline_mode = #tpu.pipeline_mode<synchronous>, transform_indices = @transform_11, window_bounds = array<i64: 1, 32>}, {pipeline_mode = #tpu.pipeline_mode<synchronous>, transform_indices = @transform_12, window_bounds = array<i64: 1, 32>}, {pipeline_mode = #tpu.pipeline_mode<synchronous>, transform_indices = @transform_13, window_bounds = array<i64: 1, 32>}, {pipeline_mode = #tpu.pipeline_mode<synchronous>, transform_indices = @transform_14, window_bounds = array<i64: 16, 32>}]} {
    %c0 = arith.constant 0 : index
    %c0_0 = arith.constant 0 : index
    %0 = vector.load %arg1[%c0, %c0_0] : memref<16x32xf32, #tpu.memory_space<vmem>>, vector<16x32xf32>
    %c0_1 = arith.constant 0 : index
    %c0_2 = arith.constant 0 : index
    %1 = vector.load %arg2[%c0_1, %c0_2] : memref<32x96xf32, #tpu.memory_space<vmem>>, vector<32x96xf32>
    %cst = arith.constant dense<0.000000e+00> : vector<16x96xf32>
    %2 = tpu.matmul %0, %1, %cst {dimension_numbers = #tpu.dot_dimension_numbers<[1], [0], [0], [1], [0, 0, 1, 1], [], []>} : vector<16x32xf32>, vector<32x96xf32>, vector<16x96xf32> -> vector<16x96xf32>
    %c0_3 = arith.constant 0 : index
    %c0_4 = arith.constant 0 : index
    %3 = vector.load %arg3[%c0_3, %c0_4] : memref<1x96xf32, #tpu.memory_space<vmem>>, vector<1x96xf32>
    %4 = vector.broadcast %3 : vector<1x96xf32> to vector<16x96xf32>
    %5 = arith.addf %2, %4 : vector<16x96xf32>
    %6 = vector.extract_strided_slice %5 {offsets = [0, 0], sizes = [16, 32], strides = [1, 1]} : vector<16x96xf32> to vector<16x32xf32>
    %7 = vector.extract_strided_slice %5 {offsets = [0, 32], sizes = [16, 32], strides = [1, 1]} : vector<16x96xf32> to vector<16x32xf32>
    %8 = vector.extract_strided_slice %5 {offsets = [0, 64], sizes = [16, 32], strides = [1, 1]} : vector<16x96xf32> to vector<16x32xf32>
    %9 = vector.extract_strided_slice %6 {offsets = [0, 0], sizes = [8, 8], strides = [1, 1]} : vector<16x32xf32> to vector<8x8xf32>
    %10 = vector.extract_strided_slice %7 {offsets = [0, 0], sizes = [8, 8], strides = [1, 1]} : vector<16x32xf32> to vector<8x8xf32>
    %11 = vector.extract_strided_slice %8 {offsets = [0, 0], sizes = [8, 8], strides = [1, 1]} : vector<16x32xf32> to vector<8x8xf32>
    %cst_5 = arith.constant dense<0.000000e+00> : vector<8x8xf32>
    %12 = tpu.matmul %9, %10, %cst_5 {dimension_numbers = #tpu.dot_dimension_numbers<[1], [1], [0], [0], [0, 0, 1, 0], [], []>} : vector<8x8xf32>, vector<8x8xf32>, vector<8x8xf32> -> vector<8x8xf32>
    %cst_6 = arith.constant 0.353553385 : f32
    %13 = vector.broadcast %cst_6 : f32 to vector<8x8xf32>
    %14 = arith.mulf %12, %13 : vector<8x8xf32>
    %cst_7 = arith.constant dense<0xFF800000> : vector<8xf32>
    %15 = vector.multi_reduction <maximumf>, %14, %cst_7 [1] : vector<8x8xf32> to vector<8xf32>
    %16 = vector.shape_cast %15 : vector<8xf32> to vector<8x1xf32>
    %17 = vector.broadcast %16 : vector<8x1xf32> to vector<8x8xf32>
    %18 = arith.subf %14, %17 : vector<8x8xf32>
    %19 = math.exp %18 : vector<8x8xf32>
    %cst_8 = arith.constant dense<0.000000e+00> : vector<8xf32>
    %20 = vector.multi_reduction <add>, %19, %cst_8 [1] : vector<8x8xf32> to vector<8xf32>
    %21 = vector.shape_cast %20 : vector<8xf32> to vector<8x1xf32>
    %22 = vector.broadcast %21 : vector<8x1xf32> to vector<8x8xf32>
    %23 = arith.divf %19, %22 : vector<8x8xf32>
    %cst_9 = arith.constant dense<0.000000e+00> : vector<8x8xf32>
    %24 = tpu.matmul %23, %11, %cst_9 {dimension_numbers = #tpu.dot_dimension_numbers<[1], [0], [0], [1], [0, 0, 1, 1], [], []>} : vector<8x8xf32>, vector<8x8xf32>, vector<8x8xf32> -> vector<8x8xf32>
    %25 = vector.extract_strided_slice %6 {offsets = [0, 8], sizes = [8, 8], strides = [1, 1]} : vector<16x32xf32> to vector<8x8xf32>
    %26 = vector.extract_strided_slice %7 {offsets = [0, 8], sizes = [8, 8], strides = [1, 1]} : vector<16x32xf32> to vector<8x8xf32>
    %27 = vector.extract_strided_slice %8 {offsets = [0, 8], sizes = [8, 8], strides = [1, 1]} : vector<16x32xf32> to vector<8x8xf32>
    %cst_10 = arith.constant dense<0.000000e+00> : vector<8x8xf32>
    %28 = tpu.matmul %25, %26, %cst_10 {dimension_numbers = #tpu.dot_dimension_numbers<[1], [1], [0], [0], [0, 0, 1, 0], [], []>} : vector<8x8xf32>, vector<8x8xf32>, vector<8x8xf32> -> vector<8x8xf32>
    %cst_11 = arith.constant 0.353553385 : f32
    %29 = vector.broadcast %cst_11 : f32 to vector<8x8xf32>
    %30 = arith.mulf %28, %29 : vector<8x8xf32>
    %cst_12 = arith.constant dense<0xFF800000> : vector<8xf32>
    %31 = vector.multi_reduction <maximumf>, %30, %cst_12 [1] : vector<8x8xf32> to vector<8xf32>
    %32 = vector.shape_cast %31 : vector<8xf32> to vector<8x1xf32>
    %33 = vector.broadcast %32 : vector<8x1xf32> to vector<8x8xf32>
    %34 = arith.subf %30, %33 : vector<8x8xf32>
    %35 = math.exp %34 : vector<8x8xf32>
    %cst_13 = arith.constant dense<0.000000e+00> : vector<8xf32>
    %36 = vector.multi_reduction <add>, %35, %cst_13 [1] : vector<8x8xf32> to vector<8xf32>
    %37 = vector.shape_cast %36 : vector<8xf32> to vector<8x1xf32>
    %38 = vector.broadcast %37 : vector<8x1xf32> to vector<8x8xf32>
    %39 = arith.divf %35, %38 : vector<8x8xf32>
    %cst_14 = arith.constant dense<0.000000e+00> : vector<8x8xf32>
    %40 = tpu.matmul %39, %27, %cst_14 {dimension_numbers = #tpu.dot_dimension_numbers<[1], [0], [0], [1], [0, 0, 1, 1], [], []>} : vector<8x8xf32>, vector<8x8xf32>, vector<8x8xf32> -> vector<8x8xf32>
    %41 = vector.extract_strided_slice %6 {offsets = [0, 16], sizes = [8, 8], strides = [1, 1]} : vector<16x32xf32> to vector<8x8xf32>
    %42 = vector.extract_strided_slice %7 {offsets = [0, 16], sizes = [8, 8], strides = [1, 1]} : vector<16x32xf32> to vector<8x8xf32>
    %43 = vector.extract_strided_slice %8 {offsets = [0, 16], sizes = [8, 8], strides = [1, 1]} : vector<16x32xf32> to vector<8x8xf32>
    %cst_15 = arith.constant dense<0.000000e+00> : vector<8x8xf32>
    %44 = tpu.matmul %41, %42, %cst_15 {dimension_numbers = #tpu.dot_dimension_numbers<[1], [1], [0], [0], [0, 0, 1, 0], [], []>} : vector<8x8xf32>, vector<8x8xf32>, vector<8x8xf32> -> vector<8x8xf32>
    %cst_16 = arith.constant 0.353553385 : f32
    %45 = vector.broadcast %cst_16 : f32 to vector<8x8xf32>
    %46 = arith.mulf %44, %45 : vector<8x8xf32>
    %cst_17 = arith.constant dense<0xFF800000> : vector<8xf32>
    %47 = vector.multi_reduction <maximumf>, %46, %cst_17 [1] : vector<8x8xf32> to vector<8xf32>
    %48 = vector.shape_cast %47 : vector<8xf32> to vector<8x1xf32>
    %49 = vector.broadcast %48 : vector<8x1xf32> to vector<8x8xf32>
    %50 = arith.subf %46, %49 : vector<8x8xf32>
    %51 = math.exp %50 : vector<8x8xf32>
    %cst_18 = arith.constant dense<0.000000e+00> : vector<8xf32>
    %52 = vector.multi_reduction <add>, %51, %cst_18 [1] : vector<8x8xf32> to vector<8xf32>
    %53 = vector.shape_cast %52 : vector<8xf32> to vector<8x1xf32>
    %54 = vector.broadcast %53 : vector<8x1xf32> to vector<8x8xf32>
    %55 = arith.divf %51, %54 : vector<8x8xf32>
    %cst_19 = arith.constant dense<0.000000e+00> : vector<8x8xf32>
    %56 = tpu.matmul %55, %43, %cst_19 {dimension_numbers = #tpu.dot_dimension_numbers<[1], [0], [0], [1], [0, 0, 1, 1], [], []>} : vector<8x8xf32>, vector<8x8xf32>, vector<8x8xf32> -> vector<8x8xf32>
    %57 = vector.extract_strided_slice %6 {offsets = [0, 24], sizes = [8, 8], strides = [1, 1]} : vector<16x32xf32> to vector<8x8xf32>
    %58 = vector.extract_strided_slice %7 {offsets = [0, 24], sizes = [8, 8], strides = [1, 1]} : vector<16x32xf32> to vector<8x8xf32>
    %59 = vector.extract_strided_slice %8 {offsets = [0, 24], sizes = [8, 8], strides = [1, 1]} : vector<16x32xf32> to vector<8x8xf32>
    %cst_20 = arith.constant dense<0.000000e+00> : vector<8x8xf32>
    %60 = tpu.matmul %57, %58, %cst_20 {dimension_numbers = #tpu.dot_dimension_numbers<[1], [1], [0], [0], [0, 0, 1, 0], [], []>} : vector<8x8xf32>, vector<8x8xf32>, vector<8x8xf32> -> vector<8x8xf32>
    %cst_21 = arith.constant 0.353553385 : f32
    %61 = vector.broadcast %cst_21 : f32 to vector<8x8xf32>
    %62 = arith.mulf %60, %61 : vector<8x8xf32>
    %cst_22 = arith.constant dense<0xFF800000> : vector<8xf32>
    %63 = vector.multi_reduction <maximumf>, %62, %cst_22 [1] : vector<8x8xf32> to vector<8xf32>
    %64 = vector.shape_cast %63 : vector<8xf32> to vector<8x1xf32>
    %65 = vector.broadcast %64 : vector<8x1xf32> to vector<8x8xf32>
    %66 = arith.subf %62, %65 : vector<8x8xf32>
    %67 = math.exp %66 : vector<8x8xf32>
    %cst_23 = arith.constant dense<0.000000e+00> : vector<8xf32>
    %68 = vector.multi_reduction <add>, %67, %cst_23 [1] : vector<8x8xf32> to vector<8xf32>
    %69 = vector.shape_cast %68 : vector<8xf32> to vector<8x1xf32>
    %70 = vector.broadcast %69 : vector<8x1xf32> to vector<8x8xf32>
    %71 = arith.divf %67, %70 : vector<8x8xf32>
    %cst_24 = arith.constant dense<0.000000e+00> : vector<8x8xf32>
    %72 = tpu.matmul %71, %59, %cst_24 {dimension_numbers = #tpu.dot_dimension_numbers<[1], [0], [0], [1], [0, 0, 1, 1], [], []>} : vector<8x8xf32>, vector<8x8xf32>, vector<8x8xf32> -> vector<8x8xf32>
    %73 = tpu.concatenate %24, %40, %56, %72 in 1 : vector<8x8xf32>, vector<8x8xf32>, vector<8x8xf32>, vector<8x8xf32> -> vector<8x32xf32>
    %74 = vector.extract_strided_slice %6 {offsets = [8, 0], sizes = [8, 8], strides = [1, 1]} : vector<16x32xf32> to vector<8x8xf32>
    %75 = vector.extract_strided_slice %7 {offsets = [8, 0], sizes = [8, 8], strides = [1, 1]} : vector<16x32xf32> to vector<8x8xf32>
    %76 = vector.extract_strided_slice %8 {offsets = [8, 0], sizes = [8, 8], strides = [1, 1]} : vector<16x32xf32> to vector<8x8xf32>
    %cst_25 = arith.constant dense<0.000000e+00> : vector<8x8xf32>
    %77 = tpu.matmul %74, %75, %cst_25 {dimension_numbers = #tpu.dot_dimension_numbers<[1], [1], [0], [0], [0, 0, 1, 0], [], []>} : vector<8x8xf32>, vector<8x8xf32>, vector<8x8xf32> -> vector<8x8xf32>
    %cst_26 = arith.constant 0.353553385 : f32
    %78 = vector.broadcast %cst_26 : f32 to vector<8x8xf32>
    %79 = arith.mulf %77, %78 : vector<8x8xf32>
    %cst_27 = arith.constant dense<0xFF800000> : vector<8xf32>
    %80 = vector.multi_reduction <maximumf>, %79, %cst_27 [1] : vector<8x8xf32> to vector<8xf32>
    %81 = vector.shape_cast %80 : vector<8xf32> to vector<8x1xf32>
    %82 = vector.broadcast %81 : vector<8x1xf32> to vector<8x8xf32>
    %83 = arith.subf %79, %82 : vector<8x8xf32>
    %84 = math.exp %83 : vector<8x8xf32>
    %cst_28 = arith.constant dense<0.000000e+00> : vector<8xf32>
    %85 = vector.multi_reduction <add>, %84, %cst_28 [1] : vector<8x8xf32> to vector<8xf32>
    %86 = vector.shape_cast %85 : vector<8xf32> to vector<8x1xf32>
    %87 = vector.broadcast %86 : vector<8x1xf32> to vector<8x8xf32>
    %88 = arith.divf %84, %87 : vector<8x8xf32>
    %cst_29 = arith.constant dense<0.000000e+00> : vector<8x8xf32>
    %89 = tpu.matmul %88, %76, %cst_29 {dimension_numbers = #tpu.dot_dimension_numbers<[1], [0], [0], [1], [0, 0, 1, 1], [], []>} : vector<8x8xf32>, vector<8x8xf32>, vector<8x8xf32> -> vector<8x8xf32>
    %90 = vector.extract_strided_slice %6 {offsets = [8, 8], sizes = [8, 8], strides = [1, 1]} : vector<16x32xf32> to vector<8x8xf32>
    %91 = vector.extract_strided_slice %7 {offsets = [8, 8], sizes = [8, 8], strides = [1, 1]} : vector<16x32xf32> to vector<8x8xf32>
    %92 = vector.extract_strided_slice %8 {offsets = [8, 8], sizes = [8, 8], strides = [1, 1]} : vector<16x32xf32> to vector<8x8xf32>
    %cst_30 = arith.constant dense<0.000000e+00> : vector<8x8xf32>
    %93 = tpu.matmul %90, %91, %cst_30 {dimension_numbers = #tpu.dot_dimension_numbers<[1], [1], [0], [0], [0, 0, 1, 0], [], []>} : vector<8x8xf32>, vector<8x8xf32>, vector<8x8xf32> -> vector<8x8xf32>
    %cst_31 = arith.constant 0.353553385 : f32
    %94 = vector.broadcast %cst_31 : f32 to vector<8x8xf32>
    %95 = arith.mulf %93, %94 : vector<8x8xf32>
    %cst_32 = arith.constant dense<0xFF800000> : vector<8xf32>
    %96 = vector.multi_reduction <maximumf>, %95, %cst_32 [1] : vector<8x8xf32> to vector<8xf32>
    %97 = vector.shape_cast %96 : vector<8xf32> to vector<8x1xf32>
    %98 = vector.broadcast %97 : vector<8x1xf32> to vector<8x8xf32>
    %99 = arith.subf %95, %98 : vector<8x8xf32>
    %100 = math.exp %99 : vector<8x8xf32>
    %cst_33 = arith.constant dense<0.000000e+00> : vector<8xf32>
    %101 = vector.multi_reduction <add>, %100, %cst_33 [1] : vector<8x8xf32> to vector<8xf32>
    %102 = vector.shape_cast %101 : vector<8xf32> to vector<8x1xf32>
    %103 = vector.broadcast %102 : vector<8x1xf32> to vector<8x8xf32>
    %104 = arith.divf %100, %103 : vector<8x8xf32>
    %cst_34 = arith.constant dense<0.000000e+00> : vector<8x8xf32>
    %105 = tpu.matmul %104, %92, %cst_34 {dimension_numbers = #tpu.dot_dimension_numbers<[1], [0], [0], [1], [0, 0, 1, 1], [], []>} : vector<8x8xf32>, vector<8x8xf32>, vector<8x8xf32> -> vector<8x8xf32>
    %106 = vector.extract_strided_slice %6 {offsets = [8, 16], sizes = [8, 8], strides = [1, 1]} : vector<16x32xf32> to vector<8x8xf32>
    %107 = vector.extract_strided_slice %7 {offsets = [8, 16], sizes = [8, 8], strides = [1, 1]} : vector<16x32xf32> to vector<8x8xf32>
    %108 = vector.extract_strided_slice %8 {offsets = [8, 16], sizes = [8, 8], strides = [1, 1]} : vector<16x32xf32> to vector<8x8xf32>
    %cst_35 = arith.constant dense<0.000000e+00> : vector<8x8xf32>
    %109 = tpu.matmul %106, %107, %cst_35 {dimension_numbers = #tpu.dot_dimension_numbers<[1], [1], [0], [0], [0, 0, 1, 0], [], []>} : vector<8x8xf32>, vector<8x8xf32>, vector<8x8xf32> -> vector<8x8xf32>
    %cst_36 = arith.constant 0.353553385 : f32
    %110 = vector.broadcast %cst_36 : f32 to vector<8x8xf32>
    %111 = arith.mulf %109, %110 : vector<8x8xf32>
    %cst_37 = arith.constant dense<0xFF800000> : vector<8xf32>
    %112 = vector.multi_reduction <maximumf>, %111, %cst_37 [1] : vector<8x8xf32> to vector<8xf32>
    %113 = vector.shape_cast %112 : vector<8xf32> to vector<8x1xf32>
    %114 = vector.broadcast %113 : vector<8x1xf32> to vector<8x8xf32>
    %115 = arith.subf %111, %114 : vector<8x8xf32>
    %116 = math.exp %115 : vector<8x8xf32>
    %cst_38 = arith.constant dense<0.000000e+00> : vector<8xf32>
    %117 = vector.multi_reduction <add>, %116, %cst_38 [1] : vector<8x8xf32> to vector<8xf32>
    %118 = vector.shape_cast %117 : vector<8xf32> to vector<8x1xf32>
    %119 = vector.broadcast %118 : vector<8x1xf32> to vector<8x8xf32>
    %120 = arith.divf %116, %119 : vector<8x8xf32>
    %cst_39 = arith.constant dense<0.000000e+00> : vector<8x8xf32>
    %121 = tpu.matmul %120, %108, %cst_39 {dimension_numbers = #tpu.dot_dimension_numbers<[1], [0], [0], [1], [0, 0, 1, 1], [], []>} : vector<8x8xf32>, vector<8x8xf32>, vector<8x8xf32> -> vector<8x8xf32>
    %122 = vector.extract_strided_slice %6 {offsets = [8, 24], sizes = [8, 8], strides = [1, 1]} : vector<16x32xf32> to vector<8x8xf32>
    %123 = vector.extract_strided_slice %7 {offsets = [8, 24], sizes = [8, 8], strides = [1, 1]} : vector<16x32xf32> to vector<8x8xf32>
    %124 = vector.extract_strided_slice %8 {offsets = [8, 24], sizes = [8, 8], strides = [1, 1]} : vector<16x32xf32> to vector<8x8xf32>
    %cst_40 = arith.constant dense<0.000000e+00> : vector<8x8xf32>
    %125 = tpu.matmul %122, %123, %cst_40 {dimension_numbers = #tpu.dot_dimension_numbers<[1], [1], [0], [0], [0, 0, 1, 0], [], []>} : vector<8x8xf32>, vector<8x8xf32>, vector<8x8xf32> -> vector<8x8xf32>
    %cst_41 = arith.constant 0.353553385 : f32
    %126 = vector.broadcast %cst_41 : f32 to vector<8x8xf32>
    %127 = arith.mulf %125, %126 : vector<8x8xf32>
    %cst_42 = arith.constant dense<0xFF800000> : vector<8xf32>
    %128 = vector.multi_reduction <maximumf>, %127, %cst_42 [1] : vector<8x8xf32> to vector<8xf32>
    %129 = vector.shape_cast %128 : vector<8xf32> to vector<8x1xf32>
    %130 = vector.broadcast %129 : vector<8x1xf32> to vector<8x8xf32>
    %131 = arith.subf %127, %130 : vector<8x8xf32>
    %132 = math.exp %131 : vector<8x8xf32>
    %cst_43 = arith.constant dense<0.000000e+00> : vector<8xf32>
    %133 = vector.multi_reduction <add>, %132, %cst_43 [1] : vector<8x8xf32> to vector<8xf32>
    %134 = vector.shape_cast %133 : vector<8xf32> to vector<8x1xf32>
    %135 = vector.broadcast %134 : vector<8x1xf32> to vector<8x8xf32>
    %136 = arith.divf %132, %135 : vector<8x8xf32>
    %cst_44 = arith.constant dense<0.000000e+00> : vector<8x8xf32>
    %137 = tpu.matmul %136, %124, %cst_44 {dimension_numbers = #tpu.dot_dimension_numbers<[1], [0], [0], [1], [0, 0, 1, 1], [], []>} : vector<8x8xf32>, vector<8x8xf32>, vector<8x8xf32> -> vector<8x8xf32>
    %138 = tpu.concatenate %89, %105, %121, %137 in 1 : vector<8x8xf32>, vector<8x8xf32>, vector<8x8xf32>, vector<8x8xf32> -> vector<8x32xf32>
    %139 = tpu.concatenate %73, %138 in 0 : vector<8x32xf32>, vector<8x32xf32> -> vector<16x32xf32>
    %c0_45 = arith.constant 0 : index
    %c0_46 = arith.constant 0 : index
    %140 = vector.load %arg4[%c0_45, %c0_46] : memref<32x32xf32, #tpu.memory_space<vmem>>, vector<32x32xf32>
    %cst_47 = arith.constant dense<0.000000e+00> : vector<16x32xf32>
    %141 = tpu.matmul %139, %140, %cst_47 {dimension_numbers = #tpu.dot_dimension_numbers<[1], [0], [0], [1], [0, 0, 1, 1], [], []>} : vector<16x32xf32>, vector<32x32xf32>, vector<16x32xf32> -> vector<16x32xf32>
    %c0_48 = arith.constant 0 : index
    %c0_49 = arith.constant 0 : index
    %142 = vector.load %arg5[%c0_48, %c0_49] : memref<32x32xf32, #tpu.memory_space<vmem>>, vector<32x32xf32>
    %cst_50 = arith.constant dense<0.000000e+00> : vector<16x32xf32>
    %143 = tpu.matmul %141, %142, %cst_50 {dimension_numbers = #tpu.dot_dimension_numbers<[1], [0], [0], [1], [0, 0, 1, 1], [], []>} : vector<16x32xf32>, vector<32x32xf32>, vector<16x32xf32> -> vector<16x32xf32>
    %c0_51 = arith.constant 0 : index
    %c0_52 = arith.constant 0 : index
    %144 = vector.load %arg6[%c0_51, %c0_52] : memref<1x32xf32, #tpu.memory_space<vmem>>, vector<1x32xf32>
    %145 = vector.broadcast %144 : vector<1x32xf32> to vector<16x32xf32>
    %146 = arith.addf %143, %145 : vector<16x32xf32>
    %147 = arith.addf %0, %146 : vector<16x32xf32>
    %c0_53 = arith.constant 0 : index
    %c0_54 = arith.constant 0 : index
    %148 = vector.load %arg7[%c0_53, %c0_54] : memref<1x32xf32, #tpu.memory_space<vmem>>, vector<1x32xf32>
    %c0_55 = arith.constant 0 : index
    %c0_56 = arith.constant 0 : index
    %149 = vector.load %arg8[%c0_55, %c0_56] : memref<1x32xf32, #tpu.memory_space<vmem>>, vector<1x32xf32>
    %cst_57 = arith.constant dense<0.000000e+00> : vector<16xf32>
    %150 = vector.multi_reduction <add>, %147, %cst_57 [1] : vector<16x32xf32> to vector<16xf32>
    %151 = vector.shape_cast %150 : vector<16xf32> to vector<16x1xf32>
    %cst_58 = arith.constant 3.200000e+01 : f32
    %152 = vector.broadcast %cst_58 : f32 to vector<16x1xf32>
    %153 = arith.divf %151, %152 : vector<16x1xf32>
    %154 = vector.broadcast %153 : vector<16x1xf32> to vector<16x32xf32>
    %155 = arith.subf %147, %154 : vector<16x32xf32>
    %156 = arith.mulf %155, %155 : vector<16x32xf32>
    %cst_59 = arith.constant dense<0.000000e+00> : vector<16xf32>
    %157 = vector.multi_reduction <add>, %156, %cst_59 [1] : vector<16x32xf32> to vector<16xf32>
    %158 = vector.shape_cast %157 : vector<16xf32> to vector<16x1xf32>
    %cst_60 = arith.constant 3.200000e+01 : f32
    %159 = vector.broadcast %cst_60 : f32 to vector<16x1xf32>
    %160 = arith.divf %158, %159 : vector<16x1xf32>
    %161 = vector.broadcast %153 : vector<16x1xf32> to vector<16x32xf32>
    %162 = arith.subf %147, %161 : vector<16x32xf32>
    %cst_61 = arith.constant 9.99999974E-6 : f32
    %163 = vector.broadcast %cst_61 : f32 to vector<16x1xf32>
    %164 = arith.addf %160, %163 : vector<16x1xf32>
    %165 = math.rsqrt %164 : vector<16x1xf32>
    %166 = vector.broadcast %165 : vector<16x1xf32> to vector<16x32xf32>
    %167 = arith.mulf %162, %166 : vector<16x32xf32>
    %168 = vector.broadcast %148 : vector<1x32xf32> to vector<16x32xf32>
    %169 = arith.mulf %167, %168 : vector<16x32xf32>
    %170 = vector.broadcast %149 : vector<1x32xf32> to vector<16x32xf32>
    %171 = arith.addf %169, %170 : vector<16x32xf32>
    %c0_62 = arith.constant 0 : index
    %c0_63 = arith.constant 0 : index
    %172 = vector.load %arg9[%c0_62, %c0_63] : memref<32x64xf32, #tpu.memory_space<vmem>>, vector<32x64xf32>
    %cst_64 = arith.constant dense<0.000000e+00> : vector<16x64xf32>
    %173 = tpu.matmul %171, %172, %cst_64 {dimension_numbers = #tpu.dot_dimension_numbers<[1], [0], [0], [1], [0, 0, 1, 1], [], []>} : vector<16x32xf32>, vector<32x64xf32>, vector<16x64xf32> -> vector<16x64xf32>
    %c0_65 = arith.constant 0 : index
    %c0_66 = arith.constant 0 : index
    %174 = vector.load %arg10[%c0_65, %c0_66] : memref<1x64xf32, #tpu.memory_space<vmem>>, vector<1x64xf32>
    %175 = vector.broadcast %174 : vector<1x64xf32> to vector<16x64xf32>
    %176 = arith.addf %173, %175 : vector<16x64xf32>
    %cst_67 = arith.constant 0.000000e+00 : f32
    %177 = vector.broadcast %cst_67 : f32 to vector<16x64xf32>
    %178 = arith.maximumf %176, %177 : vector<16x64xf32>
    %c0_68 = arith.constant 0 : index
    %c0_69 = arith.constant 0 : index
    %179 = vector.load %arg11[%c0_68, %c0_69] : memref<64x32xf32, #tpu.memory_space<vmem>>, vector<64x32xf32>
    %cst_70 = arith.constant dense<0.000000e+00> : vector<16x32xf32>
    %180 = tpu.matmul %178, %179, %cst_70 {dimension_numbers = #tpu.dot_dimension_numbers<[1], [0], [0], [1], [0, 0, 1, 1], [], []>} : vector<16x64xf32>, vector<64x32xf32>, vector<16x32xf32> -> vector<16x32xf32>
    %c0_71 = arith.constant 0 : index
    %c0_72 = arith.constant 0 : index
    %181 = vector.load %arg12[%c0_71, %c0_72] : memref<1x32xf32, #tpu.memory_space<vmem>>, vector<1x32xf32>
    %182 = vector.broadcast %181 : vector<1x32xf32> to vector<16x32xf32>
    %183 = arith.addf %180, %182 : vector<16x32xf32>
    %184 = arith.addf %171, %183 : vector<16x32xf32>
    %c0_73 = arith.constant 0 : index
    %c0_74 = arith.constant 0 : index
    %185 = vector.load %arg13[%c0_73, %c0_74] : memref<1x32xf32, #tpu.memory_space<vmem>>, vector<1x32xf32>
    %c0_75 = arith.constant 0 : index
    %c0_76 = arith.constant 0 : index
    %186 = vector.load %arg14[%c0_75, %c0_76] : memref<1x32xf32, #tpu.memory_space<vmem>>, vector<1x32xf32>
    %cst_77 = arith.constant dense<0.000000e+00> : vector<16xf32>
    %187 = vector.multi_reduction <add>, %184, %cst_77 [1] : vector<16x32xf32> to vector<16xf32>
    %188 = vector.shape_cast %187 : vector<16xf32> to vector<16x1xf32>
    %cst_78 = arith.constant 3.200000e+01 : f32
    %189 = vector.broadcast %cst_78 : f32 to vector<16x1xf32>
    %190 = arith.divf %188, %189 : vector<16x1xf32>
    %191 = vector.broadcast %190 : vector<16x1xf32> to vector<16x32xf32>
    %192 = arith.subf %184, %191 : vector<16x32xf32>
    %193 = arith.mulf %192, %192 : vector<16x32xf32>
    %cst_79 = arith.constant dense<0.000000e+00> : vector<16xf32>
    %194 = vector.multi_reduction <add>, %193, %cst_79 [1] : vector<16x32xf32> to vector<16xf32>
    %195 = vector.shape_cast %194 : vector<16xf32> to vector<16x1xf32>
    %cst_80 = arith.constant 3.200000e+01 : f32
    %196 = vector.broadcast %cst_80 : f32 to vector<16x1xf32>
    %197 = arith.divf %195, %196 : vector<16x1xf32>
    %198 = vector.broadcast %190 : vector<16x1xf32> to vector<16x32xf32>
    %199 = arith.subf %184, %198 : vector<16x32xf32>
    %cst_81 = arith.constant 9.99999974E-6 : f32
    %200 = vector.broadcast %cst_81 : f32 to vector<16x1xf32>
    %201 = arith.addf %197, %200 : vector<16x1xf32>
    %202 = math.rsqrt %201 : vector<16x1xf32>
    %203 = vector.broadcast %202 : vector<16x1xf32> to vector<16x32xf32>
    %204 = arith.mulf %199, %203 : vector<16x32xf32>
    %205 = vector.broadcast %185 : vector<1x32xf32> to vector<16x32xf32>
    %206 = arith.mulf %204, %205 : vector<16x32xf32>
    %207 = vector.broadcast %186 : vector<1x32xf32> to vector<16x32xf32>
    %208 = arith.addf %206, %207 : vector<16x32xf32>
    %c0_82 = arith.constant 0 : index
    %c0_83 = arith.constant 0 : index
    %209 = vector.load %arg15[%c0_82, %c0_83] : memref<16x32xf32, #tpu.memory_space<vmem>>, vector<16x32xf32>
    tpu.vector_store %arg15[%c0_82, %c0_83], %208 {strides = array<i32>} : memref<16x32xf32, #tpu.memory_space<vmem>>, vector<16x32xf32>,
    return
  }
  func.func @transform_0(%arg0: i32) -> (i32, i32) {
    %c0_i32 = arith.constant 0 : i32
    %c0_i32_0 = arith.constant 0 : i32
    %c0_i32_1 = arith.constant 0 : i32
    return %c0_i32, %c0_i32_0 : i32, i32
  }
  func.func @transform_1(%arg0: i32) -> (i32, i32) {
    %c0_i32 = arith.constant 0 : i32
    %c0_i32_0 = arith.constant 0 : i32
    %c0_i32_1 = arith.constant 0 : i32
    return %c0_i32, %c0_i32_0 : i32, i32
  }
  func.func @transform_2(%arg0: i32) -> (i32, i32) {
    %c0_i32 = arith.constant 0 : i32
    %c0_i32_0 = arith.constant 0 : i32
    %c0_i32_1 = arith.constant 0 : i32
    return %c0_i32, %c0_i32_0 : i32, i32
  }
  func.func @transform_3(%arg0: i32) -> (i32, i32) {
    %c0_i32 = arith.constant 0 : i32
    %c0_i32_0 = arith.constant 0 : i32
    %c0_i32_1 = arith.constant 0 : i32
    return %c0_i32, %c0_i32_0 : i32, i32
  }
  func.func @transform_4(%arg0: i32) -> (i32, i32) {
    %c0_i32 = arith.constant 0 : i32
    %c0_i32_0 = arith.constant 0 : i32
    %c0_i32_1 = arith.constant 0 : i32
    return %c0_i32, %c0_i32_0 : i32, i32
  }
  func.func @transform_5(%arg0: i32) -> (i32, i32) {
    %c0_i32 = arith.constant 0 : i32
    %c0_i32_0 = arith.constant 0 : i32
    %c0_i32_1 = arith.constant 0 : i32
    return %c0_i32, %c0_i32_0 : i32, i32
  }
  func.func @transform_6(%arg0: i32) -> (i32, i32) {
    %c0_i32 = arith.constant 0 : i32
    %c0_i32_0 = arith.constant 0 : i32
    %c0_i32_1 = arith.constant 0 : i32
    return %c0_i32, %c0_i32_0 : i32, i32
  }
  func.func @transform_7(%arg0: i32) -> (i32, i32) {
    %c0_i32 = arith.constant 0 : i32
    %c0_i32_0 = arith.constant 0 : i32
    %c0_i32_1 = arith.constant 0 : i32
    return %c0_i32, %c0_i32_0 : i32, i32
  }
  func.func @transform_8(%arg0: i32) -> (i32, i32) {
    %c0_i32 = arith.constant 0 : i32
    %c0_i32_0 = arith.constant 0 : i32
    %c0_i32_1 = arith.constant 0 : i32
    return %c0_i32, %c0_i32_0 : i32, i32
  }
  func.func @transform_9(%arg0: i32) -> (i32, i32) {
    %c0_i32 = arith.constant 0 : i32
    %c0_i32_0 = arith.constant 0 : i32
    %c0_i32_1 = arith.constant 0 : i32
    return %c0_i32, %c0_i32_0 : i32, i32
  }
  func.func @transform_10(%arg0: i32) -> (i32, i32) {
    %c0_i32 = arith.constant 0 : i32
    %c0_i32_0 = arith.constant 0 : i32
    %c0_i32_1 = arith.constant 0 : i32
    return %c0_i32, %c0_i32_0 : i32, i32
  }
  func.func @transform_11(%arg0: i32) -> (i32, i32) {
    %c0_i32 = arith.constant 0 : i32
    %c0_i32_0 = arith.constant 0 : i32
    %c0_i32_1 = arith.constant 0 : i32
    return %c0_i32, %c0_i32_0 : i32, i32
  }
  func.func @transform_12(%arg0: i32) -> (i32, i32) {
    %c0_i32 = arith.constant 0 : i32
    %c0_i32_0 = arith.constant 0 : i32
    %c0_i32_1 = arith.constant 0 : i32
    return %c0_i32, %c0_i32_0 : i32, i32
  }
  func.func @transform_13(%arg0: i32) -> (i32, i32) {
    %c0_i32 = arith.constant 0 : i32
    %c0_i32_0 = arith.constant 0 : i32
    %c0_i32_1 = arith.constant 0 : i32
    return %c0_i32, %c0_i32_0 : i32, i32
  }
  func.func @transform_14(%arg0: i32) -> (i32, i32) {
    %c0_i32 = arith.constant 0 : i32
    %c0_i32_0 = arith.constant 0 : i32
    %c0_i32_1 = arith.constant 0 : i32
    return %c0_i32, %c0_i32_0 : i32, i32
  }
}

</mosaic_0001>

<llo_original>
// kernel: model_forward.6
$region0: #{model_forward.6}
  #allocation0 [shape = 'u32[]', space=smem, size = 0x4, offset = 0x4, fixed_abs, tag = 'smem constant byte address 0x4 - core index']
  #allocation1 [shape = 'u32[144,128]{1,0:T(1,128)}', space=vmem, size = 0x12000, scoped, tag = 'internal scratch']
  %s0 = inlined_call_operand.vmem [shape: f32[2,8,32], index: 0, kind: input, shape index: {}]
  %s1 = inlined_call_operand.vmem [shape: f32[64,128], index: 1, kind: input, shape index: {}]
  %s2 = inlined_call_operand.vmem [shape: f32[1,128], index: 2, kind: input, shape index: {}]
  %s3 = inlined_call_operand.vmem [shape: f32[64,128], index: 3, kind: input, shape index: {}]
  %s4 = inlined_call_operand.vmem [shape: f32[1,128], index: 4, kind: input, shape index: {}]
  %s5 = inlined_call_operand.vmem [shape: f32[96,128], index: 5, kind: input, shape index: {}]
  %s6 = inlined_call_operand.vmem [shape: f32[1,128], index: 6, kind: input, shape index: {}]
  %s7 = inlined_call_operand.vmem [shape: f32[96,128], index: 7, kind: input, shape index: {}]
  %s8 = inlined_call_operand.vmem [shape: f32[1,128], index: 8, kind: input, shape index: {}]
  %s9 = inlined_call_operand.vmem [shape: f32[1,32], index: 9, kind: input, shape index: {}]
  %s10 = inlined_call_operand.vmem [shape: f32[1,32], index: 10, kind: input, shape index: {}]
  %s11 = inlined_call_operand.vmem [shape: f32[2,8,32], index: 11, kind: output, shape index: {}]
  %s12 = sld [smem:[#allocation0]]
  $region54: #{model_forward.6} parent=0
    _
  %s14 = ssub.s32 1, %s12
  %s15 = scalar_select 0, %s14, %s12
  // Predicated region
  $region2: #{model_forward.6} parent=0 // pred_check
    _
  $region3: #{model_forward.6} parent=0 // pred_check_branch
    %17 = sbr.rel (0) target = $region5
  $region4: #{model_forward.6} parent=0 // pred_region
    _
  $region5: #{model_forward.6} parent=0 // pred_fallthru
    _
  // Predicated region
  $region6: #{model_forward.6} parent=0 // pred_check
    _
  $region7: #{model_forward.6} parent=0 // pred_check_branch
    %19 = sbr.rel (0) target = $region9
  $region8: #{model_forward.6} parent=0 // pred_region
    _
  $region9: #{model_forward.6} parent=0 // pred_fallthru
    _
  // Predicated region
  $region10: #{model_forward.6} parent=0 // pred_check
    _
  $region11: #{model_forward.6} parent=0 // pred_check_branch
    %21 = sbr.rel (0) target = $region13
  $region12: #{model_forward.6} parent=0 // pred_region
    _
  $region13: #{model_forward.6} parent=0 // pred_fallthru
    _
  // Predicated region
  $region14: #{model_forward.6} parent=0 // pred_check
    _
  $region15: #{model_forward.6} parent=0 // pred_check_branch
    %23 = sbr.rel (0) target = $region17
  $region16: #{model_forward.6} parent=0 // pred_region
    _
  $region17: #{model_forward.6} parent=0 // pred_fallthru
    _
  // Predicated region
  $region18: #{model_forward.6} parent=0 // pred_check
    _
  $region19: #{model_forward.6} parent=0 // pred_check_branch
    %25 = sbr.rel (0) target = $region21
  $region20: #{model_forward.6} parent=0 // pred_region
    _
  $region21: #{model_forward.6} parent=0 // pred_fallthru
    _
  // Predicated region
  $region22: #{model_forward.6} parent=0 // pred_check
    _
  $region23: #{model_forward.6} parent=0 // pred_check_branch
    %27 = sbr.rel (0) target = $region25
  $region24: #{model_forward.6} parent=0 // pred_region
    _
  $region25: #{model_forward.6} parent=0 // pred_fallthru
    _
  // Predicated region
  $region26: #{model_forward.6} parent=0 // pred_check
    _
  $region27: #{model_forward.6} parent=0 // pred_check_branch
    %29 = sbr.rel (0) target = $region29
  $region28: #{model_forward.6} parent=0 // pred_region
    _
  $region29: #{model_forward.6} parent=0 // pred_fallthru
    _
  // Predicated region
  $region30: #{model_forward.6} parent=0 // pred_check
    _
  $region31: #{model_forward.6} parent=0 // pred_check_branch
    %31 = sbr.rel (0) target = $region33
  $region32: #{model_forward.6} parent=0 // pred_region
    _
  $region33: #{model_forward.6} parent=0 // pred_fallthru
    _
  // Predicated region
  $region34: #{model_forward.6} parent=0 // pred_check
    _
  $region35: #{model_forward.6} parent=0 // pred_check_branch
    %33 = sbr.rel (0) target = $region37
  $region36: #{model_forward.6} parent=0 // pred_region
    _
  $region37: #{model_forward.6} parent=0 // pred_fallthru
    _
  // Predicated region
  $region38: #{model_forward.6} parent=0 // pred_check
    _
  $region39: #{model_forward.6} parent=0 // pred_check_branch
    %35 = sbr.rel (0) target = $region41
  $region40: #{model_forward.6} parent=0 // pred_region
    _
  $region41: #{model_forward.6} parent=0 // pred_fallthru
    _
  // Predicated region
  $region42: #{model_forward.6} parent=0 // pred_check
    _
  $region43: #{model_forward.6} parent=0 // pred_check_branch
    %37 = sbr.rel (0) target = $region45
  $region44: #{model_forward.6} parent=0 // pred_region
    _
  $region45: #{model_forward.6} parent=0 // pred_fallthru
    _
  %v38 = vld [vmem:[%s0] sm:$0xff]
  %s39 = scalar_lea.vmem %s0, 8
  %v40 = vld [vmem:[%s39] sm:$0xff]
  %v41 = vld [vmem:[%s1] sm:$0xff]
  %v42 = vld [vmem:[%s1 + $0x8] sm:$0xff]
  %v43 = vld [vmem:[%s1 + $0x10] sm:$0xff]
  %v44 = vld [vmem:[%s1 + $0x18] sm:$0xff]
  %v45 = vld [vmem:[%s1 + $0x20] sm:$0xff]
  %v46 = vld [vmem:[%s1 + $0x28] sm:$0xff]
  %v47 = vld [vmem:[%s1 + $0x30] sm:$0xff]
  %v48 = vld [vmem:[%s1 + $0x38] sm:$0xff]
  %v49 = vld [vmem:[%s2] sm:$0x1]
  %v50 = vld [vmem:[%s3] sm:$0xff]
  %v51 = vld [vmem:[%s3 + $0x8] sm:$0xff]
  %v52 = vld [vmem:[%s3 + $0x10] sm:$0xff]
  %v53 = vld [vmem:[%s3 + $0x18] sm:$0xff]
  %v54 = vld [vmem:[%s3 + $0x20] sm:$0xff]
  %v55 = vld [vmem:[%s3 + $0x28] sm:$0xff]
  %v56 = vld [vmem:[%s3 + $0x30] sm:$0xff]
  %v57 = vld [vmem:[%s3 + $0x38] sm:$0xff]
  %v58 = vld [vmem:[%s4] sm:$0x1]
  %vm59 = vcmask 261120
  %v60 = vsel %vm59, %v38, 0.0
  %v62 = vlaneseq
  %v63 = vshrl.u32 %v62, 7
  %v64 = vsub.s32 0, %v63
  %v65 = vrot.slane %v49, %v64
  %vm67 = vcmask 523264
  %v69 = vsel %vm67, %v60, 0
  %71 = vmatprep.subr.mxu0 0.0
  %72 = vmatpush1.msra.mxu0 %v41
  %73 = vmatprep.subr.mxu0 0.0
  %74 = vmatpush1.msra.mxu0 %v42
  %75 = vmatprep.subr.mxu0 0.0
  %76 = vmatpush1.msra.mxu0 %v43
  %77 = vmatprep.subr.mxu0 0.0
  %78 = vmatpush1.msra.mxu0 %v44
  %79 = vmatprep.subr.mxu0 0.0
  %80 = vmatpush1.msra.mxu0 %v45
  %81 = vmatprep.subr.mxu0 0.0
  %82 = vmatpush1.msra.mxu0 %v46
  %83 = vmatprep.subr.mxu0 0.0
  %84 = vmatpush1.msra.mxu0 %v47
  %85 = vmatprep.subr.mxu0 0.0
  %86 = vmatpush1.msra.mxu0 %v48
  %87 = vmatprep.subr.mxu0 0.0
  %88 = vmatpush1.msra.mxu0 0.0
  %89 = vmatprep.subr.mxu0 0.0
  %90 = vmatpush1.msra.mxu0 0.0
  %91 = vmatprep.subr.mxu0 0.0
  %92 = vmatpush1.msra.mxu0 0.0
  %93 = vmatprep.subr.mxu0 0.0
  %94 = vmatpush1.msra.mxu0 0.0
  %95 = vmatprep.subr.mxu0 0.0
  %96 = vmatpush1.msra.mxu0 0.0
  %97 = vmatprep.subr.mxu0 0.0
  %98 = vmatpush1.msra.mxu0 0.0
  %99 = vmatprep.subr.mxu0 0.0
  %100 = vmatpush1.msra.mxu0 0.0
  %101 = vmatprep.subr.mxu0 0.0
  %102 = vmatpush1.msra.mxu0 0.0
  %103 = vmatprep.subr.mxu0 0.0
  %104 = vmatpush1.msra.mxu0 0.0
  %105 = vmatprep.subr.mxu0 0.0
  %106 = vmatpush1.msra.mxu0 0.0
  %107 = vmatprep.subr.mxu0 0.0
  %108 = vmatpush1.msra.mxu0 0.0
  %109 = vmatprep.subr.mxu0 0.0
  %110 = vmatpush1.msra.mxu0 0.0
  %111 = vmatprep.subr.mxu0 0.0
  %112 = vmatpush1.msra.mxu0 0.0
  %113 = vmatprep.subr.mxu0 0.0
  %114 = vmatpush1.msra.mxu0 0.0
  %115 = vmatprep.subr.mxu0 0.0
  %116 = vmatpush1.msra.mxu0 0.0
  %117 = vmatprep.subr.mxu0 0.0
  %118 = vmatpush1.msra.mxu0 0.0
  %119 = vmatprep.subr.mxu0 0.0
  %120 = vmatpush1.msra.mxu0 0.0
  %121 = vmatprep.subr.mxu0 0.0
  %122 = vmatpush1.msra.mxu0 0.0
  %123 = vmatprep.subr.mxu0 0.0
  %124 = vmatpush1.msra.mxu0 0.0
  %125 = vmatprep.subr.mxu0 0.0
  %126 = vmatpush1.msra.mxu0 0.0
  %127 = vmatprep.subr.mxu0 0.0
  %128 = vmatpush1.msra.mxu0 0.0
  %129 = vmatprep.subr.mxu0 0.0
  %130 = vmatpush1.msra.mxu0 0.0
  %131 = vmatprep.subr.mxu0 0.0
  %132 = vmatpush1.msra.mxu0 0.0
  %133 = vmatprep.subr.mxu0 0.0
  %134 = vmatpush1.msra.mxu0 0.0
  %135 = vmatprep.mubr.f32.mxu0 0.0
  %136 = vmatmul.mubr.f32.gmra.mrb[0].mxu0 %v69
  %v137 = vpop.f32.mrb[0].mxu0
  %v138 = vadd.f32 %v65, %v137
  %v139 = vpop.f32.mrb[0].mxu0
  %140 = vdwg.mxu0
  %v141 = vxor.u32 %v138, 2147483648
  %v142 = vmul.f32 %v141, 1.442695
  %v143 = vpow.pop %v142
  %v144 = vadd.f32 %v143, 1.0
  %v145 = vrcp.pop %v144
  %v146 = vmul.f32 1.0, %v145
  %v147 = vtanh.pop %v138
  %v148 = vmul.f32 %v146, 0.0
  %150 = vrot.lane.b32.xlu0 %v147, 64
  %v151 = vpop.permute.xlu0 %150
  %v153 = vmul.f32 %v146, %v151
  %155 = vrot.lane.b32.xlu0 %v153, 32
  %v156 = vpop.permute.xlu0 %155
  %v158 = vadd.f32 %v148, %v156
  %v159 = vtanh.pop %v158
  %161 = vrot.lane.b32.xlu0 %v159, 64
  %v162 = vpop.permute.xlu0 %161
  %v164 = vmul.f32 %v146, %v162
  %166 = vrot.lane.b32.xlu0 %v164, 64
  %v167 = vpop.permute.xlu0 %166
  %v169 = vsel %vm59, %v40, %v167
  %v171 = vsel %vm67, %v169, 0
  %173 = vmatprep.subr.mxu0 0.0
  %174 = vmatpush1.msra.mxu0 %v41
  %175 = vmatprep.subr.mxu0 0.0
  %176 = vmatpush1.msra.mxu0 %v42
  %177 = vmatprep.subr.mxu0 0.0
  %178 = vmatpush1.msra.mxu0 %v43
  %179 = vmatprep.subr.mxu0 0.0
  %180 = vmatpush1.msra.mxu0 %v44
  %181 = vmatprep.subr.mxu0 0.0
  %182 = vmatpush1.msra.mxu0 %v45
  %183 = vmatprep.subr.mxu0 0.0
  %184 = vmatpush1.msra.mxu0 %v46
  %185 = vmatprep.subr.mxu0 0.0
  %186 = vmatpush1.msra.mxu0 %v47
  %187 = vmatprep.subr.mxu0 0.0
  %188 = vmatpush1.msra.mxu0 %v48
  %189 = vmatprep.subr.mxu0 0.0
  %190 = vmatpush1.msra.mxu0 0.0
  %191 = vmatprep.subr.mxu0 0.0
  %192 = vmatpush1.msra.mxu0 0.0
  %193 = vmatprep.subr.mxu0 0.0
  %194 = vmatpush1.msra.mxu0 0.0
  %195 = vmatprep.subr.mxu0 0.0
  %196 = vmatpush1.msra.mxu0 0.0
  %197 = vmatprep.subr.mxu0 0.0
  %198 = vmatpush1.msra.mxu0 0.0
  %199 = vmatprep.subr.mxu0 0.0
  %200 = vmatpush1.msra.mxu0 0.0
  %201 = vmatprep.subr.mxu0 0.0
  %202 = vmatpush1.msra.mxu0 0.0
  %203 = vmatprep.subr.mxu0 0.0
  %204 = vmatpush1.msra.mxu0 0.0
  %205 = vmatprep.subr.mxu0 0.0
  %206 = vmatpush1.msra.mxu0 0.0
  %207 = vmatprep.subr.mxu0 0.0
  %208 = vmatpush1.msra.mxu0 0.0
  %209 = vmatprep.subr.mxu0 0.0
  %210 = vmatpush1.msra.mxu0 0.0
  %211 = vmatprep.subr.mxu0 0.0
  %212 = vmatpush1.msra.mxu0 0.0
  %213 = vmatprep.subr.mxu0 0.0
  %214 = vmatpush1.msra.mxu0 0.0
  %215 = vmatprep.subr.mxu0 0.0
  %216 = vmatpush1.msra.mxu0 0.0
  %217 = vmatprep.subr.mxu0 0.0
  %218 = vmatpush1.msra.mxu0 0.0
  %219 = vmatprep.subr.mxu0 0.0
  %220 = vmatpush1.msra.mxu0 0.0
  %221 = vmatprep.subr.mxu0 0.0
  %222 = vmatpush1.msra.mxu0 0.0
  %223 = vmatprep.subr.mxu0 0.0
  %224 = vmatpush1.msra.mxu0 0.0
  %225 = vmatprep.subr.mxu0 0.0
  %226 = vmatpush1.msra.mxu0 0.0
  %227 = vmatprep.subr.mxu0 0.0
  %228 = vmatpush1.msra.mxu0 0.0
  %229 = vmatprep.subr.mxu0 0.0
  %230 = vmatpush1.msra.mxu0 0.0
  %231 = vmatprep.subr.mxu0 0.0
  %232 = vmatpush1.msra.mxu0 0.0
  %233 = vmatprep.subr.mxu0 0.0
  %234 = vmatpush1.msra.mxu0 0.0
  %235 = vmatprep.subr.mxu0 0.0
  %236 = vmatpush1.msra.mxu0 0.0
  %237 = vmatprep.mubr.f32.mxu0 0.0
  %238 = vmatmul.mubr.f32.gmra.mrb[0].mxu0 %v171
  %v239 = vpop.f32.mrb[0].mxu0
  %v240 = vadd.f32 %v65, %v239
  %v241 = vpop.f32.mrb[0].mxu0
  %242 = vdwg.mxu0
  %v243 = vxor.u32 %v240, 2147483648
  %v244 = vmul.f32 %v243, 1.442695
  %v245 = vpow.pop %v244
  %v246 = vadd.f32 %v245, 1.0
  %v247 = vrcp.pop %v246
  %v248 = vmul.f32 1.0, %v247
  %v249 = vtanh.pop %v240
  %v250 = vmul.f32 %v248, %v158
  %252 = vrot.lane.b32.xlu0 %v249, 64
  %v253 = vpop.permute.xlu0 %252
  %v255 = vmul.f32 %v248, %v253
  %257 = vrot.lane.b32.xlu0 %v255, 32
  %v258 = vpop.permute.xlu0 %257
  %v260 = vadd.f32 %v250, %v258
  %v261 = vtanh.pop %v260
  %263 = vrot.lane.b32.xlu0 %v261, 64
  %v264 = vpop.permute.xlu0 %263
  %v266 = vmul.f32 %v248, %v264
  %v267 = vsel %vm59, %v40, 0.0
  %v269 = vlaneseq
  %v270 = vshrl.u32 %v269, 7
  %v271 = vsub.s32 0, %v270
  %v272 = vrot.slane %v58, %v271
  %v275 = vsel %vm67, %v267, 0
  %277 = vmatprep.subr.mxu0 0.0
  %278 = vmatpush1.msra.mxu0 %v50
  %279 = vmatprep.subr.mxu0 0.0
  %280 = vmatpush1.msra.mxu0 %v51
  %281 = vmatprep.subr.mxu0 0.0
  %282 = vmatpush1.msra.mxu0 %v52
  %283 = vmatprep.subr.mxu0 0.0
  %284 = vmatpush1.msra.mxu0 %v53
  %285 = vmatprep.subr.mxu0 0.0
  %286 = vmatpush1.msra.mxu0 %v54
  %287 = vmatprep.subr.mxu0 0.0
  %288 = vmatpush1.msra.mxu0 %v55
  %289 = vmatprep.subr.mxu0 0.0
  %290 = vmatpush1.msra.mxu0 %v56
  %291 = vmatprep.subr.mxu0 0.0
  %292 = vmatpush1.msra.mxu0 %v57
  %293 = vmatprep.subr.mxu0 0.0
  %294 = vmatpush1.msra.mxu0 0.0
  %295 = vmatprep.subr.mxu0 0.0
  %296 = vmatpush1.msra.mxu0 0.0
  %297 = vmatprep.subr.mxu0 0.0
  %298 = vmatpush1.msra.mxu0 0.0
  %299 = vmatprep.subr.mxu0 0.0
  %300 = vmatpush1.msra.mxu0 0.0
  %301 = vmatprep.subr.mxu0 0.0
  %302 = vmatpush1.msra.mxu0 0.0
  %303 = vmatprep.subr.mxu0 0.0
  %304 = vmatpush1.msra.mxu0 0.0
  %305 = vmatprep.subr.mxu0 0.0
  %306 = vmatpush1.msra.mxu0 0.0
  %307 = vmatprep.subr.mxu0 0.0
  %308 = vmatpush1.msra.mxu0 0.0
  %309 = vmatprep.subr.mxu0 0.0
  %310 = vmatpush1.msra.mxu0 0.0
  %311 = vmatprep.subr.mxu0 0.0
  %312 = vmatpush1.msra.mxu0 0.0
  %313 = vmatprep.subr.mxu0 0.0
  %314 = vmatpush1.msra.mxu0 0.0
  %315 = vmatprep.subr.mxu0 0.0
  %316 = vmatpush1.msra.mxu0 0.0
  %317 = vmatprep.subr.mxu0 0.0
  %318 = vmatpush1.msra.mxu0 0.0
  %319 = vmatprep.subr.mxu0 0.0
  %320 = vmatpush1.msra.mxu0 0.0
  %321 = vmatprep.subr.mxu0 0.0
  %322 = vmatpush1.msra.mxu0 0.0
  %323 = vmatprep.subr.mxu0 0.0
  %324 = vmatpush1.msra.mxu0 0.0
  %325 = vmatprep.subr.mxu0 0.0
  %326 = vmatpush1.msra.mxu0 0.0
  %327 = vmatprep.subr.mxu0 0.0
  %328 = vmatpush1.msra.mxu0 0.0
  %329 = vmatprep.subr.mxu0 0.0
  %330 = vmatpush1.msra.mxu0 0.0
  %331 = vmatprep.subr.mxu0 0.0
  %332 = vmatpush1.msra.mxu0 0.0
  %333 = vmatprep.subr.mxu0 0.0
  %334 = vmatpush1.msra.mxu0 0.0
  %335 = vmatprep.subr.mxu0 0.0
  %336 = vmatpush1.msra.mxu0 0.0
  %337 = vmatprep.subr.mxu0 0.0
  %338 = vmatpush1.msra.mxu0 0.0
  %339 = vmatprep.subr.mxu0 0.0
  %340 = vmatpush1.msra.mxu0 0.0
  %341 = vmatprep.mubr.f32.mxu0 0.0
  %342 = vmatmul.mubr.f32.gmra.mrb[0].mxu0 %v275
  %v343 = vpop.f32.mrb[0].mxu0
  %v344 = vadd.f32 %v272, %v343
  %v345 = vpop.f32.mrb[0].mxu0
  %346 = vdwg.mxu0
  %v347 = vxor.u32 %v344, 2147483648
  %v348 = vmul.f32 %v347, 1.442695
  %v349 = vpow.pop %v348
  %v350 = vadd.f32 %v349, 1.0
  %v351 = vrcp.pop %v350
  %v352 = vmul.f32 1.0, %v351
  %v353 = vtanh.pop %v344
  %v354 = vmul.f32 %v352, 0.0
  %356 = vrot.lane.b32.xlu0 %v353, 64
  %v357 = vpop.permute.xlu0 %356
  %v359 = vmul.f32 %v352, %v357
  %361 = vrot.lane.b32.xlu0 %v359, 32
  %v362 = vpop.permute.xlu0 %361
  %v364 = vadd.f32 %v354, %v362
  %v365 = vtanh.pop %v364
  %367 = vrot.lane.b32.xlu0 %v365, 64
  %v368 = vpop.permute.xlu0 %367
  %v370 = vmul.f32 %v352, %v368
  %372 = vrot.lane.b32.xlu0 %v370, 64
  %v373 = vpop.permute.xlu0 %372
  %v375 = vsel %vm59, %v38, %v373
  %v377 = vsel %vm67, %v375, 0
  %379 = vmatprep.subr.mxu0 0.0
  %380 = vmatpush1.msra.mxu0 %v50
  %381 = vmatprep.subr.mxu0 0.0
  %382 = vmatpush1.msra.mxu0 %v51
  %383 = vmatprep.subr.mxu0 0.0
  %384 = vmatpush1.msra.mxu0 %v52
  %385 = vmatprep.subr.mxu0 0.0
  %386 = vmatpush1.msra.mxu0 %v53
  %387 = vmatprep.subr.mxu0 0.0
  %388 = vmatpush1.msra.mxu0 %v54
  %389 = vmatprep.subr.mxu0 0.0
  %390 = vmatpush1.msra.mxu0 %v55
  %391 = vmatprep.subr.mxu0 0.0
  %392 = vmatpush1.msra.mxu0 %v56
  %393 = vmatprep.subr.mxu0 0.0
  %394 = vmatpush1.msra.mxu0 %v57
  %395 = vmatprep.subr.mxu0 0.0
  %396 = vmatpush1.msra.mxu0 0.0
  %397 = vmatprep.subr.mxu0 0.0
  %398 = vmatpush1.msra.mxu0 0.0
  %399 = vmatprep.subr.mxu0 0.0
  %400 = vmatpush1.msra.mxu0 0.0
  %401 = vmatprep.subr.mxu0 0.0
  %402 = vmatpush1.msra.mxu0 0.0
  %403 = vmatprep.subr.mxu0 0.0
  %404 = vmatpush1.msra.mxu0 0.0
  %405 = vmatprep.subr.mxu0 0.0
  %406 = vmatpush1.msra.mxu0 0.0
  %407 = vmatprep.subr.mxu0 0.0
  %408 = vmatpush1.msra.mxu0 0.0
  %409 = vmatprep.subr.mxu0 0.0
  %410 = vmatpush1.msra.mxu0 0.0
  %411 = vmatprep.subr.mxu0 0.0
  %412 = vmatpush1.msra.mxu0 0.0
  %413 = vmatprep.subr.mxu0 0.0
  %414 = vmatpush1.msra.mxu0 0.0
  %415 = vmatprep.subr.mxu0 0.0
  %416 = vmatpush1.msra.mxu0 0.0
  %417 = vmatprep.subr.mxu0 0.0
  %418 = vmatpush1.msra.mxu0 0.0
  %419 = vmatprep.subr.mxu0 0.0
  %420 = vmatpush1.msra.mxu0 0.0
  %421 = vmatprep.subr.mxu0 0.0
  %422 = vmatpush1.msra.mxu0 0.0
  %423 = vmatprep.subr.mxu0 0.0
  %424 = vmatpush1.msra.mxu0 0.0
  %425 = vmatprep.subr.mxu0 0.0
  %426 = vmatpush1.msra.mxu0 0.0
  %427 = vmatprep.subr.mxu0 0.0
  %428 = vmatpush1.msra.mxu0 0.0
  %429 = vmatprep.subr.mxu0 0.0
  %430 = vmatpush1.msra.mxu0 0.0
  %431 = vmatprep.subr.mxu0 0.0
  %432 = vmatpush1.msra.mxu0 0.0
  %433 = vmatprep.subr.mxu0 0.0
  %434 = vmatpush1.msra.mxu0 0.0
  %435 = vmatprep.subr.mxu0 0.0
  %436 = vmatpush1.msra.mxu0 0.0
  %437 = vmatprep.subr.mxu0 0.0
  %438 = vmatpush1.msra.mxu0 0.0
  %439 = vmatprep.subr.mxu0 0.0
  %440 = vmatpush1.msra.mxu0 0.0
  %441 = vmatprep.subr.mxu0 0.0
  %442 = vmatpush1.msra.mxu0 0.0
  %443 = vmatprep.mubr.f32.mxu0 0.0
  %444 = vmatmul.mubr.f32.gmra.mrb[0].mxu0 %v377
  %v445 = vpop.f32.mrb[0].mxu0
  %v446 = vadd.f32 %v272, %v445
  %v447 = vpop.f32.mrb[0].mxu0
  %448 = vdwg.mxu0
  %v449 = vxor.u32 %v446, 2147483648
  %v450 = vmul.f32 %v449, 1.442695
  %v451 = vpow.pop %v450
  %v452 = vadd.f32 %v451, 1.0
  %v453 = vrcp.pop %v452
  %v454 = vmul.f32 1.0, %v453
  %v455 = vtanh.pop %v446
  %v456 = vmul.f32 %v454, %v364
  %458 = vrot.lane.b32.xlu0 %v455, 64
  %v459 = vpop.permute.xlu0 %458
  %v461 = vmul.f32 %v454, %v459
  %463 = vrot.lane.b32.xlu0 %v461, 32
  %v464 = vpop.permute.xlu0 %463
  %v466 = vadd.f32 %v456, %v464
  %v467 = vtanh.pop %v466
  %469 = vrot.lane.b32.xlu0 %v467, 64
  %v470 = vpop.permute.xlu0 %469
  %v472 = vmul.f32 %v454, %v470
  %473 = vrot.lane.b32.xlu0 %v164, 32
  %v474 = vpop.permute.xlu0 %473
  %477 = vrot.lane.b32.xlu0 %v472, 64
  %v478 = vpop.permute.xlu0 %477
  %v480 = vsel %vm59, %v474, %v478
  %482 = vrot.lane.b32.xlu0 %v266, 32
  %v483 = vpop.permute.xlu0 %482
  %v485 = vsel %vm59, %v483, %v373
  %v486 = vld [vmem:[%s5] sm:$0xff]
  %v487 = vld [vmem:[%s5 + $0x8] sm:$0xff]
  %v488 = vld [vmem:[%s5 + $0x10] sm:$0xff]
  %v489 = vld [vmem:[%s5 + $0x18] sm:$0xff]
  %v490 = vld [vmem:[%s5 + $0x20] sm:$0xff]
  %v491 = vld [vmem:[%s5 + $0x28] sm:$0xff]
  %v492 = vld [vmem:[%s5 + $0x30] sm:$0xff]
  %v493 = vld [vmem:[%s5 + $0x38] sm:$0xff]
  %v494 = vld [vmem:[%s5 + $0x40] sm:$0xff]
  %v495 = vld [vmem:[%s5 + $0x48] sm:$0xff]
  %v496 = vld [vmem:[%s5 + $0x50] sm:$0xff]
  %v497 = vld [vmem:[%s5 + $0x58] sm:$0xff]
  %v498 = vld [vmem:[%s6] sm:$0x1]
  %v499 = vld [vmem:[%s7] sm:$0xff]
  %v500 = vld [vmem:[%s7 + $0x8] sm:$0xff]
  %v501 = vld [vmem:[%s7 + $0x10] sm:$0xff]
  %v502 = vld [vmem:[%s7 + $0x18] sm:$0xff]
  %v503 = vld [vmem:[%s7 + $0x20] sm:$0xff]
  %v504 = vld [vmem:[%s7 + $0x28] sm:$0xff]
  %v505 = vld [vmem:[%s7 + $0x30] sm:$0xff]
  %v506 = vld [vmem:[%s7 + $0x38] sm:$0xff]
  %v507 = vld [vmem:[%s7 + $0x40] sm:$0xff]
  %v508 = vld [vmem:[%s7 + $0x48] sm:$0xff]
  %v509 = vld [vmem:[%s7 + $0x50] sm:$0xff]
  %v510 = vld [vmem:[%s7 + $0x58] sm:$0xff]
  %v511 = vld [vmem:[%s8] sm:$0x1]
  %v512 = vsel %vm67, %v480, 0.0
  %v514 = vlaneseq
  %v515 = vshrl.u32 %v514, 7
  %v516 = vsub.s32 0, %v515
  %v517 = vrot.slane %v498, %v516
  %vm519 = vcmask 785408
  %v521 = vsel %vm519, %v512, 0
  %523 = vmatprep.subr.mxu0 0.0
  %524 = vmatpush1.msra.mxu0 %v486
  %525 = vmatprep.subr.mxu0 0.0
  %526 = vmatpush1.msra.mxu0 %v487
  %527 = vmatprep.subr.mxu0 0.0
  %528 = vmatpush1.msra.mxu0 %v488
  %529 = vmatprep.subr.mxu0 0.0
  %530 = vmatpush1.msra.mxu0 %v489
  %531 = vmatprep.subr.mxu0 0.0
  %532 = vmatpush1.msra.mxu0 %v490
  %533 = vmatprep.subr.mxu0 0.0
  %534 = vmatpush1.msra.mxu0 %v491
  %535 = vmatprep.subr.mxu0 0.0
  %536 = vmatpush1.msra.mxu0 %v492
  %537 = vmatprep.subr.mxu0 0.0
  %538 = vmatpush1.msra.mxu0 %v493
  %539 = vmatprep.subr.mxu0 0.0
  %540 = vmatpush1.msra.mxu0 %v494
  %541 = vmatprep.subr.mxu0 0.0
  %542 = vmatpush1.msra.mxu0 %v495
  %543 = vmatprep.subr.mxu0 0.0
  %544 = vmatpush1.msra.mxu0 %v496
  %545 = vmatprep.subr.mxu0 0.0
  %546 = vmatpush1.msra.mxu0 %v497
  %547 = vmatprep.subr.mxu0 0.0
  %548 = vmatpush1.msra.mxu0 0.0
  %549 = vmatprep.subr.mxu0 0.0
  %550 = vmatpush1.msra.mxu0 0.0
  %551 = vmatprep.subr.mxu0 0.0
  %552 = vmatpush1.msra.mxu0 0.0
  %553 = vmatprep.subr.mxu0 0.0
  %554 = vmatpush1.msra.mxu0 0.0
  %555 = vmatprep.subr.mxu0 0.0
  %556 = vmatpush1.msra.mxu0 0.0
  %557 = vmatprep.subr.mxu0 0.0
  %558 = vmatpush1.msra.mxu0 0.0
  %559 = vmatprep.subr.mxu0 0.0
  %560 = vmatpush1.msra.mxu0 0.0
  %561 = vmatprep.subr.mxu0 0.0
  %562 = vmatpush1.msra.mxu0 0.0
  %563 = vmatprep.subr.mxu0 0.0
  %564 = vmatpush1.msra.mxu0 0.0
  %565 = vmatprep.subr.mxu0 0.0
  %566 = vmatpush1.msra.mxu0 0.0
  %567 = vmatprep.subr.mxu0 0.0
  %568 = vmatpush1.msra.mxu0 0.0
  %569 = vmatprep.subr.mxu0 0.0
  %570 = vmatpush1.msra.mxu0 0.0
  %571 = vmatprep.subr.mxu0 0.0
  %572 = vmatpush1.msra.mxu0 0.0
  %573 = vmatprep.subr.mxu0 0.0
  %574 = vmatpush1.msra.mxu0 0.0
  %575 = vmatprep.subr.mxu0 0.0
  %576 = vmatpush1.msra.mxu0 0.0
  %577 = vmatprep.subr.mxu0 0.0
  %578 = vmatpush1.msra.mxu0 0.0
  %579 = vmatprep.subr.mxu0 0.0
  %580 = vmatpush1.msra.mxu0 0.0
  %581 = vmatprep.subr.mxu0 0.0
  %582 = vmatpush1.msra.mxu0 0.0
  %583 = vmatprep.subr.mxu0 0.0
  %584 = vmatpush1.msra.mxu0 0.0
  %585 = vmatprep.subr.mxu0 0.0
  %586 = vmatpush1.msra.mxu0 0.0
  %587 = vmatprep.mubr.f32.mxu0 0.0
  %588 = vmatmul.mubr.f32.gmra.mrb[0].mxu0 %v521
  %v589 = vpop.f32.mrb[0].mxu0
  %v590 = vadd.f32 %v517, %v589
  %v591 = vpop.f32.mrb[0].mxu0
  %592 = vdwg.mxu0
  %v593 = vxor.u32 %v590, 2147483648
  %v594 = vmul.f32 %v593, 1.442695
  %v595 = vpow.pop %v594
  %v596 = vadd.f32 %v595, 1.0
  %v597 = vrcp.pop %v596
  %v598 = vmul.f32 1.0, %v597
  %v599 = vtanh.pop %v590
  %v600 = vmul.f32 %v598, 0.0
  %602 = vrot.lane.b32.xlu0 %v599, 64
  %v603 = vpop.permute.xlu0 %602
  %v605 = vmul.f32 %v598, %v603
  %607 = vrot.lane.b32.xlu0 %v605, 32
  %v608 = vpop.permute.xlu0 %607
  %v610 = vadd.f32 %v600, %v608
  %v611 = vtanh.pop %v610
  %613 = vrot.lane.b32.xlu0 %v611, 64
  %v614 = vpop.permute.xlu0 %613
  %v616 = vmul.f32 %v598, %v614
  %618 = vrot.lane.b32.xlu0 %v616, 96
  %v619 = vpop.permute.xlu0 %618
  %v621 = vsel %vm67, %v485, %v619
  %v623 = vsel %vm519, %v621, 0
  %625 = vmatprep.subr.mxu0 0.0
  %626 = vmatpush1.msra.mxu0 %v486
  %627 = vmatprep.subr.mxu0 0.0
  %628 = vmatpush1.msra.mxu0 %v487
  %629 = vmatprep.subr.mxu0 0.0
  %630 = vmatpush1.msra.mxu0 %v488
  %631 = vmatprep.subr.mxu0 0.0
  %632 = vmatpush1.msra.mxu0 %v489
  %633 = vmatprep.subr.mxu0 0.0
  %634 = vmatpush1.msra.mxu0 %v490
  %635 = vmatprep.subr.mxu0 0.0
  %636 = vmatpush1.msra.mxu0 %v491
  %637 = vmatprep.subr.mxu0 0.0
  %638 = vmatpush1.msra.mxu0 %v492
  %639 = vmatprep.subr.mxu0 0.0
  %640 = vmatpush1.msra.mxu0 %v493
  %641 = vmatprep.subr.mxu0 0.0
  %642 = vmatpush1.msra.mxu0 %v494
  %643 = vmatprep.subr.mxu0 0.0
  %644 = vmatpush1.msra.mxu0 %v495
  %645 = vmatprep.subr.mxu0 0.0
  %646 = vmatpush1.msra.mxu0 %v496
  %647 = vmatprep.subr.mxu0 0.0
  %648 = vmatpush1.msra.mxu0 %v497
  %649 = vmatprep.subr.mxu0 0.0
  %650 = vmatpush1.msra.mxu0 0.0
  %651 = vmatprep.subr.mxu0 0.0
  %652 = vmatpush1.msra.mxu0 0.0
  %653 = vmatprep.subr.mxu0 0.0
  %654 = vmatpush1.msra.mxu0 0.0
  %655 = vmatprep.subr.mxu0 0.0
  %656 = vmatpush1.msra.mxu0 0.0
  %657 = vmatprep.subr.mxu0 0.0
  %658 = vmatpush1.msra.mxu0 0.0
  %659 = vmatprep.subr.mxu0 0.0
  %660 = vmatpush1.msra.mxu0 0.0
  %661 = vmatprep.subr.mxu0 0.0
  %662 = vmatpush1.msra.mxu0 0.0
  %663 = vmatprep.subr.mxu0 0.0
  %664 = vmatpush1.msra.mxu0 0.0
  %665 = vmatprep.subr.mxu0 0.0
  %666 = vmatpush1.msra.mxu0 0.0
  %667 = vmatprep.subr.mxu0 0.0
  %668 = vmatpush1.msra.mxu0 0.0
  %669 = vmatprep.subr.mxu0 0.0
  %670 = vmatpush1.msra.mxu0 0.0
  %671 = vmatprep.subr.mxu0 0.0
  %672 = vmatpush1.msra.mxu0 0.0
  %673 = vmatprep.subr.mxu0 0.0
  %674 = vmatpush1.msra.mxu0 0.0
  %675 = vmatprep.subr.mxu0 0.0
  %676 = vmatpush1.msra.mxu0 0.0
  %677 = vmatprep.subr.mxu0 0.0
  %678 = vmatpush1.msra.mxu0 0.0
  %679 = vmatprep.subr.mxu0 0.0
  %680 = vmatpush1.msra.mxu0 0.0
  %681 = vmatprep.subr.mxu0 0.0
  %682 = vmatpush1.msra.mxu0 0.0
  %683 = vmatprep.subr.mxu0 0.0
  %684 = vmatpush1.msra.mxu0 0.0
  %685 = vmatprep.subr.mxu0 0.0
  %686 = vmatpush1.msra.mxu0 0.0
  %687 = vmatprep.subr.mxu0 0.0
  %688 = vmatpush1.msra.mxu0 0.0
  %689 = vmatprep.mubr.f32.mxu0 0.0
  %690 = vmatmul.mubr.f32.gmra.mrb[0].mxu0 %v623
  %v691 = vpop.f32.mrb[0].mxu0
  %v692 = vadd.f32 %v517, %v691
  %v693 = vpop.f32.mrb[0].mxu0
  %694 = vdwg.mxu0
  %v695 = vxor.u32 %v692, 2147483648
  %v696 = vmul.f32 %v695, 1.442695
  %v697 = vpow.pop %v696
  %v698 = vadd.f32 %v697, 1.0
  %v699 = vrcp.pop %v698
  %v700 = vmul.f32 1.0, %v699
  %v701 = vtanh.pop %v692
  %v702 = vmul.f32 %v700, %v610
  %704 = vrot.lane.b32.xlu0 %v701, 64
  %v705 = vpop.permute.xlu0 %704
  %v707 = vmul.f32 %v700, %v705
  %709 = vrot.lane.b32.xlu0 %v707, 32
  %v710 = vpop.permute.xlu0 %709
  %v712 = vadd.f32 %v702, %v710
  %v713 = vtanh.pop %v712
  %715 = vrot.lane.b32.xlu0 %v713, 64
  %v716 = vpop.permute.xlu0 %715
  %v718 = vmul.f32 %v700, %v716
  %v719 = vsel %vm67, %v485, 0.0
  %v721 = vlaneseq
  %v722 = vshrl.u32 %v721, 7
  %v723 = vsub.s32 0, %v722
  %v724 = vrot.slane %v511, %v723
  %v727 = vsel %vm519, %v719, 0
  %729 = vmatprep.subr.mxu0 0.0
  %730 = vmatpush1.msra.mxu0 %v499
  %731 = vmatprep.subr.mxu0 0.0
  %732 = vmatpush1.msra.mxu0 %v500
  %733 = vmatprep.subr.mxu0 0.0
  %734 = vmatpush1.msra.mxu0 %v501
  %735 = vmatprep.subr.mxu0 0.0
  %736 = vmatpush1.msra.mxu0 %v502
  %737 = vmatprep.subr.mxu0 0.0
  %738 = vmatpush1.msra.mxu0 %v503
  %739 = vmatprep.subr.mxu0 0.0
  %740 = vmatpush1.msra.mxu0 %v504
  %741 = vmatprep.subr.mxu0 0.0
  %742 = vmatpush1.msra.mxu0 %v505
  %743 = vmatprep.subr.mxu0 0.0
  %744 = vmatpush1.msra.mxu0 %v506
  %745 = vmatprep.subr.mxu0 0.0
  %746 = vmatpush1.msra.mxu0 %v507
  %747 = vmatprep.subr.mxu0 0.0
  %748 = vmatpush1.msra.mxu0 %v508
  %749 = vmatprep.subr.mxu0 0.0
  %750 = vmatpush1.msra.mxu0 %v509
  %751 = vmatprep.subr.mxu0 0.0
  %752 = vmatpush1.msra.mxu0 %v510
  %753 = vmatprep.subr.mxu0 0.0
  %754 = vmatpush1.msra.mxu0 0.0
  %755 = vmatprep.subr.mxu0 0.0
  %756 = vmatpush1.msra.mxu0 0.0
  %757 = vmatprep.subr.mxu0 0.0
  %758 = vmatpush1.msra.mxu0 0.0
  %759 = vmatprep.subr.mxu0 0.0
  %760 = vmatpush1.msra.mxu0 0.0
  %761 = vmatprep.subr.mxu0 0.0
  %762 = vmatpush1.msra.mxu0 0.0
  %763 = vmatprep.subr.mxu0 0.0
  %764 = vmatpush1.msra.mxu0 0.0
  %765 = vmatprep.subr.mxu0 0.0
  %766 = vmatpush1.msra.mxu0 0.0
  %767 = vmatprep.subr.mxu0 0.0
  %768 = vmatpush1.msra.mxu0 0.0
  %769 = vmatprep.subr.mxu0 0.0
  %770 = vmatpush1.msra.mxu0 0.0
  %771 = vmatprep.subr.mxu0 0.0
  %772 = vmatpush1.msra.mxu0 0.0
  %773 = vmatprep.subr.mxu0 0.0
  %774 = vmatpush1.msra.mxu0 0.0
  %775 = vmatprep.subr.mxu0 0.0
  %776 = vmatpush1.msra.mxu0 0.0
  %777 = vmatprep.subr.mxu0 0.0
  %778 = vmatpush1.msra.mxu0 0.0
  %779 = vmatprep.subr.mxu0 0.0
  %780 = vmatpush1.msra.mxu0 0.0
  %781 = vmatprep.subr.mxu0 0.0
  %782 = vmatpush1.msra.mxu0 0.0
  %783 = vmatprep.subr.mxu0 0.0
  %784 = vmatpush1.msra.mxu0 0.0
  %785 = vmatprep.subr.mxu0 0.0
  %786 = vmatpush1.msra.mxu0 0.0
  %787 = vmatprep.subr.mxu0 0.0
  %788 = vmatpush1.msra.mxu0 0.0
  %789 = vmatprep.subr.mxu0 0.0
  %790 = vmatpush1.msra.mxu0 0.0
  %791 = vmatprep.subr.mxu0 0.0
  %792 = vmatpush1.msra.mxu0 0.0
  %793 = vmatprep.mubr.f32.mxu0 0.0
  %794 = vmatmul.mubr.f32.gmra.mrb[0].mxu0 %v727
  %v795 = vpop.f32.mrb[0].mxu0
  %v796 = vadd.f32 %v724, %v795
  %v797 = vpop.f32.mrb[0].mxu0
  %798 = vdwg.mxu0
  %v799 = vxor.u32 %v796, 2147483648
  %v800 = vmul.f32 %v799, 1.442695
  %v801 = vpow.pop %v800
  %v802 = vadd.f32 %v801, 1.0
  %v803 = vrcp.pop %v802
  %v804 = vmul.f32 1.0, %v803
  %v805 = vtanh.pop %v796
  %v806 = vmul.f32 %v804, 0.0
  %808 = vrot.lane.b32.xlu0 %v805, 64
  %v809 = vpop.permute.xlu0 %808
  %v811 = vmul.f32 %v804, %v809
  %813 = vrot.lane.b32.xlu0 %v811, 32
  %v814 = vpop.permute.xlu0 %813
  %v816 = vadd.f32 %v806, %v814
  %v817 = vtanh.pop %v816
  %819 = vrot.lane.b32.xlu0 %v817, 64
  %v820 = vpop.permute.xlu0 %819
  %v822 = vmul.f32 %v804, %v820
  %824 = vrot.lane.b32.xlu0 %v822, 96
  %v825 = vpop.permute.xlu0 %824
  %v827 = vsel %vm67, %v480, %v825
  %v829 = vsel %vm519, %v827, 0
  %831 = vmatprep.subr.mxu0 0.0
  %832 = vmatpush1.msra.mxu0 %v499
  %833 = vmatprep.subr.mxu0 0.0
  %834 = vmatpush1.msra.mxu0 %v500
  %835 = vmatprep.subr.mxu0 0.0
  %836 = vmatpush1.msra.mxu0 %v501
  %837 = vmatprep.subr.mxu0 0.0
  %838 = vmatpush1.msra.mxu0 %v502
  %839 = vmatprep.subr.mxu0 0.0
  %840 = vmatpush1.msra.mxu0 %v503
  %841 = vmatprep.subr.mxu0 0.0
  %842 = vmatpush1.msra.mxu0 %v504
  %843 = vmatprep.subr.mxu0 0.0
  %844 = vmatpush1.msra.mxu0 %v505
  %845 = vmatprep.subr.mxu0 0.0
  %846 = vmatpush1.msra.mxu0 %v506
  %847 = vmatprep.subr.mxu0 0.0
  %848 = vmatpush1.msra.mxu0 %v507
  %849 = vmatprep.subr.mxu0 0.0
  %850 = vmatpush1.msra.mxu0 %v508
  %851 = vmatprep.subr.mxu0 0.0
  %852 = vmatpush1.msra.mxu0 %v509
  %853 = vmatprep.subr.mxu0 0.0
  %854 = vmatpush1.msra.mxu0 %v510
  %855 = vmatprep.subr.mxu0 0.0
  %856 = vmatpush1.msra.mxu0 0.0
  %857 = vmatprep.subr.mxu0 0.0
  %858 = vmatpush1.msra.mxu0 0.0
  %859 = vmatprep.subr.mxu0 0.0
  %860 = vmatpush1.msra.mxu0 0.0
  %861 = vmatprep.subr.mxu0 0.0
  %862 = vmatpush1.msra.mxu0 0.0
  %863 = vmatprep.subr.mxu0 0.0
  %864 = vmatpush1.msra.mxu0 0.0
  %865 = vmatprep.subr.mxu0 0.0
  %866 = vmatpush1.msra.mxu0 0.0
  %867 = vmatprep.subr.mxu0 0.0
  %868 = vmatpush1.msra.mxu0 0.0
  %869 = vmatprep.subr.mxu0 0.0
  %870 = vmatpush1.msra.mxu0 0.0
  %871 = vmatprep.subr.mxu0 0.0
  %872 = vmatpush1.msra.mxu0 0.0
  %873 = vmatprep.subr.mxu0 0.0
  %874 = vmatpush1.msra.mxu0 0.0
  %875 = vmatprep.subr.mxu0 0.0
  %876 = vmatpush1.msra.mxu0 0.0
  %877 = vmatprep.subr.mxu0 0.0
  %878 = vmatpush1.msra.mxu0 0.0
  %879 = vmatprep.subr.mxu0 0.0
  %880 = vmatpush1.msra.mxu0 0.0
  %881 = vmatprep.subr.mxu0 0.0
  %882 = vmatpush1.msra.mxu0 0.0
  %883 = vmatprep.subr.mxu0 0.0
  %884 = vmatpush1.msra.mxu0 0.0
  %885 = vmatprep.subr.mxu0 0.0
  %886 = vmatpush1.msra.mxu0 0.0
  %887 = vmatprep.subr.mxu0 0.0
  %888 = vmatpush1.msra.mxu0 0.0
  %889 = vmatprep.subr.mxu0 0.0
  %890 = vmatpush1.msra.mxu0 0.0
  %891 = vmatprep.subr.mxu0 0.0
  %892 = vmatpush1.msra.mxu0 0.0
  %893 = vmatprep.subr.mxu0 0.0
  %894 = vmatpush1.msra.mxu0 0.0
  %895 = vmatprep.mubr.f32.mxu0 0.0
  %896 = vmatmul.mubr.f32.gmra.mrb[0].mxu0 %v829
  %v897 = vpop.f32.mrb[0].mxu0
  %v898 = vadd.f32 %v724, %v897
  %v899 = vpop.f32.mrb[0].mxu0
  %900 = vdwg.mxu0
  %v901 = vxor.u32 %v898, 2147483648
  %v902 = vmul.f32 %v901, 1.442695
  %v903 = vpow.pop %v902
  %v904 = vadd.f32 %v903, 1.0
  %v905 = vrcp.pop %v904
  %v906 = vmul.f32 1.0, %v905
  %v907 = vtanh.pop %v898
  %v908 = vmul.f32 %v906, %v816
  %910 = vrot.lane.b32.xlu0 %v907, 64
  %v911 = vpop.permute.xlu0 %910
  %v913 = vmul.f32 %v906, %v911
  %915 = vrot.lane.b32.xlu0 %v913, 32
  %v916 = vpop.permute.xlu0 %915
  %v918 = vadd.f32 %v908, %v916
  %v919 = vtanh.pop %v918
  %921 = vrot.lane.b32.xlu0 %v919, 64
  %v922 = vpop.permute.xlu0 %921
  %v924 = vmul.f32 %v906, %v922
  %925 = vrot.lane.b32.xlu0 %v616, 32
  %v926 = vpop.permute.xlu0 %925
  %929 = vrot.lane.b32.xlu0 %v924, 64
  %v930 = vpop.permute.xlu0 %929
  %v932 = vsel %vm59, %v926, %v930
  %934 = vrot.lane.b32.xlu0 %v718, 32
  %v935 = vpop.permute.xlu0 %934
  %937 = vrot.lane.b32.xlu0 %v822, 64
  %v938 = vpop.permute.xlu0 %937
  %v940 = vsel %vm59, %v935, %v938
  %v941 = vld [vmem:[%s9] sm:$0x1]
  %v942 = vld [vmem:[%s10] sm:$0x1]
  %944 = vrot.lane.b32.xlu0 %v932, 96
  %v945 = vpop.permute.xlu0 %944
  %v947 = vadd.f32 %v932, %v945
  %v948 = vsel %vm59, %v947, 0.0
  %949 = vadd.xlane.f32.xlu0 %v948
  %v950 = vpop.xlane.xlu0 %949
  %v951 = vrcp.pop 32.0
  %v952 = vmul.f32 %v950, %v951
  %v953 = vsub.f32 %v947, %v952
  %v954 = vmul.f32 %v953, %v953
  %v955 = vsel %vm59, %v954, 0.0
  %956 = vadd.xlane.f32.xlu0 %v955
  %v957 = vpop.xlane.xlu0 %956
  %v958 = vmul.f32 %v957, %v951
  %v959 = vadd.f32 %v958, 1e-05
  %v960 = vrsqrt.pop %v959
  %v961 = vmul.f32 %v953, %v960
  %v963 = vlaneseq
  %v964 = vshrl.u32 %v963, 7
  %v965 = vsub.s32 0, %v964
  %v966 = vrot.slane %v941, %v965
  %v968 = vmul.f32 %v961, %v966
  %v970 = vlaneseq
  %v971 = vshrl.u32 %v970, 7
  %v972 = vsub.s32 0, %v971
  %v973 = vrot.slane %v942, %v972
  %v975 = vadd.f32 %v968, %v973
  %v976 = vadd.f32 %v38, %v975
  %977 = vst.msk [vmem:[%s11] sm:$0xff] %vm59, %v976
  %979 = vrot.lane.b32.xlu0 %v940, 96
  %v980 = vpop.permute.xlu0 %979
  %v982 = vadd.f32 %v940, %v980
  %v983 = vsel %vm59, %v982, 0.0
  %984 = vadd.xlane.f32.xlu0 %v983
  %v985 = vpop.xlane.xlu0 %984
  %v986 = vmul.f32 %v985, %v951
  %v987 = vsub.f32 %v982, %v986
  %v988 = vmul.f32 %v987, %v987
  %v989 = vsel %vm59, %v988, 0.0
  %990 = vadd.xlane.f32.xlu0 %v989
  %v991 = vpop.xlane.xlu0 %990
  %v992 = vmul.f32 %v991, %v951
  %v993 = vadd.f32 %v992, 1e-05
  %v994 = vrsqrt.pop %v993
  %v995 = vmul.f32 %v987, %v994
  %v996 = vmul.f32 %v995, %v966
  %v997 = vadd.f32 %v996, %v973
  %v998 = vadd.f32 %v40, %v997
  %s999 = scalar_lea.vmem %s11, 8
  %1000 = vst.msk [vmem:[%s999] sm:$0xff] %vm59, %v998
  // Predicated region
  $region46: #{model_forward.6} parent=0 // pred_check
    _
  $region47: #{model_forward.6} parent=0 // pred_check_branch
    %1002 = sbr.rel (0) target = $region49
  $region48: #{model_forward.6} parent=0 // pred_region
    _
  $region49: #{model_forward.6} parent=0 // pred_fallthru
    _
  // Predicated region
  $region50: #{model_forward.6} parent=0 // pred_check
    _
  $region51: #{model_forward.6} parent=0 // pred_check_branch
    %1004 = sbr.rel (0) target = $region53
  $region52: #{model_forward.6} parent=0 // pred_region
    _
  $region53: #{model_forward.6} parent=0 // pred_fallthru
    _

// kernel: model_forward.4
$region0: #{model_forward.4}
  #allocation0 [shape = 'u32[]', space=smem, size = 0x4, offset = 0x4, fixed_abs, tag = 'smem constant byte address 0x4 - core index']
  #allocation1 [shape = 'u32[144,128]{1,0:T(1,128)}', space=vmem, size = 0x12000, scoped, tag = 'internal scratch']
  %s0 = inlined_call_operand.vmem [shape: f32[2,8,32], index: 0, kind: input, shape index: {}]
  %s1 = inlined_call_operand.vmem [shape: f32[64,128], index: 1, kind: input, shape index: {}]
  %s2 = inlined_call_operand.vmem [shape: f32[1,128], index: 2, kind: input, shape index: {}]
  %s3 = inlined_call_operand.hbm [shape: f32[64,128], index: 3, kind: input, shape index: {}]
  %s4 = inlined_call_operand.vmem [shape: f32[1,128], index: 4, kind: input, shape index: {}]
  %s5 = inlined_call_operand.vmem [shape: f32[96,128], index: 5, kind: input, shape index: {}]
  %s6 = inlined_call_operand.hbm [shape: f32[1,128], index: 6, kind: input, shape index: {}]
  %s7 = inlined_call_operand.vmem [shape: f32[96,128], index: 7, kind: input, shape index: {}]
  %s8 = inlined_call_operand.hbm [shape: f32[1,128], index: 8, kind: input, shape index: {}]
  %s9 = inlined_call_operand.vmem [shape: f32[1,32], index: 9, kind: input, shape index: {}]
  %s10 = inlined_call_operand.vmem [shape: f32[1,32], index: 10, kind: input, shape index: {}]
  %s11 = inlined_call_operand.vmem [shape: f32[2,8,32], index: 11, kind: output, shape index: {}]
  %s12 = sld [smem:[#allocation0]]
  $region66: #{model_forward.4} parent=0
    _
  %s14 = ssub.s32 1, %s12
  %s15 = scalar_select 0, %s14, %s12
  $region1: #{model_forward.4} parent=0
    #allocation2 [shape = 'u8[32768]{0}', space=vmem, size = 0x8000, scoped, tag = 'input window, operand 3, single buffered']
    #allocation3 [shape = 's32[1]{0}', space=sflag, size = 0x4, scoped, tag = 'scoped memory for model_forward.4']
    #allocation4 [shape = 'u8[512]{0}', space=vmem, size = 0x400, scoped, tag = 'input window, operand 6, single buffered']
    #allocation5 [shape = 's32[1]{0}', space=sflag, size = 0x4, scoped, tag = 'scoped memory for model_forward.4']
    #allocation6 [shape = 'u8[512]{0}', space=vmem, size = 0x400, scoped, tag = 'input window, operand 8, single buffered']
    %16 = vsyncpa [#allocation3], 0
    %17 = vsyncpa [#allocation5], 0
    // Predicated region
    $region2: #{model_forward.4} parent=1 // pred_check
      _
    $region3: #{model_forward.4} parent=1 // pred_check_branch
      %19 = sbr.rel (0) target = $region5
    $region4: #{model_forward.4} parent=1 // pred_region
      _
    $region5: #{model_forward.4} parent=1 // pred_fallthru
      _
    // Predicated region
    $region6: #{model_forward.4} parent=1 // pred_check
      _
    $region7: #{model_forward.4} parent=1 // pred_check_branch
      %21 = sbr.rel (0) target = $region9
    $region8: #{model_forward.4} parent=1 // pred_region
      _
    $region9: #{model_forward.4} parent=1 // pred_fallthru
      _
    // Predicated region
    $region10: #{model_forward.4} parent=1 // pred_check
      _
    $region11: #{model_forward.4} parent=1 // pred_check_branch
      %23 = sbr.rel (0) target = $region13
    $region12: #{model_forward.4} parent=1 // pred_region
      _
    $region13: #{model_forward.4} parent=1 // pred_fallthru
      _
    // Predicated region
    $region14: #{model_forward.4} parent=1 // pred_check
      _
    $region15: #{model_forward.4} parent=1 // pred_check_branch
      %25 = sbr.rel (0) target = $region17
    $region16: #{model_forward.4} parent=1 // pred_region
      %s27 = ssub.s32 1024, 1024
      %28 = vsyncadd [#allocation3], %s27
      %s29 = sshll.u32 [#allocation2], 4
      %s30 = int_to_ptr.vmem [resolvable:$true] %s29
      %35 = dma.hbm_to_vmem [thread:$0]  %s3, 1024, %s30, [#allocation3], 128, 128, 8
    $region17: #{model_forward.4} parent=1 // pred_fallthru
      _
    // Predicated region
    $region18: #{model_forward.4} parent=1 // pred_check
      _
    $region19: #{model_forward.4} parent=1 // pred_check_branch
      %37 = sbr.rel (0) target = $region21
    $region20: #{model_forward.4} parent=1 // pred_region
      _
    $region21: #{model_forward.4} parent=1 // pred_fallthru
      _
    // Predicated region
    $region22: #{model_forward.4} parent=1 // pred_check
      _
    $region23: #{model_forward.4} parent=1 // pred_check_branch
      %39 = sbr.rel (0) target = $region25
    $region24: #{model_forward.4} parent=1 // pred_region
      _
    $region25: #{model_forward.4} parent=1 // pred_fallthru
      _
    // Predicated region
    $region26: #{model_forward.4} parent=1 // pred_check
      _
    $region27: #{model_forward.4} parent=1 // pred_check_branch
      %41 = sbr.rel (0) target = $region29
    $region28: #{model_forward.4} parent=1 // pred_region
      %s43 = ssub.s32 16, 16
      %44 = vsyncadd [#allocation5], %s43
      %s46 = sshll.u32 [#allocation4], 4
      %s47 = int_to_ptr.vmem [resolvable:$true] %s46
      %49 = dma.hbm_to_vmem [thread:$0]  %s6, 16, %s47, [#allocation5]
    $region29: #{model_forward.4} parent=1 // pred_fallthru
      _
    // Predicated region
    $region30: #{model_forward.4} parent=1 // pred_check
      _
    $region31: #{model_forward.4} parent=1 // pred_check_branch
      %51 = sbr.rel (0) target = $region33
    $region32: #{model_forward.4} parent=1 // pred_region
      _
    $region33: #{model_forward.4} parent=1 // pred_fallthru
      _
    // Predicated region
    $region34: #{model_forward.4} parent=1 // pred_check
      _
    $region35: #{model_forward.4} parent=1 // pred_check_branch
      %53 = sbr.rel (0) target = $region37
    $region36: #{model_forward.4} parent=1 // pred_region
      %s55 = ssub.s32 16, 16
      %56 = vsyncadd [#allocation5], %s55
      %s58 = sshll.u32 [#allocation6], 4
      %s59 = int_to_ptr.vmem [resolvable:$true] %s58
      %61 = dma.hbm_to_vmem [thread:$0]  %s8, 16, %s59, [#allocation5]
    $region37: #{model_forward.4} parent=1 // pred_fallthru
      _
    // Predicated region
    $region38: #{model_forward.4} parent=1 // pred_check
      _
    $region39: #{model_forward.4} parent=1 // pred_check_branch
      %63 = sbr.rel (0) target = $region41
    $region40: #{model_forward.4} parent=1 // pred_region
      _
    $region41: #{model_forward.4} parent=1 // pred_fallthru
      _
    // Predicated region
    $region42: #{model_forward.4} parent=1 // pred_check
      _
    $region43: #{model_forward.4} parent=1 // pred_check_branch
      %65 = sbr.rel (0) target = $region45
    $region44: #{model_forward.4} parent=1 // pred_region
      _
    $region45: #{model_forward.4} parent=1 // pred_fallthru
      _
    // Predicated region
    $region46: #{model_forward.4} parent=1 // pred_check
      _
    $region47: #{model_forward.4} parent=1 // pred_check_branch
      %67 = sbr.rel (0) target = $region49
    $region48: #{model_forward.4} parent=1 // pred_region
      %68 = dma.done [#allocation3], 1024
    $region49: #{model_forward.4} parent=1 // pred_fallthru
      _
    // Predicated region
    $region50: #{model_forward.4} parent=1 // pred_check
      _
    $region51: #{model_forward.4} parent=1 // pred_check_branch
      %70 = sbr.rel (0) target = $region53
    $region52: #{model_forward.4} parent=1 // pred_region
      %71 = dma.done [#allocation5], 16
    $region53: #{model_forward.4} parent=1 // pred_fallthru
      _
    // Predicated region
    $region54: #{model_forward.4} parent=1 // pred_check
      _
    $region55: #{model_forward.4} parent=1 // pred_check_branch
      %73 = sbr.rel (0) target = $region57
    $region56: #{model_forward.4} parent=1 // pred_region
      %74 = dma.done [#allocation5], 16
    $region57: #{model_forward.4} parent=1 // pred_fallthru
      _
    %v75 = vld [vmem:[%s0] sm:$0xff]
    %s76 = scalar_lea.vmem %s0, 8
    %v77 = vld [vmem:[%s76] sm:$0xff]
    %v78 = vld [vmem:[%s1] sm:$0xff]
    %v79 = vld [vmem:[%s1 + $0x8] sm:$0xff]
    %v80 = vld [vmem:[%s1 + $0x10] sm:$0xff]
    %v81 = vld [vmem:[%s1 + $0x18] sm:$0xff]
    %v82 = vld [vmem:[%s1 + $0x20] sm:$0xff]
    %v83 = vld [vmem:[%s1 + $0x28] sm:$0xff]
    %v84 = vld [vmem:[%s1 + $0x30] sm:$0xff]
    %v85 = vld [vmem:[%s1 + $0x38] sm:$0xff]
    %v86 = vld [vmem:[%s2] sm:$0x1]
    %v87 = vld [vmem:[#allocation2] sm:$0xff]
    %v88 = vld [vmem:[#allocation2 + $0x8] sm:$0xff]
    %v89 = vld [vmem:[#allocation2 + $0x10] sm:$0xff]
    %v90 = vld [vmem:[#allocation2 + $0x18] sm:$0xff]
    %v91 = vld [vmem:[#allocation2 + $0x20] sm:$0xff]
    %v92 = vld [vmem:[#allocation2 + $0x28] sm:$0xff]
    %v93 = vld [vmem:[#allocation2 + $0x30] sm:$0xff]
    %v94 = vld [vmem:[#allocation2 + $0x38] sm:$0xff]
    %v95 = vld [vmem:[%s4] sm:$0x1]
    %vm96 = vcmask 261120
    %v97 = vsel %vm96, %v75, 0.0
    %v99 = vlaneseq
    %v100 = vshrl.u32 %v99, 7
    %v101 = vsub.s32 0, %v100
    %v102 = vrot.slane %v86, %v101
    %vm104 = vcmask 523264
    %v106 = vsel %vm104, %v97, 0
    %108 = vmatprep.subr.mxu0 0.0
    %109 = vmatpush1.msra.mxu0 %v78
    %110 = vmatprep.subr.mxu0 0.0
    %111 = vmatpush1.msra.mxu0 %v79
    %112 = vmatprep.subr.mxu0 0.0
    %113 = vmatpush1.msra.mxu0 %v80
    %114 = vmatprep.subr.mxu0 0.0
    %115 = vmatpush1.msra.mxu0 %v81
    %116 = vmatprep.subr.mxu0 0.0
    %117 = vmatpush1.msra.mxu0 %v82
    %118 = vmatprep.subr.mxu0 0.0
    %119 = vmatpush1.msra.mxu0 %v83
    %120 = vmatprep.subr.mxu0 0.0
    %121 = vmatpush1.msra.mxu0 %v84
    %122 = vmatprep.subr.mxu0 0.0
    %123 = vmatpush1.msra.mxu0 %v85
    %124 = vmatprep.subr.mxu0 0.0
    %125 = vmatpush1.msra.mxu0 0.0
    %126 = vmatprep.subr.mxu0 0.0
    %127 = vmatpush1.msra.mxu0 0.0
    %128 = vmatprep.subr.mxu0 0.0
    %129 = vmatpush1.msra.mxu0 0.0
    %130 = vmatprep.subr.mxu0 0.0
    %131 = vmatpush1.msra.mxu0 0.0
    %132 = vmatprep.subr.mxu0 0.0
    %133 = vmatpush1.msra.mxu0 0.0
    %134 = vmatprep.subr.mxu0 0.0
    %135 = vmatpush1.msra.mxu0 0.0
    %136 = vmatprep.subr.mxu0 0.0
    %137 = vmatpush1.msra.mxu0 0.0
    %138 = vmatprep.subr.mxu0 0.0
    %139 = vmatpush1.msra.mxu0 0.0
    %140 = vmatprep.subr.mxu0 0.0
    %141 = vmatpush1.msra.mxu0 0.0
    %142 = vmatprep.subr.mxu0 0.0
    %143 = vmatpush1.msra.mxu0 0.0
    %144 = vmatprep.subr.mxu0 0.0
    %145 = vmatpush1.msra.mxu0 0.0
    %146 = vmatprep.subr.mxu0 0.0
    %147 = vmatpush1.msra.mxu0 0.0
    %148 = vmatprep.subr.mxu0 0.0
    %149 = vmatpush1.msra.mxu0 0.0
    %150 = vmatprep.subr.mxu0 0.0
    %151 = vmatpush1.msra.mxu0 0.0
    %152 = vmatprep.subr.mxu0 0.0
    %153 = vmatpush1.msra.mxu0 0.0
    %154 = vmatprep.subr.mxu0 0.0
    %155 = vmatpush1.msra.mxu0 0.0
    %156 = vmatprep.subr.mxu0 0.0
    %157 = vmatpush1.msra.mxu0 0.0
    %158 = vmatprep.subr.mxu0 0.0
    %159 = vmatpush1.msra.mxu0 0.0
    %160 = vmatprep.subr.mxu0 0.0
    %161 = vmatpush1.msra.mxu0 0.0
    %162 = vmatprep.subr.mxu0 0.0
    %163 = vmatpush1.msra.mxu0 0.0
    %164 = vmatprep.subr.mxu0 0.0
    %165 = vmatpush1.msra.mxu0 0.0
    %166 = vmatprep.subr.mxu0 0.0
    %167 = vmatpush1.msra.mxu0 0.0
    %168 = vmatprep.subr.mxu0 0.0
    %169 = vmatpush1.msra.mxu0 0.0
    %170 = vmatprep.subr.mxu0 0.0
    %171 = vmatpush1.msra.mxu0 0.0
    %172 = vmatprep.mubr.f32.mxu0 0.0
    %173 = vmatmul.mubr.f32.gmra.mrb[0].mxu0 %v106
    %v174 = vpop.f32.mrb[0].mxu0
    %v175 = vadd.f32 %v102, %v174
    %v176 = vpop.f32.mrb[0].mxu0
    %177 = vdwg.mxu0
    %v178 = vxor.u32 %v175, 2147483648
    %v179 = vmul.f32 %v178, 1.442695
    %v180 = vpow.pop %v179
    %v181 = vadd.f32 %v180, 1.0
    %v182 = vrcp.pop %v181
    %v183 = vmul.f32 1.0, %v182
    %v184 = vtanh.pop %v175
    %v185 = vmul.f32 %v183, 0.0
    %187 = vrot.lane.b32.xlu0 %v184, 64
    %v188 = vpop.permute.xlu0 %187
    %v190 = vmul.f32 %v183, %v188
    %192 = vrot.lane.b32.xlu0 %v190, 32
    %v193 = vpop.permute.xlu0 %192
    %v195 = vadd.f32 %v185, %v193
    %v196 = vtanh.pop %v195
    %198 = vrot.lane.b32.xlu0 %v196, 64
    %v199 = vpop.permute.xlu0 %198
    %v201 = vmul.f32 %v183, %v199
    %203 = vrot.lane.b32.xlu0 %v201, 64
    %v204 = vpop.permute.xlu0 %203
    %v206 = vsel %vm96, %v77, %v204
    %v208 = vsel %vm104, %v206, 0
    %210 = vmatprep.subr.mxu0 0.0
    %211 = vmatpush1.msra.mxu0 %v78
    %212 = vmatprep.subr.mxu0 0.0
    %213 = vmatpush1.msra.mxu0 %v79
    %214 = vmatprep.subr.mxu0 0.0
    %215 = vmatpush1.msra.mxu0 %v80
    %216 = vmatprep.subr.mxu0 0.0
    %217 = vmatpush1.msra.mxu0 %v81
    %218 = vmatprep.subr.mxu0 0.0
    %219 = vmatpush1.msra.mxu0 %v82
    %220 = vmatprep.subr.mxu0 0.0
    %221 = vmatpush1.msra.mxu0 %v83
    %222 = vmatprep.subr.mxu0 0.0
    %223 = vmatpush1.msra.mxu0 %v84
    %224 = vmatprep.subr.mxu0 0.0
    %225 = vmatpush1.msra.mxu0 %v85
    %226 = vmatprep.subr.mxu0 0.0
    %227 = vmatpush1.msra.mxu0 0.0
    %228 = vmatprep.subr.mxu0 0.0
    %229 = vmatpush1.msra.mxu0 0.0
    %230 = vmatprep.subr.mxu0 0.0
    %231 = vmatpush1.msra.mxu0 0.0
    %232 = vmatprep.subr.mxu0 0.0
    %233 = vmatpush1.msra.mxu0 0.0
    %234 = vmatprep.subr.mxu0 0.0
    %235 = vmatpush1.msra.mxu0 0.0
    %236 = vmatprep.subr.mxu0 0.0
    %237 = vmatpush1.msra.mxu0 0.0
    %238 = vmatprep.subr.mxu0 0.0
    %239 = vmatpush1.msra.mxu0 0.0
    %240 = vmatprep.subr.mxu0 0.0
    %241 = vmatpush1.msra.mxu0 0.0
    %242 = vmatprep.subr.mxu0 0.0
    %243 = vmatpush1.msra.mxu0 0.0
    %244 = vmatprep.subr.mxu0 0.0
    %245 = vmatpush1.msra.mxu0 0.0
    %246 = vmatprep.subr.mxu0 0.0
    %247 = vmatpush1.msra.mxu0 0.0
    %248 = vmatprep.subr.mxu0 0.0
    %249 = vmatpush1.msra.mxu0 0.0
    %250 = vmatprep.subr.mxu0 0.0
    %251 = vmatpush1.msra.mxu0 0.0
    %252 = vmatprep.subr.mxu0 0.0
    %253 = vmatpush1.msra.mxu0 0.0
    %254 = vmatprep.subr.mxu0 0.0
    %255 = vmatpush1.msra.mxu0 0.0
    %256 = vmatprep.subr.mxu0 0.0
    %257 = vmatpush1.msra.mxu0 0.0
    %258 = vmatprep.subr.mxu0 0.0
    %259 = vmatpush1.msra.mxu0 0.0
    %260 = vmatprep.subr.mxu0 0.0
    %261 = vmatpush1.msra.mxu0 0.0
    %262 = vmatprep.subr.mxu0 0.0
    %263 = vmatpush1.msra.mxu0 0.0
    %264 = vmatprep.subr.mxu0 0.0
    %265 = vmatpush1.msra.mxu0 0.0
    %266 = vmatprep.subr.mxu0 0.0
    %267 = vmatpush1.msra.mxu0 0.0
    %268 = vmatprep.subr.mxu0 0.0
    %269 = vmatpush1.msra.mxu0 0.0
    %270 = vmatprep.subr.mxu0 0.0
    %271 = vmatpush1.msra.mxu0 0.0
    %272 = vmatprep.subr.mxu0 0.0
    %273 = vmatpush1.msra.mxu0 0.0
    %274 = vmatprep.mubr.f32.mxu0 0.0
    %275 = vmatmul.mubr.f32.gmra.mrb[0].mxu0 %v208
    %v276 = vpop.f32.mrb[0].mxu0
    %v277 = vadd.f32 %v102, %v276
    %v278 = vpop.f32.mrb[0].mxu0
    %279 = vdwg.mxu0
    %v280 = vxor.u32 %v277, 2147483648
    %v281 = vmul.f32 %v280, 1.442695
    %v282 = vpow.pop %v281
    %v283 = vadd.f32 %v282, 1.0
    %v284 = vrcp.pop %v283
    %v285 = vmul.f32 1.0, %v284
    %v286 = vtanh.pop %v277
    %v287 = vmul.f32 %v285, %v195
    %289 = vrot.lane.b32.xlu0 %v286, 64
    %v290 = vpop.permute.xlu0 %289
    %v292 = vmul.f32 %v285, %v290
    %294 = vrot.lane.b32.xlu0 %v292, 32
    %v295 = vpop.permute.xlu0 %294
    %v297 = vadd.f32 %v287, %v295
    %v298 = vtanh.pop %v297
    %300 = vrot.lane.b32.xlu0 %v298, 64
    %v301 = vpop.permute.xlu0 %300
    %v303 = vmul.f32 %v285, %v301
    %v304 = vsel %vm96, %v77, 0.0
    %v306 = vlaneseq
    %v307 = vshrl.u32 %v306, 7
    %v308 = vsub.s32 0, %v307
    %v309 = vrot.slane %v95, %v308
    %v312 = vsel %vm104, %v304, 0
    %314 = vmatprep.subr.mxu0 0.0
    %315 = vmatpush1.msra.mxu0 %v87
    %316 = vmatprep.subr.mxu0 0.0
    %317 = vmatpush1.msra.mxu0 %v88
    %318 = vmatprep.subr.mxu0 0.0
    %319 = vmatpush1.msra.mxu0 %v89
    %320 = vmatprep.subr.mxu0 0.0
    %321 = vmatpush1.msra.mxu0 %v90
    %322 = vmatprep.subr.mxu0 0.0
    %323 = vmatpush1.msra.mxu0 %v91
    %324 = vmatprep.subr.mxu0 0.0
    %325 = vmatpush1.msra.mxu0 %v92
    %326 = vmatprep.subr.mxu0 0.0
    %327 = vmatpush1.msra.mxu0 %v93
    %328 = vmatprep.subr.mxu0 0.0
    %329 = vmatpush1.msra.mxu0 %v94
    %330 = vmatprep.subr.mxu0 0.0
    %331 = vmatpush1.msra.mxu0 0.0
    %332 = vmatprep.subr.mxu0 0.0
    %333 = vmatpush1.msra.mxu0 0.0
    %334 = vmatprep.subr.mxu0 0.0
    %335 = vmatpush1.msra.mxu0 0.0
    %336 = vmatprep.subr.mxu0 0.0
    %337 = vmatpush1.msra.mxu0 0.0
    %338 = vmatprep.subr.mxu0 0.0
    %339 = vmatpush1.msra.mxu0 0.0
    %340 = vmatprep.subr.mxu0 0.0
    %341 = vmatpush1.msra.mxu0 0.0
    %342 = vmatprep.subr.mxu0 0.0
    %343 = vmatpush1.msra.mxu0 0.0
    %344 = vmatprep.subr.mxu0 0.0
    %345 = vmatpush1.msra.mxu0 0.0
    %346 = vmatprep.subr.mxu0 0.0
    %347 = vmatpush1.msra.mxu0 0.0
    %348 = vmatprep.subr.mxu0 0.0
    %349 = vmatpush1.msra.mxu0 0.0
    %350 = vmatprep.subr.mxu0 0.0
    %351 = vmatpush1.msra.mxu0 0.0
    %352 = vmatprep.subr.mxu0 0.0
    %353 = vmatpush1.msra.mxu0 0.0
    %354 = vmatprep.subr.mxu0 0.0
    %355 = vmatpush1.msra.mxu0 0.0
    %356 = vmatprep.subr.mxu0 0.0
    %357 = vmatpush1.msra.mxu0 0.0
    %358 = vmatprep.subr.mxu0 0.0
    %359 = vmatpush1.msra.mxu0 0.0
    %360 = vmatprep.subr.mxu0 0.0
    %361 = vmatpush1.msra.mxu0 0.0
    %362 = vmatprep.subr.mxu0 0.0
    %363 = vmatpush1.msra.mxu0 0.0
    %364 = vmatprep.subr.mxu0 0.0
    %365 = vmatpush1.msra.mxu0 0.0
    %366 = vmatprep.subr.mxu0 0.0
    %367 = vmatpush1.msra.mxu0 0.0
    %368 = vmatprep.subr.mxu0 0.0
    %369 = vmatpush1.msra.mxu0 0.0
    %370 = vmatprep.subr.mxu0 0.0
    %371 = vmatpush1.msra.mxu0 0.0
    %372 = vmatprep.subr.mxu0 0.0
    %373 = vmatpush1.msra.mxu0 0.0
    %374 = vmatprep.subr.mxu0 0.0
    %375 = vmatpush1.msra.mxu0 0.0
    %376 = vmatprep.subr.mxu0 0.0
    %377 = vmatpush1.msra.mxu0 0.0
    %378 = vmatprep.mubr.f32.mxu0 0.0
    %379 = vmatmul.mubr.f32.gmra.mrb[0].mxu0 %v312
    %v380 = vpop.f32.mrb[0].mxu0
    %v381 = vadd.f32 %v309, %v380
    %v382 = vpop.f32.mrb[0].mxu0
    %383 = vdwg.mxu0
    %v384 = vxor.u32 %v381, 2147483648
    %v385 = vmul.f32 %v384, 1.442695
    %v386 = vpow.pop %v385
    %v387 = vadd.f32 %v386, 1.0
    %v388 = vrcp.pop %v387
    %v389 = vmul.f32 1.0, %v388
    %v390 = vtanh.pop %v381
    %v391 = vmul.f32 %v389, 0.0
    %393 = vrot.lane.b32.xlu0 %v390, 64
    %v394 = vpop.permute.xlu0 %393
    %v396 = vmul.f32 %v389, %v394
    %398 = vrot.lane.b32.xlu0 %v396, 32
    %v399 = vpop.permute.xlu0 %398
    %v401 = vadd.f32 %v391, %v399
    %v402 = vtanh.pop %v401
    %404 = vrot.lane.b32.xlu0 %v402, 64
    %v405 = vpop.permute.xlu0 %404
    %v407 = vmul.f32 %v389, %v405
    %409 = vrot.lane.b32.xlu0 %v407, 64
    %v410 = vpop.permute.xlu0 %409
    %v412 = vsel %vm96, %v75, %v410
    %v414 = vsel %vm104, %v412, 0
    %416 = vmatprep.subr.mxu0 0.0
    %417 = vmatpush1.msra.mxu0 %v87
    %418 = vmatprep.subr.mxu0 0.0
    %419 = vmatpush1.msra.mxu0 %v88
    %420 = vmatprep.subr.mxu0 0.0
    %421 = vmatpush1.msra.mxu0 %v89
    %422 = vmatprep.subr.mxu0 0.0
    %423 = vmatpush1.msra.mxu0 %v90
    %424 = vmatprep.subr.mxu0 0.0
    %425 = vmatpush1.msra.mxu0 %v91
    %426 = vmatprep.subr.mxu0 0.0
    %427 = vmatpush1.msra.mxu0 %v92
    %428 = vmatprep.subr.mxu0 0.0
    %429 = vmatpush1.msra.mxu0 %v93
    %430 = vmatprep.subr.mxu0 0.0
    %431 = vmatpush1.msra.mxu0 %v94
    %432 = vmatprep.subr.mxu0 0.0
    %433 = vmatpush1.msra.mxu0 0.0
    %434 = vmatprep.subr.mxu0 0.0
    %435 = vmatpush1.msra.mxu0 0.0
    %436 = vmatprep.subr.mxu0 0.0
    %437 = vmatpush1.msra.mxu0 0.0
    %438 = vmatprep.subr.mxu0 0.0
    %439 = vmatpush1.msra.mxu0 0.0
    %440 = vmatprep.subr.mxu0 0.0
    %441 = vmatpush1.msra.mxu0 0.0
    %442 = vmatprep.subr.mxu0 0.0
    %443 = vmatpush1.msra.mxu0 0.0
    %444 = vmatprep.subr.mxu0 0.0
    %445 = vmatpush1.msra.mxu0 0.0
    %446 = vmatprep.subr.mxu0 0.0
    %447 = vmatpush1.msra.mxu0 0.0
    %448 = vmatprep.subr.mxu0 0.0
    %449 = vmatpush1.msra.mxu0 0.0
    %450 = vmatprep.subr.mxu0 0.0
    %451 = vmatpush1.msra.mxu0 0.0
    %452 = vmatprep.subr.mxu0 0.0
    %453 = vmatpush1.msra.mxu0 0.0
    %454 = vmatprep.subr.mxu0 0.0
    %455 = vmatpush1.msra.mxu0 0.0
    %456 = vmatprep.subr.mxu0 0.0
    %457 = vmatpush1.msra.mxu0 0.0
    %458 = vmatprep.subr.mxu0 0.0
    %459 = vmatpush1.msra.mxu0 0.0
    %460 = vmatprep.subr.mxu0 0.0
    %461 = vmatpush1.msra.mxu0 0.0
    %462 = vmatprep.subr.mxu0 0.0
    %463 = vmatpush1.msra.mxu0 0.0
    %464 = vmatprep.subr.mxu0 0.0
    %465 = vmatpush1.msra.mxu0 0.0
    %466 = vmatprep.subr.mxu0 0.0
    %467 = vmatpush1.msra.mxu0 0.0
    %468 = vmatprep.subr.mxu0 0.0
    %469 = vmatpush1.msra.mxu0 0.0
    %470 = vmatprep.subr.mxu0 0.0
    %471 = vmatpush1.msra.mxu0 0.0
    %472 = vmatprep.subr.mxu0 0.0
    %473 = vmatpush1.msra.mxu0 0.0
    %474 = vmatprep.subr.mxu0 0.0
    %475 = vmatpush1.msra.mxu0 0.0
    %476 = vmatprep.subr.mxu0 0.0
    %477 = vmatpush1.msra.mxu0 0.0
    %478 = vmatprep.subr.mxu0 0.0
    %479 = vmatpush1.msra.mxu0 0.0
    %480 = vmatprep.mubr.f32.mxu0 0.0
    %481 = vmatmul.mubr.f32.gmra.mrb[0].mxu0 %v414
    %v482 = vpop.f32.mrb[0].mxu0
    %v483 = vadd.f32 %v309, %v482
    %v484 = vpop.f32.mrb[0].mxu0
    %485 = vdwg.mxu0
    %v486 = vxor.u32 %v483, 2147483648
    %v487 = vmul.f32 %v486, 1.442695
    %v488 = vpow.pop %v487
    %v489 = vadd.f32 %v488, 1.0
    %v490 = vrcp.pop %v489
    %v491 = vmul.f32 1.0, %v490
    %v492 = vtanh.pop %v483
    %v493 = vmul.f32 %v491, %v401
    %495 = vrot.lane.b32.xlu0 %v492, 64
    %v496 = vpop.permute.xlu0 %495
    %v498 = vmul.f32 %v491, %v496
    %500 = vrot.lane.b32.xlu0 %v498, 32
    %v501 = vpop.permute.xlu0 %500
    %v503 = vadd.f32 %v493, %v501
    %v504 = vtanh.pop %v503
    %506 = vrot.lane.b32.xlu0 %v504, 64
    %v507 = vpop.permute.xlu0 %506
    %v509 = vmul.f32 %v491, %v507
    %510 = vrot.lane.b32.xlu0 %v201, 32
    %v511 = vpop.permute.xlu0 %510
    %514 = vrot.lane.b32.xlu0 %v509, 64
    %v515 = vpop.permute.xlu0 %514
    %v517 = vsel %vm96, %v511, %v515
    %519 = vrot.lane.b32.xlu0 %v303, 32
    %v520 = vpop.permute.xlu0 %519
    %v522 = vsel %vm96, %v520, %v410
    %v523 = vld [vmem:[%s5] sm:$0xff]
    %v524 = vld [vmem:[%s5 + $0x8] sm:$0xff]
    %v525 = vld [vmem:[%s5 + $0x10] sm:$0xff]
    %v526 = vld [vmem:[%s5 + $0x18] sm:$0xff]
    %v527 = vld [vmem:[%s5 + $0x20] sm:$0xff]
    %v528 = vld [vmem:[%s5 + $0x28] sm:$0xff]
    %v529 = vld [vmem:[%s5 + $0x30] sm:$0xff]
    %v530 = vld [vmem:[%s5 + $0x38] sm:$0xff]
    %v531 = vld [vmem:[%s5 + $0x40] sm:$0xff]
    %v532 = vld [vmem:[%s5 + $0x48] sm:$0xff]
    %v533 = vld [vmem:[%s5 + $0x50] sm:$0xff]
    %v534 = vld [vmem:[%s5 + $0x58] sm:$0xff]
    %v535 = vld [vmem:[#allocation4] sm:$0x1]
    %v536 = vld [vmem:[%s7] sm:$0xff]
    %v537 = vld [vmem:[%s7 + $0x8] sm:$0xff]
    %v538 = vld [vmem:[%s7 + $0x10] sm:$0xff]
    %v539 = vld [vmem:[%s7 + $0x18] sm:$0xff]
    %v540 = vld [vmem:[%s7 + $0x20] sm:$0xff]
    %v541 = vld [vmem:[%s7 + $0x28] sm:$0xff]
    %v542 = vld [vmem:[%s7 + $0x30] sm:$0xff]
    %v543 = vld [vmem:[%s7 + $0x38] sm:$0xff]
    %v544 = vld [vmem:[%s7 + $0x40] sm:$0xff]
    %v545 = vld [vmem:[%s7 + $0x48] sm:$0xff]
    %v546 = vld [vmem:[%s7 + $0x50] sm:$0xff]
    %v547 = vld [vmem:[%s7 + $0x58] sm:$0xff]
    %v548 = vld [vmem:[#allocation6] sm:$0x1]
    %v549 = vsel %vm104, %v517, 0.0
    %v551 = vlaneseq
    %v552 = vshrl.u32 %v551, 7
    %v553 = vsub.s32 0, %v552
    %v554 = vrot.slane %v535, %v553
    %vm556 = vcmask 785408
    %v558 = vsel %vm556, %v549, 0
    %560 = vmatprep.subr.mxu0 0.0
    %561 = vmatpush1.msra.mxu0 %v523
    %562 = vmatprep.subr.mxu0 0.0
    %563 = vmatpush1.msra.mxu0 %v524
    %564 = vmatprep.subr.mxu0 0.0
    %565 = vmatpush1.msra.mxu0 %v525
    %566 = vmatprep.subr.mxu0 0.0
    %567 = vmatpush1.msra.mxu0 %v526
    %568 = vmatprep.subr.mxu0 0.0
    %569 = vmatpush1.msra.mxu0 %v527
    %570 = vmatprep.subr.mxu0 0.0
    %571 = vmatpush1.msra.mxu0 %v528
    %572 = vmatprep.subr.mxu0 0.0
    %573 = vmatpush1.msra.mxu0 %v529
    %574 = vmatprep.subr.mxu0 0.0
    %575 = vmatpush1.msra.mxu0 %v530
    %576 = vmatprep.subr.mxu0 0.0
    %577 = vmatpush1.msra.mxu0 %v531
    %578 = vmatprep.subr.mxu0 0.0
    %579 = vmatpush1.msra.mxu0 %v532
    %580 = vmatprep.subr.mxu0 0.0
    %581 = vmatpush1.msra.mxu0 %v533
    %582 = vmatprep.subr.mxu0 0.0
    %583 = vmatpush1.msra.mxu0 %v534
    %584 = vmatprep.subr.mxu0 0.0
    %585 = vmatpush1.msra.mxu0 0.0
    %586 = vmatprep.subr.mxu0 0.0
    %587 = vmatpush1.msra.mxu0 0.0
    %588 = vmatprep.subr.mxu0 0.0
    %589 = vmatpush1.msra.mxu0 0.0
    %590 = vmatprep.subr.mxu0 0.0
    %591 = vmatpush1.msra.mxu0 0.0
    %592 = vmatprep.subr.mxu0 0.0
    %593 = vmatpush1.msra.mxu0 0.0
    %594 = vmatprep.subr.mxu0 0.0
    %595 = vmatpush1.msra.mxu0 0.0
    %596 = vmatprep.subr.mxu0 0.0
    %597 = vmatpush1.msra.mxu0 0.0
    %598 = vmatprep.subr.mxu0 0.0
    %599 = vmatpush1.msra.mxu0 0.0
    %600 = vmatprep.subr.mxu0 0.0
    %601 = vmatpush1.msra.mxu0 0.0
    %602 = vmatprep.subr.mxu0 0.0
    %603 = vmatpush1.msra.mxu0 0.0
    %604 = vmatprep.subr.mxu0 0.0
    %605 = vmatpush1.msra.mxu0 0.0
    %606 = vmatprep.subr.mxu0 0.0
    %607 = vmatpush1.msra.mxu0 0.0
    %608 = vmatprep.subr.mxu0 0.0
    %609 = vmatpush1.msra.mxu0 0.0
    %610 = vmatprep.subr.mxu0 0.0
    %611 = vmatpush1.msra.mxu0 0.0
    %612 = vmatprep.subr.mxu0 0.0
    %613 = vmatpush1.msra.mxu0 0.0
    %614 = vmatprep.subr.mxu0 0.0
    %615 = vmatpush1.msra.mxu0 0.0
    %616 = vmatprep.subr.mxu0 0.0
    %617 = vmatpush1.msra.mxu0 0.0
    %618 = vmatprep.subr.mxu0 0.0
    %619 = vmatpush1.msra.mxu0 0.0
    %620 = vmatprep.subr.mxu0 0.0
    %621 = vmatpush1.msra.mxu0 0.0
    %622 = vmatprep.subr.mxu0 0.0
    %623 = vmatpush1.msra.mxu0 0.0
    %624 = vmatprep.mubr.f32.mxu0 0.0
    %625 = vmatmul.mubr.f32.gmra.mrb[0].mxu0 %v558
    %v626 = vpop.f32.mrb[0].mxu0
    %v627 = vadd.f32 %v554, %v626
    %v628 = vpop.f32.mrb[0].mxu0
    %629 = vdwg.mxu0
    %v630 = vxor.u32 %v627, 2147483648
    %v631 = vmul.f32 %v630, 1.442695
    %v632 = vpow.pop %v631
    %v633 = vadd.f32 %v632, 1.0
    %v634 = vrcp.pop %v633
    %v635 = vmul.f32 1.0, %v634
    %v636 = vtanh.pop %v627
    %v637 = vmul.f32 %v635, 0.0
    %639 = vrot.lane.b32.xlu0 %v636, 64
    %v640 = vpop.permute.xlu0 %639
    %v642 = vmul.f32 %v635, %v640
    %644 = vrot.lane.b32.xlu0 %v642, 32
    %v645 = vpop.permute.xlu0 %644
    %v647 = vadd.f32 %v637, %v645
    %v648 = vtanh.pop %v647
    %650 = vrot.lane.b32.xlu0 %v648, 64
    %v651 = vpop.permute.xlu0 %650
    %v653 = vmul.f32 %v635, %v651
    %655 = vrot.lane.b32.xlu0 %v653, 96
    %v656 = vpop.permute.xlu0 %655
    %v658 = vsel %vm104, %v522, %v656
    %v660 = vsel %vm556, %v658, 0
    %662 = vmatprep.subr.mxu0 0.0
    %663 = vmatpush1.msra.mxu0 %v523
    %664 = vmatprep.subr.mxu0 0.0
    %665 = vmatpush1.msra.mxu0 %v524
    %666 = vmatprep.subr.mxu0 0.0
    %667 = vmatpush1.msra.mxu0 %v525
    %668 = vmatprep.subr.mxu0 0.0
    %669 = vmatpush1.msra.mxu0 %v526
    %670 = vmatprep.subr.mxu0 0.0
    %671 = vmatpush1.msra.mxu0 %v527
    %672 = vmatprep.subr.mxu0 0.0
    %673 = vmatpush1.msra.mxu0 %v528
    %674 = vmatprep.subr.mxu0 0.0
    %675 = vmatpush1.msra.mxu0 %v529
    %676 = vmatprep.subr.mxu0 0.0
    %677 = vmatpush1.msra.mxu0 %v530
    %678 = vmatprep.subr.mxu0 0.0
    %679 = vmatpush1.msra.mxu0 %v531
    %680 = vmatprep.subr.mxu0 0.0
    %681 = vmatpush1.msra.mxu0 %v532
    %682 = vmatprep.subr.mxu0 0.0
    %683 = vmatpush1.msra.mxu0 %v533
    %684 = vmatprep.subr.mxu0 0.0
    %685 = vmatpush1.msra.mxu0 %v534
    %686 = vmatprep.subr.mxu0 0.0
    %687 = vmatpush1.msra.mxu0 0.0
    %688 = vmatprep.subr.mxu0 0.0
    %689 = vmatpush1.msra.mxu0 0.0
    %690 = vmatprep.subr.mxu0 0.0
    %691 = vmatpush1.msra.mxu0 0.0
    %692 = vmatprep.subr.mxu0 0.0
    %693 = vmatpush1.msra.mxu0 0.0
    %694 = vmatprep.subr.mxu0 0.0
    %695 = vmatpush1.msra.mxu0 0.0
    %696 = vmatprep.subr.mxu0 0.0
    %697 = vmatpush1.msra.mxu0 0.0
    %698 = vmatprep.subr.mxu0 0.0
    %699 = vmatpush1.msra.mxu0 0.0
    %700 = vmatprep.subr.mxu0 0.0
    %701 = vmatpush1.msra.mxu0 0.0
    %702 = vmatprep.subr.mxu0 0.0
    %703 = vmatpush1.msra.mxu0 0.0
    %704 = vmatprep.subr.mxu0 0.0
    %705 = vmatpush1.msra.mxu0 0.0
    %706 = vmatprep.subr.mxu0 0.0
    %707 = vmatpush1.msra.mxu0 0.0
    %708 = vmatprep.subr.mxu0 0.0
    %709 = vmatpush1.msra.mxu0 0.0
    %710 = vmatprep.subr.mxu0 0.0
    %711 = vmatpush1.msra.mxu0 0.0
    %712 = vmatprep.subr.mxu0 0.0
    %713 = vmatpush1.msra.mxu0 0.0
    %714 = vmatprep.subr.mxu0 0.0
    %715 = vmatpush1.msra.mxu0 0.0
    %716 = vmatprep.subr.mxu0 0.0
    %717 = vmatpush1.msra.mxu0 0.0
    %718 = vmatprep.subr.mxu0 0.0
    %719 = vmatpush1.msra.mxu0 0.0
    %720 = vmatprep.subr.mxu0 0.0
    %721 = vmatpush1.msra.mxu0 0.0
    %722 = vmatprep.subr.mxu0 0.0
    %723 = vmatpush1.msra.mxu0 0.0
    %724 = vmatprep.subr.mxu0 0.0
    %725 = vmatpush1.msra.mxu0 0.0
    %726 = vmatprep.mubr.f32.mxu0 0.0
    %727 = vmatmul.mubr.f32.gmra.mrb[0].mxu0 %v660
    %v728 = vpop.f32.mrb[0].mxu0
    %v729 = vadd.f32 %v554, %v728
    %v730 = vpop.f32.mrb[0].mxu0
    %731 = vdwg.mxu0
    %v732 = vxor.u32 %v729, 2147483648
    %v733 = vmul.f32 %v732, 1.442695
    %v734 = vpow.pop %v733
    %v735 = vadd.f32 %v734, 1.0
    %v736 = vrcp.pop %v735
    %v737 = vmul.f32 1.0, %v736
    %v738 = vtanh.pop %v729
    %v739 = vmul.f32 %v737, %v647
    %741 = vrot.lane.b32.xlu0 %v738, 64
    %v742 = vpop.permute.xlu0 %741
    %v744 = vmul.f32 %v737, %v742
    %746 = vrot.lane.b32.xlu0 %v744, 32
    %v747 = vpop.permute.xlu0 %746
    %v749 = vadd.f32 %v739, %v747
    %v750 = vtanh.pop %v749
    %752 = vrot.lane.b32.xlu0 %v750, 64
    %v753 = vpop.permute.xlu0 %752
    %v755 = vmul.f32 %v737, %v753
    %v756 = vsel %vm104, %v522, 0.0
    %v758 = vlaneseq
    %v759 = vshrl.u32 %v758, 7
    %v760 = vsub.s32 0, %v759
    %v761 = vrot.slane %v548, %v760
    %v764 = vsel %vm556, %v756, 0
    %766 = vmatprep.subr.mxu0 0.0
    %767 = vmatpush1.msra.mxu0 %v536
    %768 = vmatprep.subr.mxu0 0.0
    %769 = vmatpush1.msra.mxu0 %v537
    %770 = vmatprep.subr.mxu0 0.0
    %771 = vmatpush1.msra.mxu0 %v538
    %772 = vmatprep.subr.mxu0 0.0
    %773 = vmatpush1.msra.mxu0 %v539
    %774 = vmatprep.subr.mxu0 0.0
    %775 = vmatpush1.msra.mxu0 %v540
    %776 = vmatprep.subr.mxu0 0.0
    %777 = vmatpush1.msra.mxu0 %v541
    %778 = vmatprep.subr.mxu0 0.0
    %779 = vmatpush1.msra.mxu0 %v542
    %780 = vmatprep.subr.mxu0 0.0
    %781 = vmatpush1.msra.mxu0 %v543
    %782 = vmatprep.subr.mxu0 0.0
    %783 = vmatpush1.msra.mxu0 %v544
    %784 = vmatprep.subr.mxu0 0.0
    %785 = vmatpush1.msra.mxu0 %v545
    %786 = vmatprep.subr.mxu0 0.0
    %787 = vmatpush1.msra.mxu0 %v546
    %788 = vmatprep.subr.mxu0 0.0
    %789 = vmatpush1.msra.mxu0 %v547
    %790 = vmatprep.subr.mxu0 0.0
    %791 = vmatpush1.msra.mxu0 0.0
    %792 = vmatprep.subr.mxu0 0.0
    %793 = vmatpush1.msra.mxu0 0.0
    %794 = vmatprep.subr.mxu0 0.0
    %795 = vmatpush1.msra.mxu0 0.0
    %796 = vmatprep.subr.mxu0 0.0
    %797 = vmatpush1.msra.mxu0 0.0
    %798 = vmatprep.subr.mxu0 0.0
    %799 = vmatpush1.msra.mxu0 0.0
    %800 = vmatprep.subr.mxu0 0.0
    %801 = vmatpush1.msra.mxu0 0.0
    %802 = vmatprep.subr.mxu0 0.0
    %803 = vmatpush1.msra.mxu0 0.0
    %804 = vmatprep.subr.mxu0 0.0
    %805 = vmatpush1.msra.mxu0 0.0
    %806 = vmatprep.subr.mxu0 0.0
    %807 = vmatpush1.msra.mxu0 0.0
    %808 = vmatprep.subr.mxu0 0.0
    %809 = vmatpush1.msra.mxu0 0.0
    %810 = vmatprep.subr.mxu0 0.0
    %811 = vmatpush1.msra.mxu0 0.0
    %812 = vmatprep.subr.mxu0 0.0
    %813 = vmatpush1.msra.mxu0 0.0
    %814 = vmatprep.subr.mxu0 0.0
    %815 = vmatpush1.msra.mxu0 0.0
    %816 = vmatprep.subr.mxu0 0.0
    %817 = vmatpush1.msra.mxu0 0.0
    %818 = vmatprep.subr.mxu0 0.0
    %819 = vmatpush1.msra.mxu0 0.0
    %820 = vmatprep.subr.mxu0 0.0
    %821 = vmatpush1.msra.mxu0 0.0
    %822 = vmatprep.subr.mxu0 0.0
    %823 = vmatpush1.msra.mxu0 0.0
    %824 = vmatprep.subr.mxu0 0.0
    %825 = vmatpush1.msra.mxu0 0.0
    %826 = vmatprep.subr.mxu0 0.0
    %827 = vmatpush1.msra.mxu0 0.0
    %828 = vmatprep.subr.mxu0 0.0
    %829 = vmatpush1.msra.mxu0 0.0
    %830 = vmatprep.mubr.f32.mxu0 0.0
    %831 = vmatmul.mubr.f32.gmra.mrb[0].mxu0 %v764
    %v832 = vpop.f32.mrb[0].mxu0
    %v833 = vadd.f32 %v761, %v832
    %v834 = vpop.f32.mrb[0].mxu0
    %835 = vdwg.mxu0
    %v836 = vxor.u32 %v833, 2147483648
    %v837 = vmul.f32 %v836, 1.442695
    %v838 = vpow.pop %v837
    %v839 = vadd.f32 %v838, 1.0
    %v840 = vrcp.pop %v839
    %v841 = vmul.f32 1.0, %v840
    %v842 = vtanh.pop %v833
    %v843 = vmul.f32 %v841, 0.0
    %845 = vrot.lane.b32.xlu0 %v842, 64
    %v846 = vpop.permute.xlu0 %845
    %v848 = vmul.f32 %v841, %v846
    %850 = vrot.lane.b32.xlu0 %v848, 32
    %v851 = vpop.permute.xlu0 %850
    %v853 = vadd.f32 %v843, %v851
    %v854 = vtanh.pop %v853
    %856 = vrot.lane.b32.xlu0 %v854, 64
    %v857 = vpop.permute.xlu0 %856
    %v859 = vmul.f32 %v841, %v857
    %861 = vrot.lane.b32.xlu0 %v859, 96
    %v862 = vpop.permute.xlu0 %861
    %v864 = vsel %vm104, %v517, %v862
    %v866 = vsel %vm556, %v864, 0
    %868 = vmatprep.subr.mxu0 0.0
    %869 = vmatpush1.msra.mxu0 %v536
    %870 = vmatprep.subr.mxu0 0.0
    %871 = vmatpush1.msra.mxu0 %v537
    %872 = vmatprep.subr.mxu0 0.0
    %873 = vmatpush1.msra.mxu0 %v538
    %874 = vmatprep.subr.mxu0 0.0
    %875 = vmatpush1.msra.mxu0 %v539
    %876 = vmatprep.subr.mxu0 0.0
    %877 = vmatpush1.msra.mxu0 %v540
    %878 = vmatprep.subr.mxu0 0.0
    %879 = vmatpush1.msra.mxu0 %v541
    %880 = vmatprep.subr.mxu0 0.0
    %881 = vmatpush1.msra.mxu0 %v542
    %882 = vmatprep.subr.mxu0 0.0
    %883 = vmatpush1.msra.mxu0 %v543
    %884 = vmatprep.subr.mxu0 0.0
    %885 = vmatpush1.msra.mxu0 %v544
    %886 = vmatprep.subr.mxu0 0.0
    %887 = vmatpush1.msra.mxu0 %v545
    %888 = vmatprep.subr.mxu0 0.0
    %889 = vmatpush1.msra.mxu0 %v546
    %890 = vmatprep.subr.mxu0 0.0
    %891 = vmatpush1.msra.mxu0 %v547
    %892 = vmatprep.subr.mxu0 0.0
    %893 = vmatpush1.msra.mxu0 0.0
    %894 = vmatprep.subr.mxu0 0.0
    %895 = vmatpush1.msra.mxu0 0.0
    %896 = vmatprep.subr.mxu0 0.0
    %897 = vmatpush1.msra.mxu0 0.0
    %898 = vmatprep.subr.mxu0 0.0
    %899 = vmatpush1.msra.mxu0 0.0
    %900 = vmatprep.subr.mxu0 0.0
    %901 = vmatpush1.msra.mxu0 0.0
    %902 = vmatprep.subr.mxu0 0.0
    %903 = vmatpush1.msra.mxu0 0.0
    %904 = vmatprep.subr.mxu0 0.0
    %905 = vmatpush1.msra.mxu0 0.0
    %906 = vmatprep.subr.mxu0 0.0
    %907 = vmatpush1.msra.mxu0 0.0
    %908 = vmatprep.subr.mxu0 0.0
    %909 = vmatpush1.msra.mxu0 0.0
    %910 = vmatprep.subr.mxu0 0.0
    %911 = vmatpush1.msra.mxu0 0.0
    %912 = vmatprep.subr.mxu0 0.0
    %913 = vmatpush1.msra.mxu0 0.0
    %914 = vmatprep.subr.mxu0 0.0
    %915 = vmatpush1.msra.mxu0 0.0
    %916 = vmatprep.subr.mxu0 0.0
    %917 = vmatpush1.msra.mxu0 0.0
    %918 = vmatprep.subr.mxu0 0.0
    %919 = vmatpush1.msra.mxu0 0.0
    %920 = vmatprep.subr.mxu0 0.0
    %921 = vmatpush1.msra.mxu0 0.0
    %922 = vmatprep.subr.mxu0 0.0
    %923 = vmatpush1.msra.mxu0 0.0
    %924 = vmatprep.subr.mxu0 0.0
    %925 = vmatpush1.msra.mxu0 0.0
    %926 = vmatprep.subr.mxu0 0.0
    %927 = vmatpush1.msra.mxu0 0.0
    %928 = vmatprep.subr.mxu0 0.0
    %929 = vmatpush1.msra.mxu0 0.0
    %930 = vmatprep.subr.mxu0 0.0
    %931 = vmatpush1.msra.mxu0 0.0
    %932 = vmatprep.mubr.f32.mxu0 0.0
    %933 = vmatmul.mubr.f32.gmra.mrb[0].mxu0 %v866
    %v934 = vpop.f32.mrb[0].mxu0
    %v935 = vadd.f32 %v761, %v934
    %v936 = vpop.f32.mrb[0].mxu0
    %937 = vdwg.mxu0
    %v938 = vxor.u32 %v935, 2147483648
    %v939 = vmul.f32 %v938, 1.442695
    %v940 = vpow.pop %v939
    %v941 = vadd.f32 %v940, 1.0
    %v942 = vrcp.pop %v941
    %v943 = vmul.f32 1.0, %v942
    %v944 = vtanh.pop %v935
    %v945 = vmul.f32 %v943, %v853
    %947 = vrot.lane.b32.xlu0 %v944, 64
    %v948 = vpop.permute.xlu0 %947
    %v950 = vmul.f32 %v943, %v948
    %952 = vrot.lane.b32.xlu0 %v950, 32
    %v953 = vpop.permute.xlu0 %952
    %v955 = vadd.f32 %v945, %v953
    %v956 = vtanh.pop %v955
    %958 = vrot.lane.b32.xlu0 %v956, 64
    %v959 = vpop.permute.xlu0 %958
    %v961 = vmul.f32 %v943, %v959
    %962 = vrot.lane.b32.xlu0 %v653, 32
    %v963 = vpop.permute.xlu0 %962
    %966 = vrot.lane.b32.xlu0 %v961, 64
    %v967 = vpop.permute.xlu0 %966
    %v969 = vsel %vm96, %v963, %v967
    %971 = vrot.lane.b32.xlu0 %v755, 32
    %v972 = vpop.permute.xlu0 %971
    %974 = vrot.lane.b32.xlu0 %v859, 64
    %v975 = vpop.permute.xlu0 %974
    %v977 = vsel %vm96, %v972, %v975
    %v978 = vld [vmem:[%s9] sm:$0x1]
    %v979 = vld [vmem:[%s10] sm:$0x1]
    %981 = vrot.lane.b32.xlu0 %v969, 96
    %v982 = vpop.permute.xlu0 %981
    %v984 = vadd.f32 %v969, %v982
    %v985 = vsel %vm96, %v984, 0.0
    %986 = vadd.xlane.f32.xlu0 %v985
    %v987 = vpop.xlane.xlu0 %986
    %v988 = vrcp.pop 32.0
    %v989 = vmul.f32 %v987, %v988
    %v990 = vsub.f32 %v984, %v989
    %v991 = vmul.f32 %v990, %v990
    %v992 = vsel %vm96, %v991, 0.0
    %993 = vadd.xlane.f32.xlu0 %v992
    %v994 = vpop.xlane.xlu0 %993
    %v995 = vmul.f32 %v994, %v988
    %v996 = vadd.f32 %v995, 1e-05
    %v997 = vrsqrt.pop %v996
    %v998 = vmul.f32 %v990, %v997
    %v1000 = vlaneseq
    %v1001 = vshrl.u32 %v1000, 7
    %v1002 = vsub.s32 0, %v1001
    %v1003 = vrot.slane %v978, %v1002
    %v1005 = vmul.f32 %v998, %v1003
    %v1007 = vlaneseq
    %v1008 = vshrl.u32 %v1007, 7
    %v1009 = vsub.s32 0, %v1008
    %v1010 = vrot.slane %v979, %v1009
    %v1012 = vadd.f32 %v1005, %v1010
    %v1013 = vadd.f32 %v75, %v1012
    %1014 = vst.msk [vmem:[%s11] sm:$0xff] %vm96, %v1013
    %1016 = vrot.lane.b32.xlu0 %v977, 96
    %v1017 = vpop.permute.xlu0 %1016
    %v1019 = vadd.f32 %v977, %v1017
    %v1020 = vsel %vm96, %v1019, 0.0
    %1021 = vadd.xlane.f32.xlu0 %v1020
    %v1022 = vpop.xlane.xlu0 %1021
    %v1023 = vmul.f32 %v1022, %v988
    %v1024 = vsub.f32 %v1019, %v1023
    %v1025 = vmul.f32 %v1024, %v1024
    %v1026 = vsel %vm96, %v1025, 0.0
    %1027 = vadd.xlane.f32.xlu0 %v1026
    %v1028 = vpop.xlane.xlu0 %1027
    %v1029 = vmul.f32 %v1028, %v988
    %v1030 = vadd.f32 %v1029, 1e-05
    %v1031 = vrsqrt.pop %v1030
    %v1032 = vmul.f32 %v1024, %v1031
    %v1033 = vmul.f32 %v1032, %v1003
    %v1034 = vadd.f32 %v1033, %v1010
    %v1035 = vadd.f32 %v77, %v1034
    %s1036 = scalar_lea.vmem %s11, 8
    %1037 = vst.msk [vmem:[%s1036] sm:$0xff] %vm96, %v1035
    // Predicated region
    $region58: #{model_forward.4} parent=1 // pred_check
      _
    $region59: #{model_forward.4} parent=1 // pred_check_branch
      %1039 = sbr.rel (0) target = $region61
    $region60: #{model_forward.4} parent=1 // pred_region
      _
    $region61: #{model_forward.4} parent=1 // pred_fallthru
      _
    // Predicated region
    $region62: #{model_forward.4} parent=1 // pred_check
      _
    $region63: #{model_forward.4} parent=1 // pred_check_branch
      %1041 = sbr.rel (0) target = $region65
    $region64: #{model_forward.4} parent=1 // pred_region
      _
    $region65: #{model_forward.4} parent=1 // pred_fallthru
      _
    %1042 = vsyncpa [#allocation3], 1
    %1043 = vsyncpa [#allocation5], 1

// kernel: model_forward.5
$region0: #{model_forward.5}
  #allocation0 [shape = 'u32[]', space=smem, size = 0x4, offset = 0x4, fixed_abs, tag = 'smem constant byte address 0x4 - core index']
  #allocation1 [shape = 'u32[144,128]{1,0:T(1,128)}', space=vmem, size = 0x12000, scoped, tag = 'internal scratch']
  %s0 = inlined_call_operand.vmem [shape: f32[16,32], index: 0, kind: input, shape index: {}]
  %s1 = inlined_call_operand.vmem [shape: f32[32,96], index: 1, kind: input, shape index: {}]
  %s2 = inlined_call_operand.vmem [shape: f32[1,96], index: 2, kind: input, shape index: {}]
  %s3 = inlined_call_operand.vmem [shape: f32[32,32], index: 3, kind: input, shape index: {}]
  %s4 = inlined_call_operand.vmem [shape: f32[32,32], index: 4, kind: input, shape index: {}]
  %s5 = inlined_call_operand.vmem [shape: f32[1,32], index: 5, kind: input, shape index: {}]
  %s6 = inlined_call_operand.vmem [shape: f32[1,32], index: 6, kind: input, shape index: {}]
  %s7 = inlined_call_operand.vmem [shape: f32[1,32], index: 7, kind: input, shape index: {}]
  %s8 = inlined_call_operand.vmem [shape: f32[32,64], index: 8, kind: input, shape index: {}]
  %s9 = inlined_call_operand.vmem [shape: f32[1,64], index: 9, kind: input, shape index: {}]
  %s10 = inlined_call_operand.vmem [shape: f32[64,32], index: 10, kind: input, shape index: {}]
  %s11 = inlined_call_operand.vmem [shape: f32[1,32], index: 11, kind: input, shape index: {}]
  %s12 = inlined_call_operand.vmem [shape: f32[1,32], index: 12, kind: input, shape index: {}]
  %s13 = inlined_call_operand.vmem [shape: f32[1,32], index: 13, kind: input, shape index: {}]
  %s14 = inlined_call_operand.vmem [shape: f32[16,32], index: 14, kind: output, shape index: {}]
  %s15 = sld [smem:[#allocation0]]
  $region66: #{model_forward.5} parent=0
    _
  %s17 = ssub.s32 1, %s15
  %s18 = scalar_select 0, %s17, %s15
  // Predicated region
  $region2: #{model_forward.5} parent=0 // pred_check
    _
  $region3: #{model_forward.5} parent=0 // pred_check_branch
    %20 = sbr.rel (0) target = $region5
  $region4: #{model_forward.5} parent=0 // pred_region
    _
  $region5: #{model_forward.5} parent=0 // pred_fallthru
    _
  // Predicated region
  $region6: #{model_forward.5} parent=0 // pred_check
    _
  $region7: #{model_forward.5} parent=0 // pred_check_branch
    %22 = sbr.rel (0) target = $region9
  $region8: #{model_forward.5} parent=0 // pred_region
    _
  $region9: #{model_forward.5} parent=0 // pred_fallthru
    _
  // Predicated region
  $region10: #{model_forward.5} parent=0 // pred_check
    _
  $region11: #{model_forward.5} parent=0 // pred_check_branch
    %24 = sbr.rel (0) target = $region13
  $region12: #{model_forward.5} parent=0 // pred_region
    _
  $region13: #{model_forward.5} parent=0 // pred_fallthru
    _
  // Predicated region
  $region14: #{model_forward.5} parent=0 // pred_check
    _
  $region15: #{model_forward.5} parent=0 // pred_check_branch
    %26 = sbr.rel (0) target = $region17
  $region16: #{model_forward.5} parent=0 // pred_region
    _
  $region17: #{model_forward.5} parent=0 // pred_fallthru
    _
  // Predicated region
  $region18: #{model_forward.5} parent=0 // pred_check
    _
  $region19: #{model_forward.5} parent=0 // pred_check_branch
    %28 = sbr.rel (0) target = $region21
  $region20: #{model_forward.5} parent=0 // pred_region
    _
  $region21: #{model_forward.5} parent=0 // pred_fallthru
    _
  // Predicated region
  $region22: #{model_forward.5} parent=0 // pred_check
    _
  $region23: #{model_forward.5} parent=0 // pred_check_branch
    %30 = sbr.rel (0) target = $region25
  $region24: #{model_forward.5} parent=0 // pred_region
    _
  $region25: #{model_forward.5} parent=0 // pred_fallthru
    _
  // Predicated region
  $region26: #{model_forward.5} parent=0 // pred_check
    _
  $region27: #{model_forward.5} parent=0 // pred_check_branch
    %32 = sbr.rel (0) target = $region29
  $region28: #{model_forward.5} parent=0 // pred_region
    _
  $region29: #{model_forward.5} parent=0 // pred_fallthru
    _
  // Predicated region
  $region30: #{model_forward.5} parent=0 // pred_check
    _
  $region31: #{model_forward.5} parent=0 // pred_check_branch
    %34 = sbr.rel (0) target = $region33
  $region32: #{model_forward.5} parent=0 // pred_region
    _
  $region33: #{model_forward.5} parent=0 // pred_fallthru
    _
  // Predicated region
  $region34: #{model_forward.5} parent=0 // pred_check
    _
  $region35: #{model_forward.5} parent=0 // pred_check_branch
    %36 = sbr.rel (0) target = $region37
  $region36: #{model_forward.5} parent=0 // pred_region
    _
  $region37: #{model_forward.5} parent=0 // pred_fallthru
    _
  // Predicated region
  $region38: #{model_forward.5} parent=0 // pred_check
    _
  $region39: #{model_forward.5} parent=0 // pred_check_branch
    %38 = sbr.rel (0) target = $region41
  $region40: #{model_forward.5} parent=0 // pred_region
    _
  $region41: #{model_forward.5} parent=0 // pred_fallthru
    _
  // Predicated region
  $region42: #{model_forward.5} parent=0 // pred_check
    _
  $region43: #{model_forward.5} parent=0 // pred_check_branch
    %40 = sbr.rel (0) target = $region45
  $region44: #{model_forward.5} parent=0 // pred_region
    _
  $region45: #{model_forward.5} parent=0 // pred_fallthru
    _
  // Predicated region
  $region46: #{model_forward.5} parent=0 // pred_check
    _
  $region47: #{model_forward.5} parent=0 // pred_check_branch
    %42 = sbr.rel (0) target = $region49
  $region48: #{model_forward.5} parent=0 // pred_region
    _
  $region49: #{model_forward.5} parent=0 // pred_fallthru
    _
  // Predicated region
  $region50: #{model_forward.5} parent=0 // pred_check
    _
  $region51: #{model_forward.5} parent=0 // pred_check_branch
    %44 = sbr.rel (0) target = $region53
  $region52: #{model_forward.5} parent=0 // pred_region
    _
  $region53: #{model_forward.5} parent=0 // pred_fallthru
    _
  // Predicated region
  $region54: #{model_forward.5} parent=0 // pred_check
    _
  $region55: #{model_forward.5} parent=0 // pred_check_branch
    %46 = sbr.rel (0) target = $region57
  $region56: #{model_forward.5} parent=0 // pred_region
    _
  $region57: #{model_forward.5} parent=0 // pred_fallthru
    _
  %v47 = vld [vmem:[%s0] sm:$0xff]
  %v48 = vld [vmem:[%s0 + $0x8] sm:$0xff]
  %v49 = vld [vmem:[%s1] sm:$0xff]
  %v50 = vld [vmem:[%s1 + $0x8] sm:$0xff]
  %v51 = vld [vmem:[%s1 + $0x10] sm:$0xff]
  %v52 = vld [vmem:[%s1 + $0x18] sm:$0xff]
  %v53 = vld [vmem:[%s2] sm:$0x1]
  %v55 = vlaneseq
  %v56 = vshrl.u32 %v55, 7
  %v57 = vsub.s32 0, %v56
  %v58 = vrot.slane %v53, %v57
  %vm60 = vcmask 261120
  %v62 = vsel %vm60, %v47, 0
  %v65 = vsel %vm60, %v48, 0
  %67 = vmatprep.subr.mxu0 0.0
  %68 = vmatpush1.msra.mxu0 %v49
  %69 = vmatprep.subr.mxu0 0.0
  %70 = vmatpush1.msra.mxu0 %v50
  %71 = vmatprep.subr.mxu0 0.0
  %72 = vmatpush1.msra.mxu0 %v51
  %73 = vmatprep.subr.mxu0 0.0
  %74 = vmatpush1.msra.mxu0 %v52
  %75 = vmatprep.subr.mxu0 0.0
  %76 = vmatpush1.msra.mxu0 0.0
  %77 = vmatprep.subr.mxu0 0.0
  %78 = vmatpush1.msra.mxu0 0.0
  %79 = vmatprep.subr.mxu0 0.0
  %80 = vmatpush1.msra.mxu0 0.0
  %81 = vmatprep.subr.mxu0 0.0
  %82 = vmatpush1.msra.mxu0 0.0
  %83 = vmatprep.subr.mxu0 0.0
  %84 = vmatpush1.msra.mxu0 0.0
  %85 = vmatprep.subr.mxu0 0.0
  %86 = vmatpush1.msra.mxu0 0.0
  %87 = vmatprep.subr.mxu0 0.0
  %88 = vmatpush1.msra.mxu0 0.0
  %89 = vmatprep.subr.mxu0 0.0
  %90 = vmatpush1.msra.mxu0 0.0
  %91 = vmatprep.subr.mxu0 0.0
  %92 = vmatpush1.msra.mxu0 0.0
  %93 = vmatprep.subr.mxu0 0.0
  %94 = vmatpush1.msra.mxu0 0.0
  %95 = vmatprep.subr.mxu0 0.0
  %96 = vmatpush1.msra.mxu0 0.0
  %97 = vmatprep.subr.mxu0 0.0
  %98 = vmatpush1.msra.mxu0 0.0
  %99 = vmatprep.subr.mxu0 0.0
  %100 = vmatpush1.msra.mxu0 0.0
  %101 = vmatprep.subr.mxu0 0.0
  %102 = vmatpush1.msra.mxu0 0.0
  %103 = vmatprep.subr.mxu0 0.0
  %104 = vmatpush1.msra.mxu0 0.0
  %105 = vmatprep.subr.mxu0 0.0
  %106 = vmatpush1.msra.mxu0 0.0
  %107 = vmatprep.subr.mxu0 0.0
  %108 = vmatpush1.msra.mxu0 0.0
  %109 = vmatprep.subr.mxu0 0.0
  %110 = vmatpush1.msra.mxu0 0.0
  %111 = vmatprep.subr.mxu0 0.0
  %112 = vmatpush1.msra.mxu0 0.0
  %113 = vmatprep.subr.mxu0 0.0
  %114 = vmatpush1.msra.mxu0 0.0
  %115 = vmatprep.subr.mxu0 0.0
  %116 = vmatpush1.msra.mxu0 0.0
  %117 = vmatprep.subr.mxu0 0.0
  %118 = vmatpush1.msra.mxu0 0.0
  %119 = vmatprep.subr.mxu0 0.0
  %120 = vmatpush1.msra.mxu0 0.0
  %121 = vmatprep.subr.mxu0 0.0
  %122 = vmatpush1.msra.mxu0 0.0
  %123 = vmatprep.subr.mxu0 0.0
  %124 = vmatpush1.msra.mxu0 0.0
  %125 = vmatprep.subr.mxu0 0.0
  %126 = vmatpush1.msra.mxu0 0.0
  %127 = vmatprep.subr.mxu0 0.0
  %128 = vmatpush1.msra.mxu0 0.0
  %129 = vmatprep.subr.mxu0 0.0
  %130 = vmatpush1.msra.mxu0 0.0
  %131 = vmatprep.mubr.f32.mxu0 0.0
  %132 = vmatmul.mubr.f32.gmra.mrb[0].mxu0 %v62
  %v133 = vpop.f32.mrb[0].mxu0
  %v134 = vadd.f32 %v58, %v133
  %v135 = vpop.f32.mrb[0].mxu0
  %136 = vmatprep.mubr.f32.mxu0 0.0
  %137 = vmatmul.mubr.f32.gmra.mrb[0].mxu0 %v65
  %v138 = vpop.f32.mrb[0].mxu0
  %v139 = vadd.f32 %v58, %v138
  %v140 = vpop.f32.mrb[0].mxu0
  %141 = vdwg.mxu0
  %143 = vrot.lane.b32.xlu0 %v134, 96
  %v144 = vpop.permute.xlu0 %143
  %vm145 = vcmask 64512
  %v146 = vsel %vm145, %v134, 0
  %v148 = vsel %vm145, %v144, 0
  %150 = vmatprep.subr.mxu0 0.0
  %151 = vmatpush1.xpose.msra.mxu0 %v148
  %152 = vmatprep.subr.mxu0 0.0
  %153 = vmatpush1.xpose.msra.mxu0 0.0
  %154 = vmatprep.subr.mxu0 0.0
  %155 = vmatpush1.xpose.msra.mxu0 0.0
  %156 = vmatprep.subr.mxu0 0.0
  %157 = vmatpush1.xpose.msra.mxu0 0.0
  %158 = vmatprep.subr.mxu0 0.0
  %159 = vmatpush1.xpose.msra.mxu0 0.0
  %160 = vmatprep.subr.mxu0 0.0
  %161 = vmatpush1.xpose.msra.mxu0 0.0
  %162 = vmatprep.subr.mxu0 0.0
  %163 = vmatpush1.xpose.msra.mxu0 0.0
  %164 = vmatprep.subr.mxu0 0.0
  %165 = vmatpush1.xpose.msra.mxu0 0.0
  %166 = vmatprep.subr.mxu0 0.0
  %167 = vmatpush1.xpose.msra.mxu0 0.0
  %168 = vmatprep.subr.mxu0 0.0
  %169 = vmatpush1.xpose.msra.mxu0 0.0
  %170 = vmatprep.subr.mxu0 0.0
  %171 = vmatpush1.xpose.msra.mxu0 0.0
  %172 = vmatprep.subr.mxu0 0.0
  %173 = vmatpush1.xpose.msra.mxu0 0.0
  %174 = vmatprep.subr.mxu0 0.0
  %175 = vmatpush1.xpose.msra.mxu0 0.0
  %176 = vmatprep.subr.mxu0 0.0
  %177 = vmatpush1.xpose.msra.mxu0 0.0
  %178 = vmatprep.subr.mxu0 0.0
  %179 = vmatpush1.xpose.msra.mxu0 0.0
  %180 = vmatprep.subr.mxu0 0.0
  %181 = vmatpush1.xpose.msra.mxu0 0.0
  %182 = vmatprep.subr.mxu0 0.0
  %183 = vmatpush1.xpose.msra.mxu0 0.0
  %184 = vmatprep.subr.mxu0 0.0
  %185 = vmatpush1.xpose.msra.mxu0 0.0
  %186 = vmatprep.subr.mxu0 0.0
  %187 = vmatpush1.xpose.msra.mxu0 0.0
  %188 = vmatprep.subr.mxu0 0.0
  %189 = vmatpush1.xpose.msra.mxu0 0.0
  %190 = vmatprep.subr.mxu0 0.0
  %191 = vmatpush1.xpose.msra.mxu0 0.0
  %192 = vmatprep.subr.mxu0 0.0
  %193 = vmatpush1.xpose.msra.mxu0 0.0
  %194 = vmatprep.subr.mxu0 0.0
  %195 = vmatpush1.xpose.msra.mxu0 0.0
  %196 = vmatprep.subr.mxu0 0.0
  %197 = vmatpush1.xpose.msra.mxu0 0.0
  %198 = vmatprep.subr.mxu0 0.0
  %199 = vmatpush1.xpose.msra.mxu0 0.0
  %200 = vmatprep.subr.mxu0 0.0
  %201 = vmatpush1.xpose.msra.mxu0 0.0
  %202 = vmatprep.subr.mxu0 0.0
  %203 = vmatpush1.xpose.msra.mxu0 0.0
  %204 = vmatprep.subr.mxu0 0.0
  %205 = vmatpush1.xpose.msra.mxu0 0.0
  %206 = vmatprep.subr.mxu0 0.0
  %207 = vmatpush1.xpose.msra.mxu0 0.0
  %208 = vmatprep.subr.mxu0 0.0
  %209 = vmatpush1.xpose.msra.mxu0 0.0
  %210 = vmatprep.subr.mxu0 0.0
  %211 = vmatpush1.xpose.msra.mxu0 0.0
  %212 = vmatprep.subr.mxu0 0.0
  %213 = vmatpush1.xpose.msra.mxu0 0.0
  %214 = vmatprep.mubr.f32.mxu0 0.0
  %215 = vmatmul.mubr.f32.gmra.mrb[0].mxu0 %v146
  %v216 = vpop.f32.mrb[0].mxu0
  %v217 = vadd.f32 0.0, %v216
  %v218 = vpop.f32.mrb[0].mxu0
  %219 = vdwg.mxu0
  %v220 = vmul.f32 %v217, 0.35355338
  %v221 = vsel %vm145, %v220, -inf
  %222 = vmax.xlane.f32.xlu0 %v221
  %v223 = vpop.xlane.xlu0 %222
  %v224 = vsub.f32 %v220, %v223
  %v225 = vmul.f32 %v224, 1.442695
  %v226 = vpow.pop %v225
  %v227 = vsel %vm145, %v226, 0.0
  %228 = vadd.xlane.f32.xlu0 %v227
  %v229 = vpop.xlane.xlu0 %228
  %v230 = vrcp.pop %v229
  %v231 = vmul.f32 %v226, %v230
  %232 = vrot.lane.b32.xlu0 %v134, 64
  %v233 = vpop.permute.xlu0 %232
  %v236 = vsel %vm145, %v231, 0
  %238 = vmatprep.subr.mxu0 0.0
  %239 = vmatpush1.msra.mxu0 %v233
  %240 = vmatprep.subr.mxu0 0.0
  %241 = vmatpush1.msra.mxu0 0.0
  %242 = vmatprep.subr.mxu0 0.0
  %243 = vmatpush1.msra.mxu0 0.0
  %244 = vmatprep.subr.mxu0 0.0
  %245 = vmatpush1.msra.mxu0 0.0
  %246 = vmatprep.subr.mxu0 0.0
  %247 = vmatpush1.msra.mxu0 0.0
  %248 = vmatprep.subr.mxu0 0.0
  %249 = vmatpush1.msra.mxu0 0.0
  %250 = vmatprep.subr.mxu0 0.0
  %251 = vmatpush1.msra.mxu0 0.0
  %252 = vmatprep.subr.mxu0 0.0
  %253 = vmatpush1.msra.mxu0 0.0
  %254 = vmatprep.subr.mxu0 0.0
  %255 = vmatpush1.msra.mxu0 0.0
  %256 = vmatprep.subr.mxu0 0.0
  %257 = vmatpush1.msra.mxu0 0.0
  %258 = vmatprep.subr.mxu0 0.0
  %259 = vmatpush1.msra.mxu0 0.0
  %260 = vmatprep.subr.mxu0 0.0
  %261 = vmatpush1.msra.mxu0 0.0
  %262 = vmatprep.subr.mxu0 0.0
  %263 = vmatpush1.msra.mxu0 0.0
  %264 = vmatprep.subr.mxu0 0.0
  %265 = vmatpush1.msra.mxu0 0.0
  %266 = vmatprep.subr.mxu0 0.0
  %267 = vmatpush1.msra.mxu0 0.0
  %268 = vmatprep.subr.mxu0 0.0
  %269 = vmatpush1.msra.mxu0 0.0
  %270 = vmatprep.subr.mxu0 0.0
  %271 = vmatpush1.msra.mxu0 0.0
  %272 = vmatprep.subr.mxu0 0.0
  %273 = vmatpush1.msra.mxu0 0.0
  %274 = vmatprep.subr.mxu0 0.0
  %275 = vmatpush1.msra.mxu0 0.0
  %276 = vmatprep.subr.mxu0 0.0
  %277 = vmatpush1.msra.mxu0 0.0
  %278 = vmatprep.subr.mxu0 0.0
  %279 = vmatpush1.msra.mxu0 0.0
  %280 = vmatprep.subr.mxu0 0.0
  %281 = vmatpush1.msra.mxu0 0.0
  %282 = vmatprep.subr.mxu0 0.0
  %283 = vmatpush1.msra.mxu0 0.0
  %284 = vmatprep.subr.mxu0 0.0
  %285 = vmatpush1.msra.mxu0 0.0
  %286 = vmatprep.subr.mxu0 0.0
  %287 = vmatpush1.msra.mxu0 0.0
  %288 = vmatprep.subr.mxu0 0.0
  %289 = vmatpush1.msra.mxu0 0.0
  %290 = vmatprep.subr.mxu0 0.0
  %291 = vmatpush1.msra.mxu0 0.0
  %292 = vmatprep.subr.mxu0 0.0
  %293 = vmatpush1.msra.mxu0 0.0
  %294 = vmatprep.subr.mxu0 0.0
  %295 = vmatpush1.msra.mxu0 0.0
  %296 = vmatprep.subr.mxu0 0.0
  %297 = vmatpush1.msra.mxu0 0.0
  %298 = vmatprep.subr.mxu0 0.0
  %299 = vmatpush1.msra.mxu0 0.0
  %300 = vmatprep.subr.mxu0 0.0
  %301 = vmatpush1.msra.mxu0 0.0
  %302 = vmatprep.mubr.f32.mxu0 0.0
  %303 = vmatmul.mubr.f32.gmra.mrb[0].mxu0 %v236
  %v304 = vpop.f32.mrb[0].mxu0
  %v305 = vadd.f32 0.0, %v304
  %v306 = vpop.f32.mrb[0].mxu0
  %307 = vdwg.mxu0
  %308 = vrot.lane.b32.xlu0 %v134, 120
  %v309 = vpop.permute.xlu0 %308
  %310 = vrot.lane.b32.xlu0 %v134, 88
  %v311 = vpop.permute.xlu0 %310
  %v312 = vsel %vm145, %v309, 0
  %v314 = vsel %vm145, %v311, 0
  %316 = vmatprep.subr.mxu0 0.0
  %317 = vmatpush1.xpose.msra.mxu0 %v314
  %318 = vmatprep.subr.mxu0 0.0
  %319 = vmatpush1.xpose.msra.mxu0 0.0
  %320 = vmatprep.subr.mxu0 0.0
  %321 = vmatpush1.xpose.msra.mxu0 0.0
  %322 = vmatprep.subr.mxu0 0.0
  %323 = vmatpush1.xpose.msra.mxu0 0.0
  %324 = vmatprep.subr.mxu0 0.0
  %325 = vmatpush1.xpose.msra.mxu0 0.0
  %326 = vmatprep.subr.mxu0 0.0
  %327 = vmatpush1.xpose.msra.mxu0 0.0
  %328 = vmatprep.subr.mxu0 0.0
  %329 = vmatpush1.xpose.msra.mxu0 0.0
  %330 = vmatprep.subr.mxu0 0.0
  %331 = vmatpush1.xpose.msra.mxu0 0.0
  %332 = vmatprep.subr.mxu0 0.0
  %333 = vmatpush1.xpose.msra.mxu0 0.0
  %334 = vmatprep.subr.mxu0 0.0
  %335 = vmatpush1.xpose.msra.mxu0 0.0
  %336 = vmatprep.subr.mxu0 0.0
  %337 = vmatpush1.xpose.msra.mxu0 0.0
  %338 = vmatprep.subr.mxu0 0.0
  %339 = vmatpush1.xpose.msra.mxu0 0.0
  %340 = vmatprep.subr.mxu0 0.0
  %341 = vmatpush1.xpose.msra.mxu0 0.0
  %342 = vmatprep.subr.mxu0 0.0
  %343 = vmatpush1.xpose.msra.mxu0 0.0
  %344 = vmatprep.subr.mxu0 0.0
  %345 = vmatpush1.xpose.msra.mxu0 0.0
  %346 = vmatprep.subr.mxu0 0.0
  %347 = vmatpush1.xpose.msra.mxu0 0.0
  %348 = vmatprep.subr.mxu0 0.0
  %349 = vmatpush1.xpose.msra.mxu0 0.0
  %350 = vmatprep.subr.mxu0 0.0
  %351 = vmatpush1.xpose.msra.mxu0 0.0
  %352 = vmatprep.subr.mxu0 0.0
  %353 = vmatpush1.xpose.msra.mxu0 0.0
  %354 = vmatprep.subr.mxu0 0.0
  %355 = vmatpush1.xpose.msra.mxu0 0.0
  %356 = vmatprep.subr.mxu0 0.0
  %357 = vmatpush1.xpose.msra.mxu0 0.0
  %358 = vmatprep.subr.mxu0 0.0
  %359 = vmatpush1.xpose.msra.mxu0 0.0
  %360 = vmatprep.subr.mxu0 0.0
  %361 = vmatpush1.xpose.msra.mxu0 0.0
  %362 = vmatprep.subr.mxu0 0.0
  %363 = vmatpush1.xpose.msra.mxu0 0.0
  %364 = vmatprep.subr.mxu0 0.0
  %365 = vmatpush1.xpose.msra.mxu0 0.0
  %366 = vmatprep.subr.mxu0 0.0
  %367 = vmatpush1.xpose.msra.mxu0 0.0
  %368 = vmatprep.subr.mxu0 0.0
  %369 = vmatpush1.xpose.msra.mxu0 0.0
  %370 = vmatprep.subr.mxu0 0.0
  %371 = vmatpush1.xpose.msra.mxu0 0.0
  %372 = vmatprep.subr.mxu0 0.0
  %373 = vmatpush1.xpose.msra.mxu0 0.0
  %374 = vmatprep.subr.mxu0 0.0
  %375 = vmatpush1.xpose.msra.mxu0 0.0
  %376 = vmatprep.subr.mxu0 0.0
  %377 = vmatpush1.xpose.msra.mxu0 0.0
  %378 = vmatprep.subr.mxu0 0.0
  %379 = vmatpush1.xpose.msra.mxu0 0.0
  %380 = vmatprep.mubr.f32.mxu0 0.0
  %381 = vmatmul.mubr.f32.gmra.mrb[0].mxu0 %v312
  %v382 = vpop.f32.mrb[0].mxu0
  %v383 = vadd.f32 0.0, %v382
  %v384 = vpop.f32.mrb[0].mxu0
  %385 = vdwg.mxu0
  %v386 = vmul.f32 %v383, 0.35355338
  %v387 = vsel %vm145, %v386, -inf
  %388 = vmax.xlane.f32.xlu0 %v387
  %v389 = vpop.xlane.xlu0 %388
  %v390 = vsub.f32 %v386, %v389
  %v391 = vmul.f32 %v390, 1.442695
  %v392 = vpow.pop %v391
  %v393 = vsel %vm145, %v392, 0.0
  %394 = vadd.xlane.f32.xlu0 %v393
  %v395 = vpop.xlane.xlu0 %394
  %v396 = vrcp.pop %v395
  %v397 = vmul.f32 %v392, %v396
  %398 = vrot.lane.b32.xlu0 %v134, 56
  %v399 = vpop.permute.xlu0 %398
  %v402 = vsel %vm145, %v397, 0
  %404 = vmatprep.subr.mxu0 0.0
  %405 = vmatpush1.msra.mxu0 %v399
  %406 = vmatprep.subr.mxu0 0.0
  %407 = vmatpush1.msra.mxu0 0.0
  %408 = vmatprep.subr.mxu0 0.0
  %409 = vmatpush1.msra.mxu0 0.0
  %410 = vmatprep.subr.mxu0 0.0
  %411 = vmatpush1.msra.mxu0 0.0
  %412 = vmatprep.subr.mxu0 0.0
  %413 = vmatpush1.msra.mxu0 0.0
  %414 = vmatprep.subr.mxu0 0.0
  %415 = vmatpush1.msra.mxu0 0.0
  %416 = vmatprep.subr.mxu0 0.0
  %417 = vmatpush1.msra.mxu0 0.0
  %418 = vmatprep.subr.mxu0 0.0
  %419 = vmatpush1.msra.mxu0 0.0
  %420 = vmatprep.subr.mxu0 0.0
  %421 = vmatpush1.msra.mxu0 0.0
  %422 = vmatprep.subr.mxu0 0.0
  %423 = vmatpush1.msra.mxu0 0.0
  %424 = vmatprep.subr.mxu0 0.0
  %425 = vmatpush1.msra.mxu0 0.0
  %426 = vmatprep.subr.mxu0 0.0
  %427 = vmatpush1.msra.mxu0 0.0
  %428 = vmatprep.subr.mxu0 0.0
  %429 = vmatpush1.msra.mxu0 0.0
  %430 = vmatprep.subr.mxu0 0.0
  %431 = vmatpush1.msra.mxu0 0.0
  %432 = vmatprep.subr.mxu0 0.0
  %433 = vmatpush1.msra.mxu0 0.0
  %434 = vmatprep.subr.mxu0 0.0
  %435 = vmatpush1.msra.mxu0 0.0
  %436 = vmatprep.subr.mxu0 0.0
  %437 = vmatpush1.msra.mxu0 0.0
  %438 = vmatprep.subr.mxu0 0.0
  %439 = vmatpush1.msra.mxu0 0.0
  %440 = vmatprep.subr.mxu0 0.0
  %441 = vmatpush1.msra.mxu0 0.0
  %442 = vmatprep.subr.mxu0 0.0
  %443 = vmatpush1.msra.mxu0 0.0
  %444 = vmatprep.subr.mxu0 0.0
  %445 = vmatpush1.msra.mxu0 0.0
  %446 = vmatprep.subr.mxu0 0.0
  %447 = vmatpush1.msra.mxu0 0.0
  %448 = vmatprep.subr.mxu0 0.0
  %449 = vmatpush1.msra.mxu0 0.0
  %450 = vmatprep.subr.mxu0 0.0
  %451 = vmatpush1.msra.mxu0 0.0
  %452 = vmatprep.subr.mxu0 0.0
  %453 = vmatpush1.msra.mxu0 0.0
  %454 = vmatprep.subr.mxu0 0.0
  %455 = vmatpush1.msra.mxu0 0.0
  %456 = vmatprep.subr.mxu0 0.0
  %457 = vmatpush1.msra.mxu0 0.0
  %458 = vmatprep.subr.mxu0 0.0
  %459 = vmatpush1.msra.mxu0 0.0
  %460 = vmatprep.subr.mxu0 0.0
  %461 = vmatpush1.msra.mxu0 0.0
  %462 = vmatprep.subr.mxu0 0.0
  %463 = vmatpush1.msra.mxu0 0.0
  %464 = vmatprep.subr.mxu0 0.0
  %465 = vmatpush1.msra.mxu0 0.0
  %466 = vmatprep.subr.mxu0 0.0
  %467 = vmatpush1.msra.mxu0 0.0
  %468 = vmatprep.mubr.f32.mxu0 0.0
  %469 = vmatmul.mubr.f32.gmra.mrb[0].mxu0 %v402
  %v470 = vpop.f32.mrb[0].mxu0
  %v471 = vadd.f32 0.0, %v470
  %v472 = vpop.f32.mrb[0].mxu0
  %473 = vdwg.mxu0
  %474 = vrot.lane.b32.xlu0 %v134, 112
  %v475 = vpop.permute.xlu0 %474
  %476 = vrot.lane.b32.xlu0 %v134, 80
  %v477 = vpop.permute.xlu0 %476
  %v478 = vsel %vm145, %v475, 0
  %v480 = vsel %vm145, %v477, 0
  %482 = vmatprep.subr.mxu0 0.0
  %483 = vmatpush1.xpose.msra.mxu0 %v480
  %484 = vmatprep.subr.mxu0 0.0
  %485 = vmatpush1.xpose.msra.mxu0 0.0
  %486 = vmatprep.subr.mxu0 0.0
  %487 = vmatpush1.xpose.msra.mxu0 0.0
  %488 = vmatprep.subr.mxu0 0.0
  %489 = vmatpush1.xpose.msra.mxu0 0.0
  %490 = vmatprep.subr.mxu0 0.0
  %491 = vmatpush1.xpose.msra.mxu0 0.0
  %492 = vmatprep.subr.mxu0 0.0
  %493 = vmatpush1.xpose.msra.mxu0 0.0
  %494 = vmatprep.subr.mxu0 0.0
  %495 = vmatpush1.xpose.msra.mxu0 0.0
  %496 = vmatprep.subr.mxu0 0.0
  %497 = vmatpush1.xpose.msra.mxu0 0.0
  %498 = vmatprep.subr.mxu0 0.0
  %499 = vmatpush1.xpose.msra.mxu0 0.0
  %500 = vmatprep.subr.mxu0 0.0
  %501 = vmatpush1.xpose.msra.mxu0 0.0
  %502 = vmatprep.subr.mxu0 0.0
  %503 = vmatpush1.xpose.msra.mxu0 0.0
  %504 = vmatprep.subr.mxu0 0.0
  %505 = vmatpush1.xpose.msra.mxu0 0.0
  %506 = vmatprep.subr.mxu0 0.0
  %507 = vmatpush1.xpose.msra.mxu0 0.0
  %508 = vmatprep.subr.mxu0 0.0
  %509 = vmatpush1.xpose.msra.mxu0 0.0
  %510 = vmatprep.subr.mxu0 0.0
  %511 = vmatpush1.xpose.msra.mxu0 0.0
  %512 = vmatprep.subr.mxu0 0.0
  %513 = vmatpush1.xpose.msra.mxu0 0.0
  %514 = vmatprep.subr.mxu0 0.0
  %515 = vmatpush1.xpose.msra.mxu0 0.0
  %516 = vmatprep.subr.mxu0 0.0
  %517 = vmatpush1.xpose.msra.mxu0 0.0
  %518 = vmatprep.subr.mxu0 0.0
  %519 = vmatpush1.xpose.msra.mxu0 0.0
  %520 = vmatprep.subr.mxu0 0.0
  %521 = vmatpush1.xpose.msra.mxu0 0.0
  %522 = vmatprep.subr.mxu0 0.0
  %523 = vmatpush1.xpose.msra.mxu0 0.0
  %524 = vmatprep.subr.mxu0 0.0
  %525 = vmatpush1.xpose.msra.mxu0 0.0
  %526 = vmatprep.subr.mxu0 0.0
  %527 = vmatpush1.xpose.msra.mxu0 0.0
  %528 = vmatprep.subr.mxu0 0.0
  %529 = vmatpush1.xpose.msra.mxu0 0.0
  %530 = vmatprep.subr.mxu0 0.0
  %531 = vmatpush1.xpose.msra.mxu0 0.0
  %532 = vmatprep.subr.mxu0 0.0
  %533 = vmatpush1.xpose.msra.mxu0 0.0
  %534 = vmatprep.subr.mxu0 0.0
  %535 = vmatpush1.xpose.msra.mxu0 0.0
  %536 = vmatprep.subr.mxu0 0.0
  %537 = vmatpush1.xpose.msra.mxu0 0.0
  %538 = vmatprep.subr.mxu0 0.0
  %539 = vmatpush1.xpose.msra.mxu0 0.0
  %540 = vmatprep.subr.mxu0 0.0
  %541 = vmatpush1.xpose.msra.mxu0 0.0
  %542 = vmatprep.subr.mxu0 0.0
  %543 = vmatpush1.xpose.msra.mxu0 0.0
  %544 = vmatprep.subr.mxu0 0.0
  %545 = vmatpush1.xpose.msra.mxu0 0.0
  %546 = vmatprep.mubr.f32.mxu0 0.0
  %547 = vmatmul.mubr.f32.gmra.mrb[0].mxu0 %v478
  %v548 = vpop.f32.mrb[0].mxu0
  %v549 = vadd.f32 0.0, %v548
  %v550 = vpop.f32.mrb[0].mxu0
  %551 = vdwg.mxu0
  %v552 = vmul.f32 %v549, 0.35355338
  %v553 = vsel %vm145, %v552, -inf
  %554 = vmax.xlane.f32.xlu0 %v553
  %v555 = vpop.xlane.xlu0 %554
  %v556 = vsub.f32 %v552, %v555
  %v557 = vmul.f32 %v556, 1.442695
  %v558 = vpow.pop %v557
  %v559 = vsel %vm145, %v558, 0.0
  %560 = vadd.xlane.f32.xlu0 %v559
  %v561 = vpop.xlane.xlu0 %560
  %v562 = vrcp.pop %v561
  %v563 = vmul.f32 %v558, %v562
  %564 = vrot.lane.b32.xlu0 %v134, 48
  %v565 = vpop.permute.xlu0 %564
  %v568 = vsel %vm145, %v563, 0
  %570 = vmatprep.subr.mxu0 0.0
  %571 = vmatpush1.msra.mxu0 %v565
  %572 = vmatprep.subr.mxu0 0.0
  %573 = vmatpush1.msra.mxu0 0.0
  %574 = vmatprep.subr.mxu0 0.0
  %575 = vmatpush1.msra.mxu0 0.0
  %576 = vmatprep.subr.mxu0 0.0
  %577 = vmatpush1.msra.mxu0 0.0
  %578 = vmatprep.subr.mxu0 0.0
  %579 = vmatpush1.msra.mxu0 0.0
  %580 = vmatprep.subr.mxu0 0.0
  %581 = vmatpush1.msra.mxu0 0.0
  %582 = vmatprep.subr.mxu0 0.0
  %583 = vmatpush1.msra.mxu0 0.0
  %584 = vmatprep.subr.mxu0 0.0
  %585 = vmatpush1.msra.mxu0 0.0
  %586 = vmatprep.subr.mxu0 0.0
  %587 = vmatpush1.msra.mxu0 0.0
  %588 = vmatprep.subr.mxu0 0.0
  %589 = vmatpush1.msra.mxu0 0.0
  %590 = vmatprep.subr.mxu0 0.0
  %591 = vmatpush1.msra.mxu0 0.0
  %592 = vmatprep.subr.mxu0 0.0
  %593 = vmatpush1.msra.mxu0 0.0
  %594 = vmatprep.subr.mxu0 0.0
  %595 = vmatpush1.msra.mxu0 0.0
  %596 = vmatprep.subr.mxu0 0.0
  %597 = vmatpush1.msra.mxu0 0.0
  %598 = vmatprep.subr.mxu0 0.0
  %599 = vmatpush1.msra.mxu0 0.0
  %600 = vmatprep.subr.mxu0 0.0
  %601 = vmatpush1.msra.mxu0 0.0
  %602 = vmatprep.subr.mxu0 0.0
  %603 = vmatpush1.msra.mxu0 0.0
  %604 = vmatprep.subr.mxu0 0.0
  %605 = vmatpush1.msra.mxu0 0.0
  %606 = vmatprep.subr.mxu0 0.0
  %607 = vmatpush1.msra.mxu0 0.0
  %608 = vmatprep.subr.mxu0 0.0
  %609 = vmatpush1.msra.mxu0 0.0
  %610 = vmatprep.subr.mxu0 0.0
  %611 = vmatpush1.msra.mxu0 0.0
  %612 = vmatprep.subr.mxu0 0.0
  %613 = vmatpush1.msra.mxu0 0.0
  %614 = vmatprep.subr.mxu0 0.0
  %615 = vmatpush1.msra.mxu0 0.0
  %616 = vmatprep.subr.mxu0 0.0
  %617 = vmatpush1.msra.mxu0 0.0
  %618 = vmatprep.subr.mxu0 0.0
  %619 = vmatpush1.msra.mxu0 0.0
  %620 = vmatprep.subr.mxu0 0.0
  %621 = vmatpush1.msra.mxu0 0.0
  %622 = vmatprep.subr.mxu0 0.0
  %623 = vmatpush1.msra.mxu0 0.0
  %624 = vmatprep.subr.mxu0 0.0
  %625 = vmatpush1.msra.mxu0 0.0
  %626 = vmatprep.subr.mxu0 0.0
  %627 = vmatpush1.msra.mxu0 0.0
  %628 = vmatprep.subr.mxu0 0.0
  %629 = vmatpush1.msra.mxu0 0.0
  %630 = vmatprep.subr.mxu0 0.0
  %631 = vmatpush1.msra.mxu0 0.0
  %632 = vmatprep.subr.mxu0 0.0
  %633 = vmatpush1.msra.mxu0 0.0
  %634 = vmatprep.mubr.f32.mxu0 0.0
  %635 = vmatmul.mubr.f32.gmra.mrb[0].mxu0 %v568
  %v636 = vpop.f32.mrb[0].mxu0
  %v637 = vadd.f32 0.0, %v636
  %v638 = vpop.f32.mrb[0].mxu0
  %639 = vdwg.mxu0
  %640 = vrot.lane.b32.xlu0 %v134, 104
  %v641 = vpop.permute.xlu0 %640
  %642 = vrot.lane.b32.xlu0 %v134, 72
  %v643 = vpop.permute.xlu0 %642
  %v644 = vsel %vm145, %v641, 0
  %v646 = vsel %vm145, %v643, 0
  %648 = vmatprep.subr.mxu0 0.0
  %649 = vmatpush1.xpose.msra.mxu0 %v646
  %650 = vmatprep.subr.mxu0 0.0
  %651 = vmatpush1.xpose.msra.mxu0 0.0
  %652 = vmatprep.subr.mxu0 0.0
  %653 = vmatpush1.xpose.msra.mxu0 0.0
  %654 = vmatprep.subr.mxu0 0.0
  %655 = vmatpush1.xpose.msra.mxu0 0.0
  %656 = vmatprep.subr.mxu0 0.0
  %657 = vmatpush1.xpose.msra.mxu0 0.0
  %658 = vmatprep.subr.mxu0 0.0
  %659 = vmatpush1.xpose.msra.mxu0 0.0
  %660 = vmatprep.subr.mxu0 0.0
  %661 = vmatpush1.xpose.msra.mxu0 0.0
  %662 = vmatprep.subr.mxu0 0.0
  %663 = vmatpush1.xpose.msra.mxu0 0.0
  %664 = vmatprep.subr.mxu0 0.0
  %665 = vmatpush1.xpose.msra.mxu0 0.0
  %666 = vmatprep.subr.mxu0 0.0
  %667 = vmatpush1.xpose.msra.mxu0 0.0
  %668 = vmatprep.subr.mxu0 0.0
  %669 = vmatpush1.xpose.msra.mxu0 0.0
  %670 = vmatprep.subr.mxu0 0.0
  %671 = vmatpush1.xpose.msra.mxu0 0.0
  %672 = vmatprep.subr.mxu0 0.0
  %673 = vmatpush1.xpose.msra.mxu0 0.0
  %674 = vmatprep.subr.mxu0 0.0
  %675 = vmatpush1.xpose.msra.mxu0 0.0
  %676 = vmatprep.subr.mxu0 0.0
  %677 = vmatpush1.xpose.msra.mxu0 0.0
  %678 = vmatprep.subr.mxu0 0.0
  %679 = vmatpush1.xpose.msra.mxu0 0.0
  %680 = vmatprep.subr.mxu0 0.0
  %681 = vmatpush1.xpose.msra.mxu0 0.0
  %682 = vmatprep.subr.mxu0 0.0
  %683 = vmatpush1.xpose.msra.mxu0 0.0
  %684 = vmatprep.subr.mxu0 0.0
  %685 = vmatpush1.xpose.msra.mxu0 0.0
  %686 = vmatprep.subr.mxu0 0.0
  %687 = vmatpush1.xpose.msra.mxu0 0.0
  %688 = vmatprep.subr.mxu0 0.0
  %689 = vmatpush1.xpose.msra.mxu0 0.0
  %690 = vmatprep.subr.mxu0 0.0
  %691 = vmatpush1.xpose.msra.mxu0 0.0
  %692 = vmatprep.subr.mxu0 0.0
  %693 = vmatpush1.xpose.msra.mxu0 0.0
  %694 = vmatprep.subr.mxu0 0.0
  %695 = vmatpush1.xpose.msra.mxu0 0.0
  %696 = vmatprep.subr.mxu0 0.0
  %697 = vmatpush1.xpose.msra.mxu0 0.0
  %698 = vmatprep.subr.mxu0 0.0
  %699 = vmatpush1.xpose.msra.mxu0 0.0
  %700 = vmatprep.subr.mxu0 0.0
  %701 = vmatpush1.xpose.msra.mxu0 0.0
  %702 = vmatprep.subr.mxu0 0.0
  %703 = vmatpush1.xpose.msra.mxu0 0.0
  %704 = vmatprep.subr.mxu0 0.0
  %705 = vmatpush1.xpose.msra.mxu0 0.0
  %706 = vmatprep.subr.mxu0 0.0
  %707 = vmatpush1.xpose.msra.mxu0 0.0
  %708 = vmatprep.subr.mxu0 0.0
  %709 = vmatpush1.xpose.msra.mxu0 0.0
  %710 = vmatprep.subr.mxu0 0.0
  %711 = vmatpush1.xpose.msra.mxu0 0.0
  %712 = vmatprep.mubr.f32.mxu0 0.0
  %713 = vmatmul.mubr.f32.gmra.mrb[0].mxu0 %v644
  %v714 = vpop.f32.mrb[0].mxu0
  %v715 = vadd.f32 0.0, %v714
  %v716 = vpop.f32.mrb[0].mxu0
  %717 = vdwg.mxu0
  %v718 = vmul.f32 %v715, 0.35355338
  %v719 = vsel %vm145, %v718, -inf
  %720 = vmax.xlane.f32.xlu0 %v719
  %v721 = vpop.xlane.xlu0 %720
  %v722 = vsub.f32 %v718, %v721
  %v723 = vmul.f32 %v722, 1.442695
  %v724 = vpow.pop %v723
  %v725 = vsel %vm145, %v724, 0.0
  %726 = vadd.xlane.f32.xlu0 %v725
  %v727 = vpop.xlane.xlu0 %726
  %v728 = vrcp.pop %v727
  %v729 = vmul.f32 %v724, %v728
  %730 = vrot.lane.b32.xlu0 %v134, 40
  %v731 = vpop.permute.xlu0 %730
  %v734 = vsel %vm145, %v729, 0
  %736 = vmatprep.subr.mxu0 0.0
  %737 = vmatpush1.msra.mxu0 %v731
  %738 = vmatprep.subr.mxu0 0.0
  %739 = vmatpush1.msra.mxu0 0.0
  %740 = vmatprep.subr.mxu0 0.0
  %741 = vmatpush1.msra.mxu0 0.0
  %742 = vmatprep.subr.mxu0 0.0
  %743 = vmatpush1.msra.mxu0 0.0
  %744 = vmatprep.subr.mxu0 0.0
  %745 = vmatpush1.msra.mxu0 0.0
  %746 = vmatprep.subr.mxu0 0.0
  %747 = vmatpush1.msra.mxu0 0.0
  %748 = vmatprep.subr.mxu0 0.0
  %749 = vmatpush1.msra.mxu0 0.0
  %750 = vmatprep.subr.mxu0 0.0
  %751 = vmatpush1.msra.mxu0 0.0
  %752 = vmatprep.subr.mxu0 0.0
  %753 = vmatpush1.msra.mxu0 0.0
  %754 = vmatprep.subr.mxu0 0.0
  %755 = vmatpush1.msra.mxu0 0.0
  %756 = vmatprep.subr.mxu0 0.0
  %757 = vmatpush1.msra.mxu0 0.0
  %758 = vmatprep.subr.mxu0 0.0
  %759 = vmatpush1.msra.mxu0 0.0
  %760 = vmatprep.subr.mxu0 0.0
  %761 = vmatpush1.msra.mxu0 0.0
  %762 = vmatprep.subr.mxu0 0.0
  %763 = vmatpush1.msra.mxu0 0.0
  %764 = vmatprep.subr.mxu0 0.0
  %765 = vmatpush1.msra.mxu0 0.0
  %766 = vmatprep.subr.mxu0 0.0
  %767 = vmatpush1.msra.mxu0 0.0
  %768 = vmatprep.subr.mxu0 0.0
  %769 = vmatpush1.msra.mxu0 0.0
  %770 = vmatprep.subr.mxu0 0.0
  %771 = vmatpush1.msra.mxu0 0.0
  %772 = vmatprep.subr.mxu0 0.0
  %773 = vmatpush1.msra.mxu0 0.0
  %774 = vmatprep.subr.mxu0 0.0
  %775 = vmatpush1.msra.mxu0 0.0
  %776 = vmatprep.subr.mxu0 0.0
  %777 = vmatpush1.msra.mxu0 0.0
  %778 = vmatprep.subr.mxu0 0.0
  %779 = vmatpush1.msra.mxu0 0.0
  %780 = vmatprep.subr.mxu0 0.0
  %781 = vmatpush1.msra.mxu0 0.0
  %782 = vmatprep.subr.mxu0 0.0
  %783 = vmatpush1.msra.mxu0 0.0
  %784 = vmatprep.subr.mxu0 0.0
  %785 = vmatpush1.msra.mxu0 0.0
  %786 = vmatprep.subr.mxu0 0.0
  %787 = vmatpush1.msra.mxu0 0.0
  %788 = vmatprep.subr.mxu0 0.0
  %789 = vmatpush1.msra.mxu0 0.0
  %790 = vmatprep.subr.mxu0 0.0
  %791 = vmatpush1.msra.mxu0 0.0
  %792 = vmatprep.subr.mxu0 0.0
  %793 = vmatpush1.msra.mxu0 0.0
  %794 = vmatprep.subr.mxu0 0.0
  %795 = vmatpush1.msra.mxu0 0.0
  %796 = vmatprep.subr.mxu0 0.0
  %797 = vmatpush1.msra.mxu0 0.0
  %798 = vmatprep.subr.mxu0 0.0
  %799 = vmatpush1.msra.mxu0 0.0
  %800 = vmatprep.mubr.f32.mxu0 0.0
  %801 = vmatmul.mubr.f32.gmra.mrb[0].mxu0 %v734
  %v802 = vpop.f32.mrb[0].mxu0
  %v803 = vadd.f32 0.0, %v802
  %v804 = vpop.f32.mrb[0].mxu0
  %805 = vdwg.mxu0
  %807 = vrot.lane.b32.xlu0 %v471, 8
  %v808 = vpop.permute.xlu0 %807
  %811 = vrot.lane.b32.xlu0 %v637, 16
  %v812 = vpop.permute.xlu0 %811
  %815 = vrot.lane.b32.xlu0 %v803, 24
  %v816 = vpop.permute.xlu0 %815
  %v818 = vsel %vm145, %v305, %v808
  %vm819 = vcmask 130048
  %v820 = vsel %vm819, %v818, %v812
  %vm821 = vcmask 195584
  %v822 = vsel %vm821, %v820, %v816
  %824 = vrot.lane.b32.xlu0 %v139, 96
  %v825 = vpop.permute.xlu0 %824
  %v826 = vsel %vm145, %v139, 0
  %v828 = vsel %vm145, %v825, 0
  %830 = vmatprep.subr.mxu0 0.0
  %831 = vmatpush1.xpose.msra.mxu0 %v828
  %832 = vmatprep.subr.mxu0 0.0
  %833 = vmatpush1.xpose.msra.mxu0 0.0
  %834 = vmatprep.subr.mxu0 0.0
  %835 = vmatpush1.xpose.msra.mxu0 0.0
  %836 = vmatprep.subr.mxu0 0.0
  %837 = vmatpush1.xpose.msra.mxu0 0.0
  %838 = vmatprep.subr.mxu0 0.0
  %839 = vmatpush1.xpose.msra.mxu0 0.0
  %840 = vmatprep.subr.mxu0 0.0
  %841 = vmatpush1.xpose.msra.mxu0 0.0
  %842 = vmatprep.subr.mxu0 0.0
  %843 = vmatpush1.xpose.msra.mxu0 0.0
  %844 = vmatprep.subr.mxu0 0.0
  %845 = vmatpush1.xpose.msra.mxu0 0.0
  %846 = vmatprep.subr.mxu0 0.0
  %847 = vmatpush1.xpose.msra.mxu0 0.0
  %848 = vmatprep.subr.mxu0 0.0
  %849 = vmatpush1.xpose.msra.mxu0 0.0
  %850 = vmatprep.subr.mxu0 0.0
  %851 = vmatpush1.xpose.msra.mxu0 0.0
  %852 = vmatprep.subr.mxu0 0.0
  %853 = vmatpush1.xpose.msra.mxu0 0.0
  %854 = vmatprep.subr.mxu0 0.0
  %855 = vmatpush1.xpose.msra.mxu0 0.0
  %856 = vmatprep.subr.mxu0 0.0
  %857 = vmatpush1.xpose.msra.mxu0 0.0
  %858 = vmatprep.subr.mxu0 0.0
  %859 = vmatpush1.xpose.msra.mxu0 0.0
  %860 = vmatprep.subr.mxu0 0.0
  %861 = vmatpush1.xpose.msra.mxu0 0.0
  %862 = vmatprep.subr.mxu0 0.0
  %863 = vmatpush1.xpose.msra.mxu0 0.0
  %864 = vmatprep.subr.mxu0 0.0
  %865 = vmatpush1.xpose.msra.mxu0 0.0
  %866 = vmatprep.subr.mxu0 0.0
  %867 = vmatpush1.xpose.msra.mxu0 0.0
  %868 = vmatprep.subr.mxu0 0.0
  %869 = vmatpush1.xpose.msra.mxu0 0.0
  %870 = vmatprep.subr.mxu0 0.0
  %871 = vmatpush1.xpose.msra.mxu0 0.0
  %872 = vmatprep.subr.mxu0 0.0
  %873 = vmatpush1.xpose.msra.mxu0 0.0
  %874 = vmatprep.subr.mxu0 0.0
  %875 = vmatpush1.xpose.msra.mxu0 0.0
  %876 = vmatprep.subr.mxu0 0.0
  %877 = vmatpush1.xpose.msra.mxu0 0.0
  %878 = vmatprep.subr.mxu0 0.0
  %879 = vmatpush1.xpose.msra.mxu0 0.0
  %880 = vmatprep.subr.mxu0 0.0
  %881 = vmatpush1.xpose.msra.mxu0 0.0
  %882 = vmatprep.subr.mxu0 0.0
  %883 = vmatpush1.xpose.msra.mxu0 0.0
  %884 = vmatprep.subr.mxu0 0.0
  %885 = vmatpush1.xpose.msra.mxu0 0.0
  %886 = vmatprep.subr.mxu0 0.0
  %887 = vmatpush1.xpose.msra.mxu0 0.0
  %888 = vmatprep.subr.mxu0 0.0
  %889 = vmatpush1.xpose.msra.mxu0 0.0
  %890 = vmatprep.subr.mxu0 0.0
  %891 = vmatpush1.xpose.msra.mxu0 0.0
  %892 = vmatprep.subr.mxu0 0.0
  %893 = vmatpush1.xpose.msra.mxu0 0.0
  %894 = vmatprep.mubr.f32.mxu0 0.0
  %895 = vmatmul.mubr.f32.gmra.mrb[0].mxu0 %v826
  %v896 = vpop.f32.mrb[0].mxu0
  %v897 = vadd.f32 0.0, %v896
  %v898 = vpop.f32.mrb[0].mxu0
  %899 = vdwg.mxu0
  %v900 = vmul.f32 %v897, 0.35355338
  %v901 = vsel %vm145, %v900, -inf
  %902 = vmax.xlane.f32.xlu0 %v901
  %v903 = vpop.xlane.xlu0 %902
  %v904 = vsub.f32 %v900, %v903
  %v905 = vmul.f32 %v904, 1.442695
  %v906 = vpow.pop %v905
  %v907 = vsel %vm145, %v906, 0.0
  %908 = vadd.xlane.f32.xlu0 %v907
  %v909 = vpop.xlane.xlu0 %908
  %v910 = vrcp.pop %v909
  %v911 = vmul.f32 %v906, %v910
  %912 = vrot.lane.b32.xlu0 %v139, 64
  %v913 = vpop.permute.xlu0 %912
  %v916 = vsel %vm145, %v911, 0
  %918 = vmatprep.subr.mxu0 0.0
  %919 = vmatpush1.msra.mxu0 %v913
  %920 = vmatprep.subr.mxu0 0.0
  %921 = vmatpush1.msra.mxu0 0.0
  %922 = vmatprep.subr.mxu0 0.0
  %923 = vmatpush1.msra.mxu0 0.0
  %924 = vmatprep.subr.mxu0 0.0
  %925 = vmatpush1.msra.mxu0 0.0
  %926 = vmatprep.subr.mxu0 0.0
  %927 = vmatpush1.msra.mxu0 0.0
  %928 = vmatprep.subr.mxu0 0.0
  %929 = vmatpush1.msra.mxu0 0.0
  %930 = vmatprep.subr.mxu0 0.0
  %931 = vmatpush1.msra.mxu0 0.0
  %932 = vmatprep.subr.mxu0 0.0
  %933 = vmatpush1.msra.mxu0 0.0
  %934 = vmatprep.subr.mxu0 0.0
  %935 = vmatpush1.msra.mxu0 0.0
  %936 = vmatprep.subr.mxu0 0.0
  %937 = vmatpush1.msra.mxu0 0.0
  %938 = vmatprep.subr.mxu0 0.0
  %939 = vmatpush1.msra.mxu0 0.0
  %940 = vmatprep.subr.mxu0 0.0
  %941 = vmatpush1.msra.mxu0 0.0
  %942 = vmatprep.subr.mxu0 0.0
  %943 = vmatpush1.msra.mxu0 0.0
  %944 = vmatprep.subr.mxu0 0.0
  %945 = vmatpush1.msra.mxu0 0.0
  %946 = vmatprep.subr.mxu0 0.0
  %947 = vmatpush1.msra.mxu0 0.0
  %948 = vmatprep.subr.mxu0 0.0
  %949 = vmatpush1.msra.mxu0 0.0
  %950 = vmatprep.subr.mxu0 0.0
  %951 = vmatpush1.msra.mxu0 0.0
  %952 = vmatprep.subr.mxu0 0.0
  %953 = vmatpush1.msra.mxu0 0.0
  %954 = vmatprep.subr.mxu0 0.0
  %955 = vmatpush1.msra.mxu0 0.0
  %956 = vmatprep.subr.mxu0 0.0
  %957 = vmatpush1.msra.mxu0 0.0
  %958 = vmatprep.subr.mxu0 0.0
  %959 = vmatpush1.msra.mxu0 0.0
  %960 = vmatprep.subr.mxu0 0.0
  %961 = vmatpush1.msra.mxu0 0.0
  %962 = vmatprep.subr.mxu0 0.0
  %963 = vmatpush1.msra.mxu0 0.0
  %964 = vmatprep.subr.mxu0 0.0
  %965 = vmatpush1.msra.mxu0 0.0
  %966 = vmatprep.subr.mxu0 0.0
  %967 = vmatpush1.msra.mxu0 0.0
  %968 = vmatprep.subr.mxu0 0.0
  %969 = vmatpush1.msra.mxu0 0.0
  %970 = vmatprep.subr.mxu0 0.0
  %971 = vmatpush1.msra.mxu0 0.0
  %972 = vmatprep.subr.mxu0 0.0
  %973 = vmatpush1.msra.mxu0 0.0
  %974 = vmatprep.subr.mxu0 0.0
  %975 = vmatpush1.msra.mxu0 0.0
  %976 = vmatprep.subr.mxu0 0.0
  %977 = vmatpush1.msra.mxu0 0.0
  %978 = vmatprep.subr.mxu0 0.0
  %979 = vmatpush1.msra.mxu0 0.0
  %980 = vmatprep.subr.mxu0 0.0
  %981 = vmatpush1.msra.mxu0 0.0
  %982 = vmatprep.mubr.f32.mxu0 0.0
  %983 = vmatmul.mubr.f32.gmra.mrb[0].mxu0 %v916
  %v984 = vpop.f32.mrb[0].mxu0
  %v985 = vadd.f32 0.0, %v984
  %v986 = vpop.f32.mrb[0].mxu0
  %987 = vdwg.mxu0
  %988 = vrot.lane.b32.xlu0 %v139, 120
  %v989 = vpop.permute.xlu0 %988
  %990 = vrot.lane.b32.xlu0 %v139, 88
  %v991 = vpop.permute.xlu0 %990
  %v992 = vsel %vm145, %v989, 0
  %v994 = vsel %vm145, %v991, 0
  %996 = vmatprep.subr.mxu0 0.0
  %997 = vmatpush1.xpose.msra.mxu0 %v994
  %998 = vmatprep.subr.mxu0 0.0
  %999 = vmatpush1.xpose.msra.mxu0 0.0
  %1000 = vmatprep.subr.mxu0 0.0
  %1001 = vmatpush1.xpose.msra.mxu0 0.0
  %1002 = vmatprep.subr.mxu0 0.0
  %1003 = vmatpush1.xpose.msra.mxu0 0.0
  %1004 = vmatprep.subr.mxu0 0.0
  %1005 = vmatpush1.xpose.msra.mxu0 0.0
  %1006 = vmatprep.subr.mxu0 0.0
  %1007 = vmatpush1.xpose.msra.mxu0 0.0
  %1008 = vmatprep.subr.mxu0 0.0
  %1009 = vmatpush1.xpose.msra.mxu0 0.0
  %1010 = vmatprep.subr.mxu0 0.0
  %1011 = vmatpush1.xpose.msra.mxu0 0.0
  %1012 = vmatprep.subr.mxu0 0.0
  %1013 = vmatpush1.xpose.msra.mxu0 0.0
  %1014 = vmatprep.subr.mxu0 0.0
  %1015 = vmatpush1.xpose.msra.mxu0 0.0
  %1016 = vmatprep.subr.mxu0 0.0
  %1017 = vmatpush1.xpose.msra.mxu0 0.0
  %1018 = vmatprep.subr.mxu0 0.0
  %1019 = vmatpush1.xpose.msra.mxu0 0.0
  %1020 = vmatprep.subr.mxu0 0.0
  %1021 = vmatpush1.xpose.msra.mxu0 0.0
  %1022 = vmatprep.subr.mxu0 0.0
  %1023 = vmatpush1.xpose.msra.mxu0 0.0
  %1024 = vmatprep.subr.mxu0 0.0
  %1025 = vmatpush1.xpose.msra.mxu0 0.0
  %1026 = vmatprep.subr.mxu0 0.0
  %1027 = vmatpush1.xpose.msra.mxu0 0.0
  %1028 = vmatprep.subr.mxu0 0.0
  %1029 = vmatpush1.xpose.msra.mxu0 0.0
  %1030 = vmatprep.subr.mxu0 0.0
  %1031 = vmatpush1.xpose.msra.mxu0 0.0
  %1032 = vmatprep.subr.mxu0 0.0
  %1033 = vmatpush1.xpose.msra.mxu0 0.0
  %1034 = vmatprep.subr.mxu0 0.0
  %1035 = vmatpush1.xpose.msra.mxu0 0.0
  %1036 = vmatprep.subr.mxu0 0.0
  %1037 = vmatpush1.xpose.msra.mxu0 0.0
  %1038 = vmatprep.subr.mxu0 0.0
  %1039 = vmatpush1.xpose.msra.mxu0 0.0
  %1040 = vmatprep.subr.mxu0 0.0
  %1041 = vmatpush1.xpose.msra.mxu0 0.0
  %1042 = vmatprep.subr.mxu0 0.0
  %1043 = vmatpush1.xpose.msra.mxu0 0.0
  %1044 = vmatprep.subr.mxu0 0.0
  %1045 = vmatpush1.xpose.msra.mxu0 0.0
  %1046 = vmatprep.subr.mxu0 0.0
  %1047 = vmatpush1.xpose.msra.mxu0 0.0
  %1048 = vmatprep.subr.mxu0 0.0
  %1049 = vmatpush1.xpose.msra.mxu0 0.0
  %1050 = vmatprep.subr.mxu0 0.0
  %1051 = vmatpush1.xpose.msra.mxu0 0.0
  %1052 = vmatprep.subr.mxu0 0.0
  %1053 = vmatpush1.xpose.msra.mxu0 0.0
  %1054 = vmatprep.subr.mxu0 0.0
  %1055 = vmatpush1.xpose.msra.mxu0 0.0
  %1056 = vmatprep.subr.mxu0 0.0
  %1057 = vmatpush1.xpose.msra.mxu0 0.0
  %1058 = vmatprep.subr.mxu0 0.0
  %1059 = vmatpush1.xpose.msra.mxu0 0.0
  %1060 = vmatprep.mubr.f32.mxu0 0.0
  %1061 = vmatmul.mubr.f32.gmra.mrb[0].mxu0 %v992
  %v1062 = vpop.f32.mrb[0].mxu0
  %v1063 = vadd.f32 0.0, %v1062
  %v1064 = vpop.f32.mrb[0].mxu0
  %1065 = vdwg.mxu0
  %v1066 = vmul.f32 %v1063, 0.35355338
  %v1067 = vsel %vm145, %v1066, -inf
  %1068 = vmax.xlane.f32.xlu0 %v1067
  %v1069 = vpop.xlane.xlu0 %1068
  %v1070 = vsub.f32 %v1066, %v1069
  %v1071 = vmul.f32 %v1070, 1.442695
  %v1072 = vpow.pop %v1071
  %v1073 = vsel %vm145, %v1072, 0.0
  %1074 = vadd.xlane.f32.xlu0 %v1073
  %v1075 = vpop.xlane.xlu0 %1074
  %v1076 = vrcp.pop %v1075
  %v1077 = vmul.f32 %v1072, %v1076
  %1078 = vrot.lane.b32.xlu0 %v139, 56
  %v1079 = vpop.permute.xlu0 %1078
  %v1082 = vsel %vm145, %v1077, 0
  %1084 = vmatprep.subr.mxu0 0.0
  %1085 = vmatpush1.msra.mxu0 %v1079
  %1086 = vmatprep.subr.mxu0 0.0
  %1087 = vmatpush1.msra.mxu0 0.0
  %1088 = vmatprep.subr.mxu0 0.0
  %1089 = vmatpush1.msra.mxu0 0.0
  %1090 = vmatprep.subr.mxu0 0.0
  %1091 = vmatpush1.msra.mxu0 0.0
  %1092 = vmatprep.subr.mxu0 0.0
  %1093 = vmatpush1.msra.mxu0 0.0
  %1094 = vmatprep.subr.mxu0 0.0
  %1095 = vmatpush1.msra.mxu0 0.0
  %1096 = vmatprep.subr.mxu0 0.0
  %1097 = vmatpush1.msra.mxu0 0.0
  %1098 = vmatprep.subr.mxu0 0.0
  %1099 = vmatpush1.msra.mxu0 0.0
  %1100 = vmatprep.subr.mxu0 0.0
  %1101 = vmatpush1.msra.mxu0 0.0
  %1102 = vmatprep.subr.mxu0 0.0
  %1103 = vmatpush1.msra.mxu0 0.0
  %1104 = vmatprep.subr.mxu0 0.0
  %1105 = vmatpush1.msra.mxu0 0.0
  %1106 = vmatprep.subr.mxu0 0.0
  %1107 = vmatpush1.msra.mxu0 0.0
  %1108 = vmatprep.subr.mxu0 0.0
  %1109 = vmatpush1.msra.mxu0 0.0
  %1110 = vmatprep.subr.mxu0 0.0
  %1111 = vmatpush1.msra.mxu0 0.0
  %1112 = vmatprep.subr.mxu0 0.0
  %1113 = vmatpush1.msra.mxu0 0.0
  %1114 = vmatprep.subr.mxu0 0.0
  %1115 = vmatpush1.msra.mxu0 0.0
  %1116 = vmatprep.subr.mxu0 0.0
  %1117 = vmatpush1.msra.mxu0 0.0
  %1118 = vmatprep.subr.mxu0 0.0
  %1119 = vmatpush1.msra.mxu0 0.0
  %1120 = vmatprep.subr.mxu0 0.0
  %1121 = vmatpush1.msra.mxu0 0.0
  %1122 = vmatprep.subr.mxu0 0.0
  %1123 = vmatpush1.msra.mxu0 0.0
  %1124 = vmatprep.subr.mxu0 0.0
  %1125 = vmatpush1.msra.mxu0 0.0
  %1126 = vmatprep.subr.mxu0 0.0
  %1127 = vmatpush1.msra.mxu0 0.0
  %1128 = vmatprep.subr.mxu0 0.0
  %1129 = vmatpush1.msra.mxu0 0.0
  %1130 = vmatprep.subr.mxu0 0.0
  %1131 = vmatpush1.msra.mxu0 0.0
  %1132 = vmatprep.subr.mxu0 0.0
  %1133 = vmatpush1.msra.mxu0 0.0
  %1134 = vmatprep.subr.mxu0 0.0
  %1135 = vmatpush1.msra.mxu0 0.0
  %1136 = vmatprep.subr.mxu0 0.0
  %1137 = vmatpush1.msra.mxu0 0.0
  %1138 = vmatprep.subr.mxu0 0.0
  %1139 = vmatpush1.msra.mxu0 0.0
  %1140 = vmatprep.subr.mxu0 0.0
  %1141 = vmatpush1.msra.mxu0 0.0
  %1142 = vmatprep.subr.mxu0 0.0
  %1143 = vmatpush1.msra.mxu0 0.0
  %1144 = vmatprep.subr.mxu0 0.0
  %1145 = vmatpush1.msra.mxu0 0.0
  %1146 = vmatprep.subr.mxu0 0.0
  %1147 = vmatpush1.msra.mxu0 0.0
  %1148 = vmatprep.mubr.f32.mxu0 0.0
  %1149 = vmatmul.mubr.f32.gmra.mrb[0].mxu0 %v1082
  %v1150 = vpop.f32.mrb[0].mxu0
  %v1151 = vadd.f32 0.0, %v1150
  %v1152 = vpop.f32.mrb[0].mxu0
  %1153 = vdwg.mxu0
  %1154 = vrot.lane.b32.xlu0 %v139, 112
  %v1155 = vpop.permute.xlu0 %1154
  %1156 = vrot.lane.b32.xlu0 %v139, 80
  %v1157 = vpop.permute.xlu0 %1156
  %v1158 = vsel %vm145, %v1155, 0
  %v1160 = vsel %vm145, %v1157, 0
  %1162 = vmatprep.subr.mxu0 0.0
  %1163 = vmatpush1.xpose.msra.mxu0 %v1160
  %1164 = vmatprep.subr.mxu0 0.0
  %1165 = vmatpush1.xpose.msra.mxu0 0.0
  %1166 = vmatprep.subr.mxu0 0.0
  %1167 = vmatpush1.xpose.msra.mxu0 0.0
  %1168 = vmatprep.subr.mxu0 0.0
  %1169 = vmatpush1.xpose.msra.mxu0 0.0
  %1170 = vmatprep.subr.mxu0 0.0
  %1171 = vmatpush1.xpose.msra.mxu0 0.0
  %1172 = vmatprep.subr.mxu0 0.0
  %1173 = vmatpush1.xpose.msra.mxu0 0.0
  %1174 = vmatprep.subr.mxu0 0.0
  %1175 = vmatpush1.xpose.msra.mxu0 0.0
  %1176 = vmatprep.subr.mxu0 0.0
  %1177 = vmatpush1.xpose.msra.mxu0 0.0
  %1178 = vmatprep.subr.mxu0 0.0
  %1179 = vmatpush1.xpose.msra.mxu0 0.0
  %1180 = vmatprep.subr.mxu0 0.0
  %1181 = vmatpush1.xpose.msra.mxu0 0.0
  %1182 = vmatprep.subr.mxu0 0.0
  %1183 = vmatpush1.xpose.msra.mxu0 0.0
  %1184 = vmatprep.subr.mxu0 0.0
  %1185 = vmatpush1.xpose.msra.mxu0 0.0
  %1186 = vmatprep.subr.mxu0 0.0
  %1187 = vmatpush1.xpose.msra.mxu0 0.0
  %1188 = vmatprep.subr.mxu0 0.0
  %1189 = vmatpush1.xpose.msra.mxu0 0.0
  %1190 = vmatprep.subr.mxu0 0.0
  %1191 = vmatpush1.xpose.msra.mxu0 0.0
  %1192 = vmatprep.subr.mxu0 0.0
  %1193 = vmatpush1.xpose.msra.mxu0 0.0
  %1194 = vmatprep.subr.mxu0 0.0
  %1195 = vmatpush1.xpose.msra.mxu0 0.0
  %1196 = vmatprep.subr.mxu0 0.0
  %1197 = vmatpush1.xpose.msra.mxu0 0.0
  %1198 = vmatprep.subr.mxu0 0.0
  %1199 = vmatpush1.xpose.msra.mxu0 0.0
  %1200 = vmatprep.subr.mxu0 0.0
  %1201 = vmatpush1.xpose.msra.mxu0 0.0
  %1202 = vmatprep.subr.mxu0 0.0
  %1203 = vmatpush1.xpose.msra.mxu0 0.0
  %1204 = vmatprep.subr.mxu0 0.0
  %1205 = vmatpush1.xpose.msra.mxu0 0.0
  %1206 = vmatprep.subr.mxu0 0.0
  %1207 = vmatpush1.xpose.msra.mxu0 0.0
  %1208 = vmatprep.subr.mxu0 0.0
  %1209 = vmatpush1.xpose.msra.mxu0 0.0
  %1210 = vmatprep.subr.mxu0 0.0
  %1211 = vmatpush1.xpose.msra.mxu0 0.0
  %1212 = vmatprep.subr.mxu0 0.0
  %1213 = vmatpush1.xpose.msra.mxu0 0.0
  %1214 = vmatprep.subr.mxu0 0.0
  %1215 = vmatpush1.xpose.msra.mxu0 0.0
  %1216 = vmatprep.subr.mxu0 0.0
  %1217 = vmatpush1.xpose.msra.mxu0 0.0
  %1218 = vmatprep.subr.mxu0 0.0
  %1219 = vmatpush1.xpose.msra.mxu0 0.0
  %1220 = vmatprep.subr.mxu0 0.0
  %1221 = vmatpush1.xpose.msra.mxu0 0.0
  %1222 = vmatprep.subr.mxu0 0.0
  %1223 = vmatpush1.xpose.msra.mxu0 0.0
  %1224 = vmatprep.subr.mxu0 0.0
  %1225 = vmatpush1.xpose.msra.mxu0 0.0
  %1226 = vmatprep.mubr.f32.mxu0 0.0
  %1227 = vmatmul.mubr.f32.gmra.mrb[0].mxu0 %v1158
  %v1228 = vpop.f32.mrb[0].mxu0
  %v1229 = vadd.f32 0.0, %v1228
  %v1230 = vpop.f32.mrb[0].mxu0
  %1231 = vdwg.mxu0
  %v1232 = vmul.f32 %v1229, 0.35355338
  %v1233 = vsel %vm145, %v1232, -inf
  %1234 = vmax.xlane.f32.xlu0 %v1233
  %v1235 = vpop.xlane.xlu0 %1234
  %v1236 = vsub.f32 %v1232, %v1235
  %v1237 = vmul.f32 %v1236, 1.442695
  %v1238 = vpow.pop %v1237
  %v1239 = vsel %vm145, %v1238, 0.0
  %1240 = vadd.xlane.f32.xlu0 %v1239
  %v1241 = vpop.xlane.xlu0 %1240
  %v1242 = vrcp.pop %v1241
  %v1243 = vmul.f32 %v1238, %v1242
  %1244 = vrot.lane.b32.xlu0 %v139, 48
  %v1245 = vpop.permute.xlu0 %1244
  %v1248 = vsel %vm145, %v1243, 0
  %1250 = vmatprep.subr.mxu0 0.0
  %1251 = vmatpush1.msra.mxu0 %v1245
  %1252 = vmatprep.subr.mxu0 0.0
  %1253 = vmatpush1.msra.mxu0 0.0
  %1254 = vmatprep.subr.mxu0 0.0
  %1255 = vmatpush1.msra.mxu0 0.0
  %1256 = vmatprep.subr.mxu0 0.0
  %1257 = vmatpush1.msra.mxu0 0.0
  %1258 = vmatprep.subr.mxu0 0.0
  %1259 = vmatpush1.msra.mxu0 0.0
  %1260 = vmatprep.subr.mxu0 0.0
  %1261 = vmatpush1.msra.mxu0 0.0
  %1262 = vmatprep.subr.mxu0 0.0
  %1263 = vmatpush1.msra.mxu0 0.0
  %1264 = vmatprep.subr.mxu0 0.0
  %1265 = vmatpush1.msra.mxu0 0.0
  %1266 = vmatprep.subr.mxu0 0.0
  %1267 = vmatpush1.msra.mxu0 0.0
  %1268 = vmatprep.subr.mxu0 0.0
  %1269 = vmatpush1.msra.mxu0 0.0
  %1270 = vmatprep.subr.mxu0 0.0
  %1271 = vmatpush1.msra.mxu0 0.0
  %1272 = vmatprep.subr.mxu0 0.0
  %1273 = vmatpush1.msra.mxu0 0.0
  %1274 = vmatprep.subr.mxu0 0.0
  %1275 = vmatpush1.msra.mxu0 0.0
  %1276 = vmatprep.subr.mxu0 0.0
  %1277 = vmatpush1.msra.mxu0 0.0
  %1278 = vmatprep.subr.mxu0 0.0
  %1279 = vmatpush1.msra.mxu0 0.0
  %1280 = vmatprep.subr.mxu0 0.0
  %1281 = vmatpush1.msra.mxu0 0.0
  %1282 = vmatprep.subr.mxu0 0.0
  %1283 = vmatpush1.msra.mxu0 0.0
  %1284 = vmatprep.subr.mxu0 0.0
  %1285 = vmatpush1.msra.mxu0 0.0
  %1286 = vmatprep.subr.mxu0 0.0
  %1287 = vmatpush1.msra.mxu0 0.0
  %1288 = vmatprep.subr.mxu0 0.0
  %1289 = vmatpush1.msra.mxu0 0.0
  %1290 = vmatprep.subr.mxu0 0.0
  %1291 = vmatpush1.msra.mxu0 0.0
  %1292 = vmatprep.subr.mxu0 0.0
  %1293 = vmatpush1.msra.mxu0 0.0
  %1294 = vmatprep.subr.mxu0 0.0
  %1295 = vmatpush1.msra.mxu0 0.0
  %1296 = vmatprep.subr.mxu0 0.0
  %1297 = vmatpush1.msra.mxu0 0.0
  %1298 = vmatprep.subr.mxu0 0.0
  %1299 = vmatpush1.msra.mxu0 0.0
  %1300 = vmatprep.subr.mxu0 0.0
  %1301 = vmatpush1.msra.mxu0 0.0
  %1302 = vmatprep.subr.mxu0 0.0
  %1303 = vmatpush1.msra.mxu0 0.0
  %1304 = vmatprep.subr.mxu0 0.0
  %1305 = vmatpush1.msra.mxu0 0.0
  %1306 = vmatprep.subr.mxu0 0.0
  %1307 = vmatpush1.msra.mxu0 0.0
  %1308 = vmatprep.subr.mxu0 0.0
  %1309 = vmatpush1.msra.mxu0 0.0
  %1310 = vmatprep.subr.mxu0 0.0
  %1311 = vmatpush1.msra.mxu0 0.0
  %1312 = vmatprep.subr.mxu0 0.0
  %1313 = vmatpush1.msra.mxu0 0.0
  %1314 = vmatprep.mubr.f32.mxu0 0.0
  %1315 = vmatmul.mubr.f32.gmra.mrb[0].mxu0 %v1248
  %v1316 = vpop.f32.mrb[0].mxu0
  %v1317 = vadd.f32 0.0, %v1316
  %v1318 = vpop.f32.mrb[0].mxu0
  %1319 = vdwg.mxu0
  %1320 = vrot.lane.b32.xlu0 %v139, 104
  %v1321 = vpop.permute.xlu0 %1320
  %1322 = vrot.lane.b32.xlu0 %v139, 72
  %v1323 = vpop.permute.xlu0 %1322
  %v1324 = vsel %vm145, %v1321, 0
  %v1326 = vsel %vm145, %v1323, 0
  %1328 = vmatprep.subr.mxu0 0.0
  %1329 = vmatpush1.xpose.msra.mxu0 %v1326
  %1330 = vmatprep.subr.mxu0 0.0
  %1331 = vmatpush1.xpose.msra.mxu0 0.0
  %1332 = vmatprep.subr.mxu0 0.0
  %1333 = vmatpush1.xpose.msra.mxu0 0.0
  %1334 = vmatprep.subr.mxu0 0.0
  %1335 = vmatpush1.xpose.msra.mxu0 0.0
  %1336 = vmatprep.subr.mxu0 0.0
  %1337 = vmatpush1.xpose.msra.mxu0 0.0
  %1338 = vmatprep.subr.mxu0 0.0
  %1339 = vmatpush1.xpose.msra.mxu0 0.0
  %1340 = vmatprep.subr.mxu0 0.0
  %1341 = vmatpush1.xpose.msra.mxu0 0.0
  %1342 = vmatprep.subr.mxu0 0.0
  %1343 = vmatpush1.xpose.msra.mxu0 0.0
  %1344 = vmatprep.subr.mxu0 0.0
  %1345 = vmatpush1.xpose.msra.mxu0 0.0
  %1346 = vmatprep.subr.mxu0 0.0
  %1347 = vmatpush1.xpose.msra.mxu0 0.0
  %1348 = vmatprep.subr.mxu0 0.0
  %1349 = vmatpush1.xpose.msra.mxu0 0.0
  %1350 = vmatprep.subr.mxu0 0.0
  %1351 = vmatpush1.xpose.msra.mxu0 0.0
  %1352 = vmatprep.subr.mxu0 0.0
  %1353 = vmatpush1.xpose.msra.mxu0 0.0
  %1354 = vmatprep.subr.mxu0 0.0
  %1355 = vmatpush1.xpose.msra.mxu0 0.0
  %1356 = vmatprep.subr.mxu0 0.0
  %1357 = vmatpush1.xpose.msra.mxu0 0.0
  %1358 = vmatprep.subr.mxu0 0.0
  %1359 = vmatpush1.xpose.msra.mxu0 0.0
  %1360 = vmatprep.subr.mxu0 0.0
  %1361 = vmatpush1.xpose.msra.mxu0 0.0
  %1362 = vmatprep.subr.mxu0 0.0
  %1363 = vmatpush1.xpose.msra.mxu0 0.0
  %1364 = vmatprep.subr.mxu0 0.0
  %1365 = vmatpush1.xpose.msra.mxu0 0.0
  %1366 = vmatprep.subr.mxu0 0.0
  %1367 = vmatpush1.xpose.msra.mxu0 0.0
  %1368 = vmatprep.subr.mxu0 0.0
  %1369 = vmatpush1.xpose.msra.mxu0 0.0
  %1370 = vmatprep.subr.mxu0 0.0
  %1371 = vmatpush1.xpose.msra.mxu0 0.0
  %1372 = vmatprep.subr.mxu0 0.0
  %1373 = vmatpush1.xpose.msra.mxu0 0.0
  %1374 = vmatprep.subr.mxu0 0.0
  %1375 = vmatpush1.xpose.msra.mxu0 0.0
  %1376 = vmatprep.subr.mxu0 0.0
  %1377 = vmatpush1.xpose.msra.mxu0 0.0
  %1378 = vmatprep.subr.mxu0 0.0
  %1379 = vmatpush1.xpose.msra.mxu0 0.0
  %1380 = vmatprep.subr.mxu0 0.0
  %1381 = vmatpush1.xpose.msra.mxu0 0.0
  %1382 = vmatprep.subr.mxu0 0.0
  %1383 = vmatpush1.xpose.msra.mxu0 0.0
  %1384 = vmatprep.subr.mxu0 0.0
  %1385 = vmatpush1.xpose.msra.mxu0 0.0
  %1386 = vmatprep.subr.mxu0 0.0
  %1387 = vmatpush1.xpose.msra.mxu0 0.0
  %1388 = vmatprep.subr.mxu0 0.0
  %1389 = vmatpush1.xpose.msra.mxu0 0.0
  %1390 = vmatprep.subr.mxu0 0.0
  %1391 = vmatpush1.xpose.msra.mxu0 0.0
  %1392 = vmatprep.mubr.f32.mxu0 0.0
  %1393 = vmatmul.mubr.f32.gmra.mrb[0].mxu0 %v1324
  %v1394 = vpop.f32.mrb[0].mxu0
  %v1395 = vadd.f32 0.0, %v1394
  %v1396 = vpop.f32.mrb[0].mxu0
  %1397 = vdwg.mxu0
  %v1398 = vmul.f32 %v1395, 0.35355338
  %v1399 = vsel %vm145, %v1398, -inf
  %1400 = vmax.xlane.f32.xlu0 %v1399
  %v1401 = vpop.xlane.xlu0 %1400
  %v1402 = vsub.f32 %v1398, %v1401
  %v1403 = vmul.f32 %v1402, 1.442695
  %v1404 = vpow.pop %v1403
  %v1405 = vsel %vm145, %v1404, 0.0
  %1406 = vadd.xlane.f32.xlu0 %v1405
  %v1407 = vpop.xlane.xlu0 %1406
  %v1408 = vrcp.pop %v1407
  %v1409 = vmul.f32 %v1404, %v1408
  %1410 = vrot.lane.b32.xlu0 %v139, 40
  %v1411 = vpop.permute.xlu0 %1410
  %v1414 = vsel %vm145, %v1409, 0
  %1416 = vmatprep.subr.mxu0 0.0
  %1417 = vmatpush1.msra.mxu0 %v1411
  %1418 = vmatprep.subr.mxu0 0.0
  %1419 = vmatpush1.msra.mxu0 0.0
  %1420 = vmatprep.subr.mxu0 0.0
  %1421 = vmatpush1.msra.mxu0 0.0
  %1422 = vmatprep.subr.mxu0 0.0
  %1423 = vmatpush1.msra.mxu0 0.0
  %1424 = vmatprep.subr.mxu0 0.0
  %1425 = vmatpush1.msra.mxu0 0.0
  %1426 = vmatprep.subr.mxu0 0.0
  %1427 = vmatpush1.msra.mxu0 0.0
  %1428 = vmatprep.subr.mxu0 0.0
  %1429 = vmatpush1.msra.mxu0 0.0
  %1430 = vmatprep.subr.mxu0 0.0
  %1431 = vmatpush1.msra.mxu0 0.0
  %1432 = vmatprep.subr.mxu0 0.0
  %1433 = vmatpush1.msra.mxu0 0.0
  %1434 = vmatprep.subr.mxu0 0.0
  %1435 = vmatpush1.msra.mxu0 0.0
  %1436 = vmatprep.subr.mxu0 0.0
  %1437 = vmatpush1.msra.mxu0 0.0
  %1438 = vmatprep.subr.mxu0 0.0
  %1439 = vmatpush1.msra.mxu0 0.0
  %1440 = vmatprep.subr.mxu0 0.0
  %1441 = vmatpush1.msra.mxu0 0.0
  %1442 = vmatprep.subr.mxu0 0.0
  %1443 = vmatpush1.msra.mxu0 0.0
  %1444 = vmatprep.subr.mxu0 0.0
  %1445 = vmatpush1.msra.mxu0 0.0
  %1446 = vmatprep.subr.mxu0 0.0
  %1447 = vmatpush1.msra.mxu0 0.0
  %1448 = vmatprep.subr.mxu0 0.0
  %1449 = vmatpush1.msra.mxu0 0.0
  %1450 = vmatprep.subr.mxu0 0.0
  %1451 = vmatpush1.msra.mxu0 0.0
  %1452 = vmatprep.subr.mxu0 0.0
  %1453 = vmatpush1.msra.mxu0 0.0
  %1454 = vmatprep.subr.mxu0 0.0
  %1455 = vmatpush1.msra.mxu0 0.0
  %1456 = vmatprep.subr.mxu0 0.0
  %1457 = vmatpush1.msra.mxu0 0.0
  %1458 = vmatprep.subr.mxu0 0.0
  %1459 = vmatpush1.msra.mxu0 0.0
  %1460 = vmatprep.subr.mxu0 0.0
  %1461 = vmatpush1.msra.mxu0 0.0
  %1462 = vmatprep.subr.mxu0 0.0
  %1463 = vmatpush1.msra.mxu0 0.0
  %1464 = vmatprep.subr.mxu0 0.0
  %1465 = vmatpush1.msra.mxu0 0.0
  %1466 = vmatprep.subr.mxu0 0.0
  %1467 = vmatpush1.msra.mxu0 0.0
  %1468 = vmatprep.subr.mxu0 0.0
  %1469 = vmatpush1.msra.mxu0 0.0
  %1470 = vmatprep.subr.mxu0 0.0
  %1471 = vmatpush1.msra.mxu0 0.0
  %1472 = vmatprep.subr.mxu0 0.0
  %1473 = vmatpush1.msra.mxu0 0.0
  %1474 = vmatprep.subr.mxu0 0.0
  %1475 = vmatpush1.msra.mxu0 0.0
  %1476 = vmatprep.subr.mxu0 0.0
  %1477 = vmatpush1.msra.mxu0 0.0
  %1478 = vmatprep.subr.mxu0 0.0
  %1479 = vmatpush1.msra.mxu0 0.0
  %1480 = vmatprep.mubr.f32.mxu0 0.0
  %1481 = vmatmul.mubr.f32.gmra.mrb[0].mxu0 %v1414
  %v1482 = vpop.f32.mrb[0].mxu0
  %v1483 = vadd.f32 0.0, %v1482
  %v1484 = vpop.f32.mrb[0].mxu0
  %1485 = vdwg.mxu0
  %1487 = vrot.lane.b32.xlu0 %v1151, 8
  %v1488 = vpop.permute.xlu0 %1487
  %1491 = vrot.lane.b32.xlu0 %v1317, 16
  %v1492 = vpop.permute.xlu0 %1491
  %1495 = vrot.lane.b32.xlu0 %v1483, 24
  %v1496 = vpop.permute.xlu0 %1495
  %v1498 = vsel %vm145, %v985, %v1488
  %v1499 = vsel %vm819, %v1498, %v1492
  %v1500 = vsel %vm821, %v1499, %v1496
  %v1501 = vld [vmem:[%s3] sm:$0xff]
  %v1502 = vld [vmem:[%s3 + $0x8] sm:$0xff]
  %v1503 = vld [vmem:[%s3 + $0x10] sm:$0xff]
  %v1504 = vld [vmem:[%s3 + $0x18] sm:$0xff]
  %v1506 = vsel %vm60, %v822, 0
  %v1509 = vsel %vm60, %v1500, 0
  %1511 = vmatprep.subr.mxu0 0.0
  %1512 = vmatpush1.msra.mxu0 %v1501
  %1513 = vmatprep.subr.mxu0 0.0
  %1514 = vmatpush1.msra.mxu0 %v1502
  %1515 = vmatprep.subr.mxu0 0.0
  %1516 = vmatpush1.msra.mxu0 %v1503
  %1517 = vmatprep.subr.mxu0 0.0
  %1518 = vmatpush1.msra.mxu0 %v1504
  %1519 = vmatprep.subr.mxu0 0.0
  %1520 = vmatpush1.msra.mxu0 0.0
  %1521 = vmatprep.subr.mxu0 0.0
  %1522 = vmatpush1.msra.mxu0 0.0
  %1523 = vmatprep.subr.mxu0 0.0
  %1524 = vmatpush1.msra.mxu0 0.0
  %1525 = vmatprep.subr.mxu0 0.0
  %1526 = vmatpush1.msra.mxu0 0.0
  %1527 = vmatprep.subr.mxu0 0.0
  %1528 = vmatpush1.msra.mxu0 0.0
  %1529 = vmatprep.subr.mxu0 0.0
  %1530 = vmatpush1.msra.mxu0 0.0
  %1531 = vmatprep.subr.mxu0 0.0
  %1532 = vmatpush1.msra.mxu0 0.0
  %1533 = vmatprep.subr.mxu0 0.0
  %1534 = vmatpush1.msra.mxu0 0.0
  %1535 = vmatprep.subr.mxu0 0.0
  %1536 = vmatpush1.msra.mxu0 0.0
  %1537 = vmatprep.subr.mxu0 0.0
  %1538 = vmatpush1.msra.mxu0 0.0
  %1539 = vmatprep.subr.mxu0 0.0
  %1540 = vmatpush1.msra.mxu0 0.0
  %1541 = vmatprep.subr.mxu0 0.0
  %1542 = vmatpush1.msra.mxu0 0.0
  %1543 = vmatprep.subr.mxu0 0.0
  %1544 = vmatpush1.msra.mxu0 0.0
  %1545 = vmatprep.subr.mxu0 0.0
  %1546 = vmatpush1.msra.mxu0 0.0
  %1547 = vmatprep.subr.mxu0 0.0
  %1548 = vmatpush1.msra.mxu0 0.0
  %1549 = vmatprep.subr.mxu0 0.0
  %1550 = vmatpush1.msra.mxu0 0.0
  %1551 = vmatprep.subr.mxu0 0.0
  %1552 = vmatpush1.msra.mxu0 0.0
  %1553 = vmatprep.subr.mxu0 0.0
  %1554 = vmatpush1.msra.mxu0 0.0
  %1555 = vmatprep.subr.mxu0 0.0
  %1556 = vmatpush1.msra.mxu0 0.0
  %1557 = vmatprep.subr.mxu0 0.0
  %1558 = vmatpush1.msra.mxu0 0.0
  %1559 = vmatprep.subr.mxu0 0.0
  %1560 = vmatpush1.msra.mxu0 0.0
  %1561 = vmatprep.subr.mxu0 0.0
  %1562 = vmatpush1.msra.mxu0 0.0
  %1563 = vmatprep.subr.mxu0 0.0
  %1564 = vmatpush1.msra.mxu0 0.0
  %1565 = vmatprep.subr.mxu0 0.0
  %1566 = vmatpush1.msra.mxu0 0.0
  %1567 = vmatprep.subr.mxu0 0.0
  %1568 = vmatpush1.msra.mxu0 0.0
  %1569 = vmatprep.subr.mxu0 0.0
  %1570 = vmatpush1.msra.mxu0 0.0
  %1571 = vmatprep.subr.mxu0 0.0
  %1572 = vmatpush1.msra.mxu0 0.0
  %1573 = vmatprep.subr.mxu0 0.0
  %1574 = vmatpush1.msra.mxu0 0.0
  %1575 = vmatprep.mubr.f32.mxu0 0.0
  %1576 = vmatmul.mubr.f32.gmra.mrb[0].mxu0 %v1506
  %v1577 = vpop.f32.mrb[0].mxu0
  %v1578 = vadd.f32 0.0, %v1577
  %v1579 = vpop.f32.mrb[0].mxu0
  %1580 = vmatprep.mubr.f32.mxu0 0.0
  %1581 = vmatmul.mubr.f32.gmra.mrb[0].mxu0 %v1509
  %v1582 = vpop.f32.mrb[0].mxu0
  %v1583 = vadd.f32 0.0, %v1582
  %v1584 = vpop.f32.mrb[0].mxu0
  %1585 = vdwg.mxu0
  %v1586 = vld [vmem:[%s4] sm:$0xff]
  %v1587 = vld [vmem:[%s4 + $0x8] sm:$0xff]
  %v1588 = vld [vmem:[%s4 + $0x10] sm:$0xff]
  %v1589 = vld [vmem:[%s4 + $0x18] sm:$0xff]
  %v1590 = vld [vmem:[%s5] sm:$0x1]
  %v1592 = vlaneseq
  %v1593 = vshrl.u32 %v1592, 7
  %v1594 = vsub.s32 0, %v1593
  %v1595 = vrot.slane %v1590, %v1594
  %v1598 = vsel %vm60, %v1578, 0
  %v1601 = vsel %vm60, %v1583, 0
  %1603 = vmatprep.subr.mxu0 0.0
  %1604 = vmatpush1.msra.mxu0 %v1586
  %1605 = vmatprep.subr.mxu0 0.0
  %1606 = vmatpush1.msra.mxu0 %v1587
  %1607 = vmatprep.subr.mxu0 0.0
  %1608 = vmatpush1.msra.mxu0 %v1588
  %1609 = vmatprep.subr.mxu0 0.0
  %1610 = vmatpush1.msra.mxu0 %v1589
  %1611 = vmatprep.subr.mxu0 0.0
  %1612 = vmatpush1.msra.mxu0 0.0
  %1613 = vmatprep.subr.mxu0 0.0
  %1614 = vmatpush1.msra.mxu0 0.0
  %1615 = vmatprep.subr.mxu0 0.0
  %1616 = vmatpush1.msra.mxu0 0.0
  %1617 = vmatprep.subr.mxu0 0.0
  %1618 = vmatpush1.msra.mxu0 0.0
  %1619 = vmatprep.subr.mxu0 0.0
  %1620 = vmatpush1.msra.mxu0 0.0
  %1621 = vmatprep.subr.mxu0 0.0
  %1622 = vmatpush1.msra.mxu0 0.0
  %1623 = vmatprep.subr.mxu0 0.0
  %1624 = vmatpush1.msra.mxu0 0.0
  %1625 = vmatprep.subr.mxu0 0.0
  %1626 = vmatpush1.msra.mxu0 0.0
  %1627 = vmatprep.subr.mxu0 0.0
  %1628 = vmatpush1.msra.mxu0 0.0
  %1629 = vmatprep.subr.mxu0 0.0
  %1630 = vmatpush1.msra.mxu0 0.0
  %1631 = vmatprep.subr.mxu0 0.0
  %1632 = vmatpush1.msra.mxu0 0.0
  %1633 = vmatprep.subr.mxu0 0.0
  %1634 = vmatpush1.msra.mxu0 0.0
  %1635 = vmatprep.subr.mxu0 0.0
  %1636 = vmatpush1.msra.mxu0 0.0
  %1637 = vmatprep.subr.mxu0 0.0
  %1638 = vmatpush1.msra.mxu0 0.0
  %1639 = vmatprep.subr.mxu0 0.0
  %1640 = vmatpush1.msra.mxu0 0.0
  %1641 = vmatprep.subr.mxu0 0.0
  %1642 = vmatpush1.msra.mxu0 0.0
  %1643 = vmatprep.subr.mxu0 0.0
  %1644 = vmatpush1.msra.mxu0 0.0
  %1645 = vmatprep.subr.mxu0 0.0
  %1646 = vmatpush1.msra.mxu0 0.0
  %1647 = vmatprep.subr.mxu0 0.0
  %1648 = vmatpush1.msra.mxu0 0.0
  %1649 = vmatprep.subr.mxu0 0.0
  %1650 = vmatpush1.msra.mxu0 0.0
  %1651 = vmatprep.subr.mxu0 0.0
  %1652 = vmatpush1.msra.mxu0 0.0
  %1653 = vmatprep.subr.mxu0 0.0
  %1654 = vmatpush1.msra.mxu0 0.0
  %1655 = vmatprep.subr.mxu0 0.0
  %1656 = vmatpush1.msra.mxu0 0.0
  %1657 = vmatprep.subr.mxu0 0.0
  %1658 = vmatpush1.msra.mxu0 0.0
  %1659 = vmatprep.subr.mxu0 0.0
  %1660 = vmatpush1.msra.mxu0 0.0
  %1661 = vmatprep.subr.mxu0 0.0
  %1662 = vmatpush1.msra.mxu0 0.0
  %1663 = vmatprep.subr.mxu0 0.0
  %1664 = vmatpush1.msra.mxu0 0.0
  %1665 = vmatprep.subr.mxu0 0.0
  %1666 = vmatpush1.msra.mxu0 0.0
  %1667 = vmatprep.mubr.f32.mxu0 0.0
  %1668 = vmatmul.mubr.f32.gmra.mrb[0].mxu0 %v1598
  %v1669 = vpop.f32.mrb[0].mxu0
  %v1670 = vadd.f32 %v1595, %v1669
  %v1671 = vpop.f32.mrb[0].mxu0
  %1672 = vmatprep.mubr.f32.mxu0 0.0
  %1673 = vmatmul.mubr.f32.gmra.mrb[0].mxu0 %v1601
  %v1674 = vpop.f32.mrb[0].mxu0
  %v1675 = vadd.f32 %v1595, %v1674
  %v1676 = vpop.f32.mrb[0].mxu0
  %1677 = vdwg.mxu0
  %v1678 = vadd.f32 %v47, %v1670
  %v1679 = vadd.f32 %v48, %v1675
  %v1680 = vld [vmem:[%s6] sm:$0x1]
  %v1681 = vld [vmem:[%s7] sm:$0x1]
  %v1682 = vsel %vm60, %v1678, 0.0
  %1683 = vadd.xlane.f32.xlu0 %v1682
  %v1684 = vpop.xlane.xlu0 %1683
  %v1685 = vsel %vm60, %v1679, 0.0
  %1686 = vadd.xlane.f32.xlu0 %v1685
  %v1687 = vpop.xlane.xlu0 %1686
  %v1688 = vrcp.pop 32.0
  %v1689 = vmul.f32 %v1684, %v1688
  %v1690 = vmul.f32 %v1687, %v1688
  %v1691 = vsub.f32 %v1678, %v1689
  %v1692 = vsub.f32 %v1679, %v1690
  %v1693 = vmul.f32 %v1691, %v1691
  %v1694 = vmul.f32 %v1692, %v1692
  %v1695 = vsel %vm60, %v1693, 0.0
  %1696 = vadd.xlane.f32.xlu0 %v1695
  %v1697 = vpop.xlane.xlu0 %1696
  %v1698 = vsel %vm60, %v1694, 0.0
  %1699 = vadd.xlane.f32.xlu0 %v1698
  %v1700 = vpop.xlane.xlu0 %1699
  %v1701 = vmul.f32 %v1697, %v1688
  %v1702 = vmul.f32 %v1700, %v1688
  %v1703 = vadd.f32 %v1701, 1e-05
  %v1704 = vadd.f32 %v1702, 1e-05
  %v1705 = vrsqrt.pop %v1703
  %v1706 = vrsqrt.pop %v1704
  %v1707 = vmul.f32 %v1691, %v1705
  %v1708 = vmul.f32 %v1692, %v1706
  %v1710 = vlaneseq
  %v1711 = vshrl.u32 %v1710, 7
  %v1712 = vsub.s32 0, %v1711
  %v1713 = vrot.slane %v1680, %v1712
  %v1715 = vmul.f32 %v1707, %v1713
  %v1716 = vmul.f32 %v1708, %v1713
  %v1718 = vlaneseq
  %v1719 = vshrl.u32 %v1718, 7
  %v1720 = vsub.s32 0, %v1719
  %v1721 = vrot.slane %v1681, %v1720
  %v1723 = vadd.f32 %v1715, %v1721
  %v1724 = vadd.f32 %v1716, %v1721
  %v1725 = vld [vmem:[%s8] sm:$0xff]
  %v1726 = vld [vmem:[%s8 + $0x8] sm:$0xff]
  %v1727 = vld [vmem:[%s8 + $0x10] sm:$0xff]
  %v1728 = vld [vmem:[%s8 + $0x18] sm:$0xff]
  %v1729 = vld [vmem:[%s9] sm:$0x1]
  %v1731 = vlaneseq
  %v1732 = vshrl.u32 %v1731, 7
  %v1733 = vsub.s32 0, %v1732
  %v1734 = vrot.slane %v1729, %v1733
  %v1737 = vsel %vm60, %v1723, 0
  %v1740 = vsel %vm60, %v1724, 0
  %1742 = vmatprep.subr.mxu0 0.0
  %1743 = vmatpush1.msra.mxu0 %v1725
  %1744 = vmatprep.subr.mxu0 0.0
  %1745 = vmatpush1.msra.mxu0 %v1726
  %1746 = vmatprep.subr.mxu0 0.0
  %1747 = vmatpush1.msra.mxu0 %v1727
  %1748 = vmatprep.subr.mxu0 0.0
  %1749 = vmatpush1.msra.mxu0 %v1728
  %1750 = vmatprep.subr.mxu0 0.0
  %1751 = vmatpush1.msra.mxu0 0.0
  %1752 = vmatprep.subr.mxu0 0.0
  %1753 = vmatpush1.msra.mxu0 0.0
  %1754 = vmatprep.subr.mxu0 0.0
  %1755 = vmatpush1.msra.mxu0 0.0
  %1756 = vmatprep.subr.mxu0 0.0
  %1757 = vmatpush1.msra.mxu0 0.0
  %1758 = vmatprep.subr.mxu0 0.0
  %1759 = vmatpush1.msra.mxu0 0.0
  %1760 = vmatprep.subr.mxu0 0.0
  %1761 = vmatpush1.msra.mxu0 0.0
  %1762 = vmatprep.subr.mxu0 0.0
  %1763 = vmatpush1.msra.mxu0 0.0
  %1764 = vmatprep.subr.mxu0 0.0
  %1765 = vmatpush1.msra.mxu0 0.0
  %1766 = vmatprep.subr.mxu0 0.0
  %1767 = vmatpush1.msra.mxu0 0.0
  %1768 = vmatprep.subr.mxu0 0.0
  %1769 = vmatpush1.msra.mxu0 0.0
  %1770 = vmatprep.subr.mxu0 0.0
  %1771 = vmatpush1.msra.mxu0 0.0
  %1772 = vmatprep.subr.mxu0 0.0
  %1773 = vmatpush1.msra.mxu0 0.0
  %1774 = vmatprep.subr.mxu0 0.0
  %1775 = vmatpush1.msra.mxu0 0.0
  %1776 = vmatprep.subr.mxu0 0.0
  %1777 = vmatpush1.msra.mxu0 0.0
  %1778 = vmatprep.subr.mxu0 0.0
  %1779 = vmatpush1.msra.mxu0 0.0
  %1780 = vmatprep.subr.mxu0 0.0
  %1781 = vmatpush1.msra.mxu0 0.0
  %1782 = vmatprep.subr.mxu0 0.0
  %1783 = vmatpush1.msra.mxu0 0.0
  %1784 = vmatprep.subr.mxu0 0.0
  %1785 = vmatpush1.msra.mxu0 0.0
  %1786 = vmatprep.subr.mxu0 0.0
  %1787 = vmatpush1.msra.mxu0 0.0
  %1788 = vmatprep.subr.mxu0 0.0
  %1789 = vmatpush1.msra.mxu0 0.0
  %1790 = vmatprep.subr.mxu0 0.0
  %1791 = vmatpush1.msra.mxu0 0.0
  %1792 = vmatprep.subr.mxu0 0.0
  %1793 = vmatpush1.msra.mxu0 0.0
  %1794 = vmatprep.subr.mxu0 0.0
  %1795 = vmatpush1.msra.mxu0 0.0
  %1796 = vmatprep.subr.mxu0 0.0
  %1797 = vmatpush1.msra.mxu0 0.0
  %1798 = vmatprep.subr.mxu0 0.0
  %1799 = vmatpush1.msra.mxu0 0.0
  %1800 = vmatprep.subr.mxu0 0.0
  %1801 = vmatpush1.msra.mxu0 0.0
  %1802 = vmatprep.subr.mxu0 0.0
  %1803 = vmatpush1.msra.mxu0 0.0
  %1804 = vmatprep.subr.mxu0 0.0
  %1805 = vmatpush1.msra.mxu0 0.0
  %1806 = vmatprep.mubr.f32.mxu0 0.0
  %1807 = vmatmul.mubr.f32.gmra.mrb[0].mxu0 %v1737
  %v1808 = vpop.f32.mrb[0].mxu0
  %v1809 = vadd.f32 %v1734, %v1808
  %v1810 = vpop.f32.mrb[0].mxu0
  %1811 = vmatprep.mubr.f32.mxu0 0.0
  %1812 = vmatmul.mubr.f32.gmra.mrb[0].mxu0 %v1740
  %v1813 = vpop.f32.mrb[0].mxu0
  %v1814 = vadd.f32 %v1734, %v1813
  %v1815 = vpop.f32.mrb[0].mxu0
  %1816 = vdwg.mxu0
  %v1817 = vmax.f32 %v1809, 0.0
  %v1818 = vmax.f32 %v1814, 0.0
  %v1819 = vld [vmem:[%s10] sm:$0xff]
  %v1820 = vld [vmem:[%s10 + $0x8] sm:$0xff]
  %v1821 = vld [vmem:[%s10 + $0x10] sm:$0xff]
  %v1822 = vld [vmem:[%s10 + $0x18] sm:$0xff]
  %v1823 = vld [vmem:[%s10 + $0x20] sm:$0xff]
  %v1824 = vld [vmem:[%s10 + $0x28] sm:$0xff]
  %v1825 = vld [vmem:[%s10 + $0x30] sm:$0xff]
  %v1826 = vld [vmem:[%s10 + $0x38] sm:$0xff]
  %v1827 = vld [vmem:[%s11] sm:$0x1]
  %v1829 = vlaneseq
  %v1830 = vshrl.u32 %v1829, 7
  %v1831 = vsub.s32 0, %v1830
  %v1832 = vrot.slane %v1827, %v1831
  %vm1834 = vcmask 523264
  %v1836 = vsel %vm1834, %v1817, 0
  %v1839 = vsel %vm1834, %v1818, 0
  %1841 = vmatprep.subr.mxu0 0.0
  %1842 = vmatpush1.msra.mxu0 %v1819
  %1843 = vmatprep.subr.mxu0 0.0
  %1844 = vmatpush1.msra.mxu0 %v1820
  %1845 = vmatprep.subr.mxu0 0.0
  %1846 = vmatpush1.msra.mxu0 %v1821
  %1847 = vmatprep.subr.mxu0 0.0
  %1848 = vmatpush1.msra.mxu0 %v1822
  %1849 = vmatprep.subr.mxu0 0.0
  %1850 = vmatpush1.msra.mxu0 %v1823
  %1851 = vmatprep.subr.mxu0 0.0
  %1852 = vmatpush1.msra.mxu0 %v1824
  %1853 = vmatprep.subr.mxu0 0.0
  %1854 = vmatpush1.msra.mxu0 %v1825
  %1855 = vmatprep.subr.mxu0 0.0
  %1856 = vmatpush1.msra.mxu0 %v1826
  %1857 = vmatprep.subr.mxu0 0.0
  %1858 = vmatpush1.msra.mxu0 0.0
  %1859 = vmatprep.subr.mxu0 0.0
  %1860 = vmatpush1.msra.mxu0 0.0
  %1861 = vmatprep.subr.mxu0 0.0
  %1862 = vmatpush1.msra.mxu0 0.0
  %1863 = vmatprep.subr.mxu0 0.0
  %1864 = vmatpush1.msra.mxu0 0.0
  %1865 = vmatprep.subr.mxu0 0.0
  %1866 = vmatpush1.msra.mxu0 0.0
  %1867 = vmatprep.subr.mxu0 0.0
  %1868 = vmatpush1.msra.mxu0 0.0
  %1869 = vmatprep.subr.mxu0 0.0
  %1870 = vmatpush1.msra.mxu0 0.0
  %1871 = vmatprep.subr.mxu0 0.0
  %1872 = vmatpush1.msra.mxu0 0.0
  %1873 = vmatprep.subr.mxu0 0.0
  %1874 = vmatpush1.msra.mxu0 0.0
  %1875 = vmatprep.subr.mxu0 0.0
  %1876 = vmatpush1.msra.mxu0 0.0
  %1877 = vmatprep.subr.mxu0 0.0
  %1878 = vmatpush1.msra.mxu0 0.0
  %1879 = vmatprep.subr.mxu0 0.0
  %1880 = vmatpush1.msra.mxu0 0.0
  %1881 = vmatprep.subr.mxu0 0.0
  %1882 = vmatpush1.msra.mxu0 0.0
  %1883 = vmatprep.subr.mxu0 0.0
  %1884 = vmatpush1.msra.mxu0 0.0
  %1885 = vmatprep.subr.mxu0 0.0
  %1886 = vmatpush1.msra.mxu0 0.0
  %1887 = vmatprep.subr.mxu0 0.0
  %1888 = vmatpush1.msra.mxu0 0.0
  %1889 = vmatprep.subr.mxu0 0.0
  %1890 = vmatpush1.msra.mxu0 0.0
  %1891 = vmatprep.subr.mxu0 0.0
  %1892 = vmatpush1.msra.mxu0 0.0
  %1893 = vmatprep.subr.mxu0 0.0
  %1894 = vmatpush1.msra.mxu0 0.0
  %1895 = vmatprep.subr.mxu0 0.0
  %1896 = vmatpush1.msra.mxu0 0.0
  %1897 = vmatprep.subr.mxu0 0.0
  %1898 = vmatpush1.msra.mxu0 0.0
  %1899 = vmatprep.subr.mxu0 0.0
  %1900 = vmatpush1.msra.mxu0 0.0
  %1901 = vmatprep.subr.mxu0 0.0
  %1902 = vmatpush1.msra.mxu0 0.0
  %1903 = vmatprep.subr.mxu0 0.0
  %1904 = vmatpush1.msra.mxu0 0.0
  %1905 = vmatprep.mubr.f32.mxu0 0.0
  %1906 = vmatmul.mubr.f32.gmra.mrb[0].mxu0 %v1836
  %v1907 = vpop.f32.mrb[0].mxu0
  %v1908 = vadd.f32 %v1832, %v1907
  %v1909 = vpop.f32.mrb[0].mxu0
  %1910 = vmatprep.mubr.f32.mxu0 0.0
  %1911 = vmatmul.mubr.f32.gmra.mrb[0].mxu0 %v1839
  %v1912 = vpop.f32.mrb[0].mxu0
  %v1913 = vadd.f32 %v1832, %v1912
  %v1914 = vpop.f32.mrb[0].mxu0
  %1915 = vdwg.mxu0
  %v1916 = vadd.f32 %v1723, %v1908
  %v1917 = vadd.f32 %v1724, %v1913
  %v1918 = vld [vmem:[%s12] sm:$0x1]
  %v1919 = vld [vmem:[%s13] sm:$0x1]
  %v1920 = vsel %vm60, %v1916, 0.0
  %1921 = vadd.xlane.f32.xlu0 %v1920
  %v1922 = vpop.xlane.xlu0 %1921
  %v1923 = vsel %vm60, %v1917, 0.0
  %1924 = vadd.xlane.f32.xlu0 %v1923
  %v1925 = vpop.xlane.xlu0 %1924
  %v1926 = vmul.f32 %v1922, %v1688
  %v1927 = vmul.f32 %v1925, %v1688
  %v1928 = vsub.f32 %v1916, %v1926
  %v1929 = vsub.f32 %v1917, %v1927
  %v1930 = vmul.f32 %v1928, %v1928
  %v1931 = vmul.f32 %v1929, %v1929
  %v1932 = vsel %vm60, %v1930, 0.0
  %1933 = vadd.xlane.f32.xlu0 %v1932
  %v1934 = vpop.xlane.xlu0 %1933
  %v1935 = vsel %vm60, %v1931, 0.0
  %1936 = vadd.xlane.f32.xlu0 %v1935
  %v1937 = vpop.xlane.xlu0 %1936
  %v1938 = vmul.f32 %v1934, %v1688
  %v1939 = vmul.f32 %v1937, %v1688
  %v1940 = vadd.f32 %v1938, 1e-05
  %v1941 = vadd.f32 %v1939, 1e-05
  %v1942 = vrsqrt.pop %v1940
  %v1943 = vrsqrt.pop %v1941
  %v1944 = vmul.f32 %v1928, %v1942
  %v1945 = vmul.f32 %v1929, %v1943
  %v1947 = vlaneseq
  %v1948 = vshrl.u32 %v1947, 7
  %v1949 = vsub.s32 0, %v1948
  %v1950 = vrot.slane %v1918, %v1949
  %v1952 = vmul.f32 %v1944, %v1950
  %v1953 = vmul.f32 %v1945, %v1950
  %v1955 = vlaneseq
  %v1956 = vshrl.u32 %v1955, 7
  %v1957 = vsub.s32 0, %v1956
  %v1958 = vrot.slane %v1919, %v1957
  %v1960 = vadd.f32 %v1952, %v1958
  %v1961 = vadd.f32 %v1953, %v1958
  %1962 = vst.msk [vmem:[%s14] sm:$0xff] %vm60, %v1960
  %1963 = vst.msk [vmem:[%s14 + $0x8] sm:$0xff] %vm60, %v1961
  // Predicated region
  $region58: #{model_forward.5} parent=0 // pred_check
    _
  $region59: #{model_forward.5} parent=0 // pred_check_branch
    %1965 = sbr.rel (0) target = $region61
  $region60: #{model_forward.5} parent=0 // pred_region
    _
  $region61: #{model_forward.5} parent=0 // pred_fallthru
    _
  // Predicated region
  $region62: #{model_forward.5} parent=0 // pred_check
    _
  $region63: #{model_forward.5} parent=0 // pred_check_branch
    %1967 = sbr.rel (0) target = $region65
  $region64: #{model_forward.5} parent=0 // pred_region
    _
  $region65: #{model_forward.5} parent=0 // pred_fallthru
    _

</llo_original>
